<compile_context>
chip_gen: v7x
topology: tpu7x:2x2x1
jax: 0.10.0
libtpu: 0.0.40
codegen_flags: <defaults>
</compile_context>

<pallas_src>
import functools

import jax
import jax.numpy as jnp
from jax import lax
from jax.experimental import pallas as pl
from jax.experimental.pallas import tpu as pltpu

BN_EPS = 1e-5
_ROW_BUDGET = 2048                     # max NB*OH*OW output rows per grid step
_TILE_VMEM_BUDGET = 8 * 1024 * 1024    # per-step tile budget (double-buffered)
_VMEM_LIMIT = 32 * 1024 * 1024         # scoped-VMEM limit, safe on v5e/v6e/v7x


# ----------------------------- Pallas kernel ------------------------------- #

def _conv3x3_stats_kernel(xs_ref, w_ref, y_ref, sum_ref, sq_ref, *,
                          stride, nb, oh, ow, ci, co):
    """3x3 conv (9 accumulated MXU matmuls) + per-tile channel sum / sumsq.

    xs_ref : (NB, s*s, Hs, Ws, Ci)  stride-phase-split, zero-padded input
    w_ref  : (9, Ci, Co)            tap-major weights
    y_ref  : (NB, OH*OW, Co)        conv output (pre-BN, bias omitted)
    sum_ref, sq_ref : (1, 1, Co) f32 per-grid-tile partial statistics
    """
    rows = nb * oh * ow
    acc = jnp.zeros((rows, co), jnp.float32)
    for kh in range(3):
        for kw in range(3):
            phase = (kh % stride) * stride + (kw % stride)
            win = xs_ref[:, phase,
                         pl.ds(kh // stride, oh),
                         pl.ds(kw // stride, ow), :]          # (NB, OH, OW, Ci)
            acc = acc + jnp.dot(win.reshape(rows, ci),
                                w_ref[kh * 3 + kw],
                                preferred_element_type=jnp.float32)
    # Co < 128 at ResNet-110 widths, so the y store is lane-masked; that is
    # intrinsic to the channel count (the matmul result occupies those same
    # lanes anyway).  Stats come from the f32 accumulator, not the stored y.
    y_ref[...] = acc.reshape(nb, oh * ow, co).astype(y_ref.dtype)
    sum_ref[...] = jnp.sum(acc, axis=0).reshape(1, 1, co)
    sq_ref[...] = jnp.sum(acc * acc, axis=0).reshape(1, 1, co)


# ------------------------------ layer wrapper ------------------------------ #

def _round_up(x, m):
    return (x + m - 1) // m * m


def _pick_batch_tile(n, per_img_in_bytes, per_img_y_bytes, rows_per_img, ci, co):
    """Largest batch sub-tile (divisor of n) fitting the row and VMEM budgets."""
    lanes = max(ci, co, 128)
    nb = 1
    for d in range(1, n + 1):
        if n % d:
            continue
        rows = d * rows_per_img
        vmem = (2 * d * (per_img_in_bytes + per_img_y_bytes)   # double-buffered tiles
                + 4 * rows * lanes * 4)                        # f32 acc + slice temps
        if rows <= _ROW_BUDGET and vmem <= _TILE_VMEM_BUDGET:
            nb = d
    return nb


def conv3x3_stats(x, weight, stride, compute_dtype=jnp.float32):
    """x: (N,H,W,Ci) f32. weight: (Co,Ci,3,3) (PyTorch layout).

    Returns (y, mean, var): y is the pre-BN conv output in compute_dtype (conv
    bias omitted -- it cancels exactly under train-mode BN); mean/var are the
    biased batch statistics of y over (N, OH, OW), computed in f32.
    """
    N, H, W, Ci = x.shape
    Co = weight.shape[0]
    s = stride
    OH = (H - 1) // s + 1
    OW = (W - 1) // s + 1

    # Zero-pad (conv padding=1), round spatial dims up to a multiple of the
    # stride, then split into stride phases: xs[n, a*s+b, p, q, c] =
    # xp[n, s*p + a, s*q + b, c].  Tap (kh,kw) then only needs a contiguous
    # static slice.  Same total bytes as the input (no im2col blow-up).
    Hp, Wp = _round_up(H + 2, s), _round_up(W + 2, s)
    xp = jnp.pad(x, ((0, 0), (1, Hp - H - 1), (1, Wp - W - 1), (0, 0)))
    Hs, Ws = Hp // s, Wp // s
    xs = xp.reshape(N, Hs, s, Ws, s, Ci).transpose(0, 2, 4, 1, 3, 5)
    xs = xs.reshape(N, s * s, Hs, Ws, Ci).astype(compute_dtype)

    # (Co,Ci,kh,kw) -> (kh,kw,Ci,Co) -> (9,Ci,Co), tap-major.
    w = jnp.transpose(weight, (2, 3, 1, 0)).reshape(9, Ci, Co).astype(compute_dtype)

    itemsize = jnp.dtype(compute_dtype).itemsize
    per_img_in = s * s * Hs * Ws * Ci * itemsize
    per_img_y = OH * OW * Co * itemsize
    NB = _pick_batch_tile(N, per_img_in, per_img_y, OH * OW, Ci, Co)
    T = N // NB
    kernel = functools.partial(_conv3x3_stats_kernel, stride=s, nb=NB,
                               oh=OH, ow=OW, ci=Ci, co=Co)

    y, ssum, ssq = pl.pallas_call(
        kernel,
        out_shape=(jax.ShapeDtypeStruct((N, OH * OW, Co), compute_dtype),
                   jax.ShapeDtypeStruct((T, 1, Co), jnp.float32),
                   jax.ShapeDtypeStruct((T, 1, Co), jnp.float32)),
        grid=(T,),
        in_specs=[pl.BlockSpec((NB, s * s, Hs, Ws, Ci),
                               lambda i: (i, 0, 0, 0, 0)),
                  pl.BlockSpec((9, Ci, Co), lambda i: (0, 0, 0))],
        out_specs=(pl.BlockSpec((NB, OH * OW, Co), lambda i: (i, 0, 0)),
                   pl.BlockSpec((1, 1, Co), lambda i: (i, 0, 0)),
                   pl.BlockSpec((1, 1, Co), lambda i: (i, 0, 0))),
        compiler_params=pltpu.CompilerParams(
            dimension_semantics=("parallel",),
            vmem_limit_bytes=_VMEM_LIMIT),
    )(xs, w)

    M = N * OH * OW
    mean = jnp.sum(ssum, axis=0)[0] / M
    # One-pass variance; clamp tiny negatives from f32 cancellation.
    var = jnp.maximum(jnp.sum(ssq, axis=0)[0] / M - mean * mean, 0.0)
    return y.reshape(N, OH, OW, Co), mean, var


def _bn_relu(y, mean, var, gamma, beta):
    # Plain jnp on purpose: XLA fuses this elementwise op into the next layer's
    # pad/phase-split producer (or the final transpose), so no dedicated
    # mem-bound Pallas pass over the activation is needed.
    scale = gamma * lax.rsqrt(var + BN_EPS)
    return jnp.maximum(y * scale + (beta - mean * scale), 0.0)


def plain_block(x_nchw, params, stride, compute_dtype=jnp.float32):
    """PlainBlock forward. x_nchw: (N, Cin, H, W) f32 -> (N, Cout, OH, OW) f32.

    Conv biases (params["b1"], params["b2"]) are accepted but unused: a bias
    added right before train-mode BatchNorm cancels exactly, leaving the
    output unchanged.
    """
    x = jnp.transpose(x_nchw, (0, 2, 3, 1))          # NCHW -> NHWC
    y1, m1, v1 = conv3x3_stats(x, params["w1"], stride, compute_dtype)
    a1 = _bn_relu(y1, m1, v1, params["g1"], params["beta1"])
    y2, m2, v2 = conv3x3_stats(a1, params["w2"], 1, compute_dtype)
    out = _bn_relu(y2, m2, v2, params["g2"], params["beta2"])
    return jnp.transpose(out, (0, 3, 1, 2))          # NHWC -> NCHW


# ------------------------------ pure-JAX ref -------------------------------- #

def _ref_layer(x, w, b, g, beta, stride):
    y = lax.conv_general_dilated(
        x, jnp.transpose(w, (2, 3, 1, 0)),
        window_strides=(stride, stride), padding=((1, 1), (1, 1)),
        dimension_numbers=("NHWC", "HWIO", "NHWC"),
        precision=lax.Precision.HIGHEST) + b
    mean = jnp.mean(y, axis=(0, 1, 2))
    var = jnp.var(y, axis=(0, 1, 2))          # biased, like PyTorch train-mode BN
    y = (y - mean) / jnp.sqrt(var + BN_EPS) * g + beta
    return jnp.maximum(y, 0.0)


def plain_block_ref(x_nchw, params, stride):
    x = jnp.transpose(x_nchw, (0, 2, 3, 1))
    y = _ref_layer(x, params["w1"], params["b1"], params["g1"], params["beta1"], stride)
    y = _ref_layer(y, params["w2"], params["b2"], params["g2"], params["beta2"], 1)
    return jnp.transpose(y, (0, 3, 1, 2))


# ---------------------------------- main ------------------------------------ #

if __name__ == "__main__":
    key = jax.random.PRNGKey(0)
    ks = jax.random.split(key, 9)

    batch, in_chann, chann, H, W, stride = 2, 4, 8, 16, 16, 2

    params = {
        "w1": 0.1 * jax.random.normal(ks[0], (chann, in_chann, 3, 3), jnp.float32),
        "b1": 0.1 * jax.random.normal(ks[1], (chann,), jnp.float32),
        "g1": 1.0 + 0.1 * jax.random.normal(ks[2], (chann,), jnp.float32),
        "beta1": 0.1 * jax.random.normal(ks[3], (chann,), jnp.float32),
        "w2": 0.1 * jax.random.normal(ks[4], (chann, chann, 3, 3), jnp.float32),
        "b2": 0.1 * jax.random.normal(ks[5], (chann,), jnp.float32),
        "g2": 1.0 + 0.1 * jax.random.normal(ks[6], (chann,), jnp.float32),
        "beta2": 0.1 * jax.random.normal(ks[7], (chann,), jnp.float32),
    }
    x = jax.random.normal(ks[8], (batch, in_chann, H, W), jnp.float32)

    ref = jax.block_until_ready(plain_block_ref(x, params, stride))

    # f32 path: strict check against the HIGHEST-precision reference.
    fwd = jax.jit(functools.partial(plain_block, stride=stride))
    out = jax.block_until_ready(fwd(x, params))
    assert out.shape == (batch, chann, H // stride, W // stride), out.shape
    assert jnp.allclose(out, ref, atol=1e-3, rtol=1e-3), float(
        jnp.max(jnp.abs(out - ref)))

    # bf16 MXU path (v6e/v7x fast path): bf16 operands + bf16 activation
    # stores, f32 accumulation and f32 batch statistics.
    fwd_bf16 = jax.jit(functools.partial(plain_block, stride=stride,
                                         compute_dtype=jnp.bfloat16))
    out_bf16 = jax.block_until_ready(fwd_bf16(x, params))
    assert jnp.allclose(out_bf16, ref, atol=1e-1, rtol=1e-1), float(
        jnp.max(jnp.abs(out_bf16 - ref)))

    # TODO(synk): running_mean/running_var updates of nn.BatchNorm2d are module
    # state mutations and are not reproduced (they do not affect the forward output).
    print("KERNEL_OK")
</pallas_src>

<mosaic_0001>
module attributes {stable_mosaic.version = 11 : i64} {
  func.func @_conv3x3_stats_kernel(%arg0: i32, %arg1: memref<2x4x9x9x4xf32, #tpu.memory_space<vmem>>, %arg2: memref<9x4x8xf32, #tpu.memory_space<vmem>>, %arg3: memref<2x64x8xf32, #tpu.memory_space<vmem>>, %arg4: memref<1x1x8xf32, #tpu.memory_space<vmem>>, %arg5: memref<1x1x8xf32, #tpu.memory_space<vmem>>) attributes {dimension_semantics = [#tpu.dimension_semantics<parallel>], iteration_bounds = array<i64: 1>, scalar_prefetch = 0 : i64, scratch_operands = 0 : i64, tpu.core_type = #tpu.core_type<tc>, window_params = [{transform_indices = @transform_0, window_bounds = array<i64: 2, 4, 9, 9, 4>}, {pipeline_mode = #tpu.pipeline_mode<synchronous>, transform_indices = @transform_1, window_bounds = array<i64: 9, 4, 8>}, {transform_indices = @transform_2, window_bounds = array<i64: 2, 64, 8>}, {transform_indices = @transform_3, window_bounds = array<i64: 1, 1, 8>}, {transform_indices = @transform_4, window_bounds = array<i64: 1, 1, 8>}]} {
    %cst = arith.constant 0.000000e+00 : f32
    %0 = vector.broadcast %cst : f32 to vector<128x8xf32>
    %c0 = arith.constant 0 : index
    %c0_0 = arith.constant 0 : index
    %c0_1 = arith.constant 0 : index
    %c0_2 = arith.constant 0 : index
    %c0_3 = arith.constant 0 : index
    %1 = vector.load %arg1[%c0, %c0_0, %c0_1, %c0_2, %c0_3] : memref<2x4x9x9x4xf32, #tpu.memory_space<vmem>>, vector<2x1x8x8x4xf32>
    %2 = vector.shape_cast %1 : vector<2x1x8x8x4xf32> to vector<2x8x8x4xf32>
    %3 = vector.shape_cast %2 : vector<2x8x8x4xf32> to vector<128x4xf32>
    %c0_4 = arith.constant 0 : index
    %c0_5 = arith.constant 0 : index
    %c0_6 = arith.constant 0 : index
    %4 = vector.load %arg2[%c0_4, %c0_5, %c0_6] : memref<9x4x8xf32, #tpu.memory_space<vmem>>, vector<1x4x8xf32>
    %5 = vector.shape_cast %4 : vector<1x4x8xf32> to vector<4x8xf32>
    %cst_7 = arith.constant dense<0.000000e+00> : vector<128x8xf32>
    %6 = tpu.matmul %3, %5, %cst_7 {dimension_numbers = #tpu.dot_dimension_numbers<[1], [0], [0], [1], [0, 0, 1, 1], [], []>} : vector<128x4xf32>, vector<4x8xf32>, vector<128x8xf32> -> vector<128x8xf32>
    %7 = arith.addf %0, %6 : vector<128x8xf32>
    %c0_8 = arith.constant 0 : index
    %c1 = arith.constant 1 : index
    %c0_9 = arith.constant 0 : index
    %c0_10 = arith.constant 0 : index
    %c0_11 = arith.constant 0 : index
    %8 = vector.load %arg1[%c0_8, %c1, %c0_9, %c0_10, %c0_11] : memref<2x4x9x9x4xf32, #tpu.memory_space<vmem>>, vector<2x1x8x8x4xf32>
    %9 = vector.shape_cast %8 : vector<2x1x8x8x4xf32> to vector<2x8x8x4xf32>
    %10 = vector.shape_cast %9 : vector<2x8x8x4xf32> to vector<128x4xf32>
    %c1_12 = arith.constant 1 : index
    %c0_13 = arith.constant 0 : index
    %c0_14 = arith.constant 0 : index
    %11 = vector.load %arg2[%c1_12, %c0_13, %c0_14] : memref<9x4x8xf32, #tpu.memory_space<vmem>>, vector<1x4x8xf32>
    %12 = vector.shape_cast %11 : vector<1x4x8xf32> to vector<4x8xf32>
    %cst_15 = arith.constant dense<0.000000e+00> : vector<128x8xf32>
    %13 = tpu.matmul %10, %12, %cst_15 {dimension_numbers = #tpu.dot_dimension_numbers<[1], [0], [0], [1], [0, 0, 1, 1], [], []>} : vector<128x4xf32>, vector<4x8xf32>, vector<128x8xf32> -> vector<128x8xf32>
    %14 = arith.addf %7, %13 : vector<128x8xf32>
    %c0_16 = arith.constant 0 : index
    %c0_17 = arith.constant 0 : index
    %c0_18 = arith.constant 0 : index
    %c1_19 = arith.constant 1 : index
    %c0_20 = arith.constant 0 : index
    %15 = vector.load %arg1[%c0_16, %c0_17, %c0_18, %c1_19, %c0_20] : memref<2x4x9x9x4xf32, #tpu.memory_space<vmem>>, vector<2x1x8x8x4xf32>
    %16 = vector.shape_cast %15 : vector<2x1x8x8x4xf32> to vector<2x8x8x4xf32>
    %17 = vector.shape_cast %16 : vector<2x8x8x4xf32> to vector<128x4xf32>
    %c2 = arith.constant 2 : index
    %c0_21 = arith.constant 0 : index
    %c0_22 = arith.constant 0 : index
    %18 = vector.load %arg2[%c2, %c0_21, %c0_22] : memref<9x4x8xf32, #tpu.memory_space<vmem>>, vector<1x4x8xf32>
    %19 = vector.shape_cast %18 : vector<1x4x8xf32> to vector<4x8xf32>
    %cst_23 = arith.constant dense<0.000000e+00> : vector<128x8xf32>
    %20 = tpu.matmul %17, %19, %cst_23 {dimension_numbers = #tpu.dot_dimension_numbers<[1], [0], [0], [1], [0, 0, 1, 1], [], []>} : vector<128x4xf32>, vector<4x8xf32>, vector<128x8xf32> -> vector<128x8xf32>
    %21 = arith.addf %14, %20 : vector<128x8xf32>
    %c0_24 = arith.constant 0 : index
    %c2_25 = arith.constant 2 : index
    %c0_26 = arith.constant 0 : index
    %c0_27 = arith.constant 0 : index
    %c0_28 = arith.constant 0 : index
    %22 = vector.load %arg1[%c0_24, %c2_25, %c0_26, %c0_27, %c0_28] : memref<2x4x9x9x4xf32, #tpu.memory_space<vmem>>, vector<2x1x8x8x4xf32>
    %23 = vector.shape_cast %22 : vector<2x1x8x8x4xf32> to vector<2x8x8x4xf32>
    %24 = vector.shape_cast %23 : vector<2x8x8x4xf32> to vector<128x4xf32>
    %c3 = arith.constant 3 : index
    %c0_29 = arith.constant 0 : index
    %c0_30 = arith.constant 0 : index
    %25 = vector.load %arg2[%c3, %c0_29, %c0_30] : memref<9x4x8xf32, #tpu.memory_space<vmem>>, vector<1x4x8xf32>
    %26 = vector.shape_cast %25 : vector<1x4x8xf32> to vector<4x8xf32>
    %cst_31 = arith.constant dense<0.000000e+00> : vector<128x8xf32>
    %27 = tpu.matmul %24, %26, %cst_31 {dimension_numbers = #tpu.dot_dimension_numbers<[1], [0], [0], [1], [0, 0, 1, 1], [], []>} : vector<128x4xf32>, vector<4x8xf32>, vector<128x8xf32> -> vector<128x8xf32>
    %28 = arith.addf %21, %27 : vector<128x8xf32>
    %c0_32 = arith.constant 0 : index
    %c3_33 = arith.constant 3 : index
    %c0_34 = arith.constant 0 : index
    %c0_35 = arith.constant 0 : index
    %c0_36 = arith.constant 0 : index
    %29 = vector.load %arg1[%c0_32, %c3_33, %c0_34, %c0_35, %c0_36] : memref<2x4x9x9x4xf32, #tpu.memory_space<vmem>>, vector<2x1x8x8x4xf32>
    %30 = vector.shape_cast %29 : vector<2x1x8x8x4xf32> to vector<2x8x8x4xf32>
    %31 = vector.shape_cast %30 : vector<2x8x8x4xf32> to vector<128x4xf32>
    %c4 = arith.constant 4 : index
    %c0_37 = arith.constant 0 : index
    %c0_38 = arith.constant 0 : index
    %32 = vector.load %arg2[%c4, %c0_37, %c0_38] : memref<9x4x8xf32, #tpu.memory_space<vmem>>, vector<1x4x8xf32>
    %33 = vector.shape_cast %32 : vector<1x4x8xf32> to vector<4x8xf32>
    %cst_39 = arith.constant dense<0.000000e+00> : vector<128x8xf32>
    %34 = tpu.matmul %31, %33, %cst_39 {dimension_numbers = #tpu.dot_dimension_numbers<[1], [0], [0], [1], [0, 0, 1, 1], [], []>} : vector<128x4xf32>, vector<4x8xf32>, vector<128x8xf32> -> vector<128x8xf32>
    %35 = arith.addf %28, %34 : vector<128x8xf32>
    %c0_40 = arith.constant 0 : index
    %c2_41 = arith.constant 2 : index
    %c0_42 = arith.constant 0 : index
    %c1_43 = arith.constant 1 : index
    %c0_44 = arith.constant 0 : index
    %36 = vector.load %arg1[%c0_40, %c2_41, %c0_42, %c1_43, %c0_44] : memref<2x4x9x9x4xf32, #tpu.memory_space<vmem>>, vector<2x1x8x8x4xf32>
    %37 = vector.shape_cast %36 : vector<2x1x8x8x4xf32> to vector<2x8x8x4xf32>
    %38 = vector.shape_cast %37 : vector<2x8x8x4xf32> to vector<128x4xf32>
    %c5 = arith.constant 5 : index
    %c0_45 = arith.constant 0 : index
    %c0_46 = arith.constant 0 : index
    %39 = vector.load %arg2[%c5, %c0_45, %c0_46] : memref<9x4x8xf32, #tpu.memory_space<vmem>>, vector<1x4x8xf32>
    %40 = vector.shape_cast %39 : vector<1x4x8xf32> to vector<4x8xf32>
    %cst_47 = arith.constant dense<0.000000e+00> : vector<128x8xf32>
    %41 = tpu.matmul %38, %40, %cst_47 {dimension_numbers = #tpu.dot_dimension_numbers<[1], [0], [0], [1], [0, 0, 1, 1], [], []>} : vector<128x4xf32>, vector<4x8xf32>, vector<128x8xf32> -> vector<128x8xf32>
    %42 = arith.addf %35, %41 : vector<128x8xf32>
    %c0_48 = arith.constant 0 : index
    %c0_49 = arith.constant 0 : index
    %c1_50 = arith.constant 1 : index
    %c0_51 = arith.constant 0 : index
    %c0_52 = arith.constant 0 : index
    %43 = vector.load %arg1[%c0_48, %c0_49, %c1_50, %c0_51, %c0_52] : memref<2x4x9x9x4xf32, #tpu.memory_space<vmem>>, vector<2x1x8x8x4xf32>
    %44 = vector.shape_cast %43 : vector<2x1x8x8x4xf32> to vector<2x8x8x4xf32>
    %45 = vector.shape_cast %44 : vector<2x8x8x4xf32> to vector<128x4xf32>
    %c6 = arith.constant 6 : index
    %c0_53 = arith.constant 0 : index
    %c0_54 = arith.constant 0 : index
    %46 = vector.load %arg2[%c6, %c0_53, %c0_54] : memref<9x4x8xf32, #tpu.memory_space<vmem>>, vector<1x4x8xf32>
    %47 = vector.shape_cast %46 : vector<1x4x8xf32> to vector<4x8xf32>
    %cst_55 = arith.constant dense<0.000000e+00> : vector<128x8xf32>
    %48 = tpu.matmul %45, %47, %cst_55 {dimension_numbers = #tpu.dot_dimension_numbers<[1], [0], [0], [1], [0, 0, 1, 1], [], []>} : vector<128x4xf32>, vector<4x8xf32>, vector<128x8xf32> -> vector<128x8xf32>
    %49 = arith.addf %42, %48 : vector<128x8xf32>
    %c0_56 = arith.constant 0 : index
    %c1_57 = arith.constant 1 : index
    %c1_58 = arith.constant 1 : index
    %c0_59 = arith.constant 0 : index
    %c0_60 = arith.constant 0 : index
    %50 = vector.load %arg1[%c0_56, %c1_57, %c1_58, %c0_59, %c0_60] : memref<2x4x9x9x4xf32, #tpu.memory_space<vmem>>, vector<2x1x8x8x4xf32>
    %51 = vector.shape_cast %50 : vector<2x1x8x8x4xf32> to vector<2x8x8x4xf32>
    %52 = vector.shape_cast %51 : vector<2x8x8x4xf32> to vector<128x4xf32>
    %c7 = arith.constant 7 : index
    %c0_61 = arith.constant 0 : index
    %c0_62 = arith.constant 0 : index
    %53 = vector.load %arg2[%c7, %c0_61, %c0_62] : memref<9x4x8xf32, #tpu.memory_space<vmem>>, vector<1x4x8xf32>
    %54 = vector.shape_cast %53 : vector<1x4x8xf32> to vector<4x8xf32>
    %cst_63 = arith.constant dense<0.000000e+00> : vector<128x8xf32>
    %55 = tpu.matmul %52, %54, %cst_63 {dimension_numbers = #tpu.dot_dimension_numbers<[1], [0], [0], [1], [0, 0, 1, 1], [], []>} : vector<128x4xf32>, vector<4x8xf32>, vector<128x8xf32> -> vector<128x8xf32>
    %56 = arith.addf %49, %55 : vector<128x8xf32>
    %c0_64 = arith.constant 0 : index
    %c0_65 = arith.constant 0 : index
    %c1_66 = arith.constant 1 : index
    %c1_67 = arith.constant 1 : index
    %c0_68 = arith.constant 0 : index
    %57 = vector.load %arg1[%c0_64, %c0_65, %c1_66, %c1_67, %c0_68] : memref<2x4x9x9x4xf32, #tpu.memory_space<vmem>>, vector<2x1x8x8x4xf32>
    %58 = vector.shape_cast %57 : vector<2x1x8x8x4xf32> to vector<2x8x8x4xf32>
    %59 = vector.shape_cast %58 : vector<2x8x8x4xf32> to vector<128x4xf32>
    %c8 = arith.constant 8 : index
    %c0_69 = arith.constant 0 : index
    %c0_70 = arith.constant 0 : index
    %60 = vector.load %arg2[%c8, %c0_69, %c0_70] : memref<9x4x8xf32, #tpu.memory_space<vmem>>, vector<1x4x8xf32>
    %61 = vector.shape_cast %60 : vector<1x4x8xf32> to vector<4x8xf32>
    %cst_71 = arith.constant dense<0.000000e+00> : vector<128x8xf32>
    %62 = tpu.matmul %59, %61, %cst_71 {dimension_numbers = #tpu.dot_dimension_numbers<[1], [0], [0], [1], [0, 0, 1, 1], [], []>} : vector<128x4xf32>, vector<4x8xf32>, vector<128x8xf32> -> vector<128x8xf32>
    %63 = arith.addf %56, %62 : vector<128x8xf32>
    %64 = vector.shape_cast %63 : vector<128x8xf32> to vector<2x64x8xf32>
    %c0_72 = arith.constant 0 : index
    %c0_73 = arith.constant 0 : index
    %c0_74 = arith.constant 0 : index
    %65 = vector.load %arg3[%c0_72, %c0_73, %c0_74] : memref<2x64x8xf32, #tpu.memory_space<vmem>>, vector<2x64x8xf32>
    tpu.vector_store %arg3[%c0_72, %c0_73, %c0_74], %64 {strides = array<i32>} : memref<2x64x8xf32, #tpu.memory_space<vmem>>, vector<2x64x8xf32>,
    %cst_75 = arith.constant dense<0.000000e+00> : vector<8xf32>
    %66 = vector.multi_reduction <add>, %63, %cst_75 [0] : vector<128x8xf32> to vector<8xf32>
    %67 = vector.shape_cast %66 : vector<8xf32> to vector<1x1x8xf32>
    %c0_76 = arith.constant 0 : index
    %c0_77 = arith.constant 0 : index
    %c0_78 = arith.constant 0 : index
    %68 = vector.load %arg4[%c0_76, %c0_77, %c0_78] : memref<1x1x8xf32, #tpu.memory_space<vmem>>, vector<1x1x8xf32>
    tpu.vector_store %arg4[%c0_76, %c0_77, %c0_78], %67 {strides = array<i32>} : memref<1x1x8xf32, #tpu.memory_space<vmem>>, vector<1x1x8xf32>,
    %69 = arith.mulf %63, %63 : vector<128x8xf32>
    %cst_79 = arith.constant dense<0.000000e+00> : vector<8xf32>
    %70 = vector.multi_reduction <add>, %69, %cst_79 [0] : vector<128x8xf32> to vector<8xf32>
    %71 = vector.shape_cast %70 : vector<8xf32> to vector<1x1x8xf32>
    %c0_80 = arith.constant 0 : index
    %c0_81 = arith.constant 0 : index
    %c0_82 = arith.constant 0 : index
    %72 = vector.load %arg5[%c0_80, %c0_81, %c0_82] : memref<1x1x8xf32, #tpu.memory_space<vmem>>, vector<1x1x8xf32>
    tpu.vector_store %arg5[%c0_80, %c0_81, %c0_82], %71 {strides = array<i32>} : memref<1x1x8xf32, #tpu.memory_space<vmem>>, vector<1x1x8xf32>,
    return
  }
  func.func @transform_0(%arg0: i32) -> (i32, i32, i32, i32, i32) {
    %c0_i32 = arith.constant 0 : i32
    %c0_i32_0 = arith.constant 0 : i32
    %c0_i32_1 = arith.constant 0 : i32
    %c0_i32_2 = arith.constant 0 : i32
    %c0_i32_3 = arith.constant 0 : i32
    return %arg0, %c0_i32, %c0_i32_0, %c0_i32_1, %c0_i32_2 : i32, i32, i32, i32, i32
  }
  func.func @transform_1(%arg0: i32) -> (i32, i32, i32) {
    %c0_i32 = arith.constant 0 : i32
    %c0_i32_0 = arith.constant 0 : i32
    %c0_i32_1 = arith.constant 0 : i32
    %c0_i32_2 = arith.constant 0 : i32
    return %c0_i32, %c0_i32_0, %c0_i32_1 : i32, i32, i32
  }
  func.func @transform_2(%arg0: i32) -> (i32, i32, i32) {
    %c0_i32 = arith.constant 0 : i32
    %c0_i32_0 = arith.constant 0 : i32
    %c0_i32_1 = arith.constant 0 : i32
    return %arg0, %c0_i32, %c0_i32_0 : i32, i32, i32
  }
  func.func @transform_3(%arg0: i32) -> (i32, i32, i32) {
    %c0_i32 = arith.constant 0 : i32
    %c0_i32_0 = arith.constant 0 : i32
    %c0_i32_1 = arith.constant 0 : i32
    return %arg0, %c0_i32, %c0_i32_0 : i32, i32, i32
  }
  func.func @transform_4(%arg0: i32) -> (i32, i32, i32) {
    %c0_i32 = arith.constant 0 : i32
    %c0_i32_0 = arith.constant 0 : i32
    %c0_i32_1 = arith.constant 0 : i32
    return %arg0, %c0_i32, %c0_i32_0 : i32, i32, i32
  }
}

module attributes {stable_mosaic.version = 11 : i64} {
  func.func @_conv3x3_stats_kernel(%arg0: i32, %arg1: memref<2x1x10x10x8xf32, #tpu.memory_space<vmem>>, %arg2: memref<9x8x8xf32, #tpu.memory_space<vmem>>, %arg3: memref<2x64x8xf32, #tpu.memory_space<vmem>>, %arg4: memref<1x1x8xf32, #tpu.memory_space<vmem>>, %arg5: memref<1x1x8xf32, #tpu.memory_space<vmem>>) attributes {dimension_semantics = [#tpu.dimension_semantics<parallel>], iteration_bounds = array<i64: 1>, scalar_prefetch = 0 : i64, scratch_operands = 0 : i64, tpu.core_type = #tpu.core_type<tc>, window_params = [{transform_indices = @transform_0, window_bounds = array<i64: 2, 1, 10, 10, 8>}, {pipeline_mode = #tpu.pipeline_mode<synchronous>, transform_indices = @transform_1, window_bounds = array<i64: 9, 8, 8>}, {transform_indices = @transform_2, window_bounds = array<i64: 2, 64, 8>}, {transform_indices = @transform_3, window_bounds = array<i64: 1, 1, 8>}, {transform_indices = @transform_4, window_bounds = array<i64: 1, 1, 8>}]} {
    %cst = arith.constant 0.000000e+00 : f32
    %0 = vector.broadcast %cst : f32 to vector<128x8xf32>
    %c0 = arith.constant 0 : index
    %c0_0 = arith.constant 0 : index
    %c0_1 = arith.constant 0 : index
    %c0_2 = arith.constant 0 : index
    %c0_3 = arith.constant 0 : index
    %1 = vector.load %arg1[%c0, %c0_0, %c0_1, %c0_2, %c0_3] : memref<2x1x10x10x8xf32, #tpu.memory_space<vmem>>, vector<2x1x8x8x8xf32>
    %2 = vector.shape_cast %1 : vector<2x1x8x8x8xf32> to vector<2x8x8x8xf32>
    %3 = vector.shape_cast %2 : vector<2x8x8x8xf32> to vector<128x8xf32>
    %c0_4 = arith.constant 0 : index
    %c0_5 = arith.constant 0 : index
    %c0_6 = arith.constant 0 : index
    %4 = vector.load %arg2[%c0_4, %c0_5, %c0_6] : memref<9x8x8xf32, #tpu.memory_space<vmem>>, vector<1x8x8xf32>
    %5 = vector.shape_cast %4 : vector<1x8x8xf32> to vector<8x8xf32>
    %cst_7 = arith.constant dense<0.000000e+00> : vector<128x8xf32>
    %6 = tpu.matmul %3, %5, %cst_7 {dimension_numbers = #tpu.dot_dimension_numbers<[1], [0], [0], [1], [0, 0, 1, 1], [], []>} : vector<128x8xf32>, vector<8x8xf32>, vector<128x8xf32> -> vector<128x8xf32>
    %7 = arith.addf %0, %6 : vector<128x8xf32>
    %c0_8 = arith.constant 0 : index
    %c0_9 = arith.constant 0 : index
    %c0_10 = arith.constant 0 : index
    %c1 = arith.constant 1 : index
    %c0_11 = arith.constant 0 : index
    %8 = vector.load %arg1[%c0_8, %c0_9, %c0_10, %c1, %c0_11] : memref<2x1x10x10x8xf32, #tpu.memory_space<vmem>>, vector<2x1x8x8x8xf32>
    %9 = vector.shape_cast %8 : vector<2x1x8x8x8xf32> to vector<2x8x8x8xf32>
    %10 = vector.shape_cast %9 : vector<2x8x8x8xf32> to vector<128x8xf32>
    %c1_12 = arith.constant 1 : index
    %c0_13 = arith.constant 0 : index
    %c0_14 = arith.constant 0 : index
    %11 = vector.load %arg2[%c1_12, %c0_13, %c0_14] : memref<9x8x8xf32, #tpu.memory_space<vmem>>, vector<1x8x8xf32>
    %12 = vector.shape_cast %11 : vector<1x8x8xf32> to vector<8x8xf32>
    %cst_15 = arith.constant dense<0.000000e+00> : vector<128x8xf32>
    %13 = tpu.matmul %10, %12, %cst_15 {dimension_numbers = #tpu.dot_dimension_numbers<[1], [0], [0], [1], [0, 0, 1, 1], [], []>} : vector<128x8xf32>, vector<8x8xf32>, vector<128x8xf32> -> vector<128x8xf32>
    %14 = arith.addf %7, %13 : vector<128x8xf32>
    %c0_16 = arith.constant 0 : index
    %c0_17 = arith.constant 0 : index
    %c0_18 = arith.constant 0 : index
    %c2 = arith.constant 2 : index
    %c0_19 = arith.constant 0 : index
    %15 = vector.load %arg1[%c0_16, %c0_17, %c0_18, %c2, %c0_19] : memref<2x1x10x10x8xf32, #tpu.memory_space<vmem>>, vector<2x1x8x8x8xf32>
    %16 = vector.shape_cast %15 : vector<2x1x8x8x8xf32> to vector<2x8x8x8xf32>
    %17 = vector.shape_cast %16 : vector<2x8x8x8xf32> to vector<128x8xf32>
    %c2_20 = arith.constant 2 : index
    %c0_21 = arith.constant 0 : index
    %c0_22 = arith.constant 0 : index
    %18 = vector.load %arg2[%c2_20, %c0_21, %c0_22] : memref<9x8x8xf32, #tpu.memory_space<vmem>>, vector<1x8x8xf32>
    %19 = vector.shape_cast %18 : vector<1x8x8xf32> to vector<8x8xf32>
    %cst_23 = arith.constant dense<0.000000e+00> : vector<128x8xf32>
    %20 = tpu.matmul %17, %19, %cst_23 {dimension_numbers = #tpu.dot_dimension_numbers<[1], [0], [0], [1], [0, 0, 1, 1], [], []>} : vector<128x8xf32>, vector<8x8xf32>, vector<128x8xf32> -> vector<128x8xf32>
    %21 = arith.addf %14, %20 : vector<128x8xf32>
    %c0_24 = arith.constant 0 : index
    %c0_25 = arith.constant 0 : index
    %c1_26 = arith.constant 1 : index
    %c0_27 = arith.constant 0 : index
    %c0_28 = arith.constant 0 : index
    %22 = vector.load %arg1[%c0_24, %c0_25, %c1_26, %c0_27, %c0_28] : memref<2x1x10x10x8xf32, #tpu.memory_space<vmem>>, vector<2x1x8x8x8xf32>
    %23 = vector.shape_cast %22 : vector<2x1x8x8x8xf32> to vector<2x8x8x8xf32>
    %24 = vector.shape_cast %23 : vector<2x8x8x8xf32> to vector<128x8xf32>
    %c3 = arith.constant 3 : index
    %c0_29 = arith.constant 0 : index
    %c0_30 = arith.constant 0 : index
    %25 = vector.load %arg2[%c3, %c0_29, %c0_30] : memref<9x8x8xf32, #tpu.memory_space<vmem>>, vector<1x8x8xf32>
    %26 = vector.shape_cast %25 : vector<1x8x8xf32> to vector<8x8xf32>
    %cst_31 = arith.constant dense<0.000000e+00> : vector<128x8xf32>
    %27 = tpu.matmul %24, %26, %cst_31 {dimension_numbers = #tpu.dot_dimension_numbers<[1], [0], [0], [1], [0, 0, 1, 1], [], []>} : vector<128x8xf32>, vector<8x8xf32>, vector<128x8xf32> -> vector<128x8xf32>
    %28 = arith.addf %21, %27 : vector<128x8xf32>
    %c0_32 = arith.constant 0 : index
    %c0_33 = arith.constant 0 : index
    %c1_34 = arith.constant 1 : index
    %c1_35 = arith.constant 1 : index
    %c0_36 = arith.constant 0 : index
    %29 = vector.load %arg1[%c0_32, %c0_33, %c1_34, %c1_35, %c0_36] : memref<2x1x10x10x8xf32, #tpu.memory_space<vmem>>, vector<2x1x8x8x8xf32>
    %30 = vector.shape_cast %29 : vector<2x1x8x8x8xf32> to vector<2x8x8x8xf32>
    %31 = vector.shape_cast %30 : vector<2x8x8x8xf32> to vector<128x8xf32>
    %c4 = arith.constant 4 : index
    %c0_37 = arith.constant 0 : index
    %c0_38 = arith.constant 0 : index
    %32 = vector.load %arg2[%c4, %c0_37, %c0_38] : memref<9x8x8xf32, #tpu.memory_space<vmem>>, vector<1x8x8xf32>
    %33 = vector.shape_cast %32 : vector<1x8x8xf32> to vector<8x8xf32>
    %cst_39 = arith.constant dense<0.000000e+00> : vector<128x8xf32>
    %34 = tpu.matmul %31, %33, %cst_39 {dimension_numbers = #tpu.dot_dimension_numbers<[1], [0], [0], [1], [0, 0, 1, 1], [], []>} : vector<128x8xf32>, vector<8x8xf32>, vector<128x8xf32> -> vector<128x8xf32>
    %35 = arith.addf %28, %34 : vector<128x8xf32>
    %c0_40 = arith.constant 0 : index
    %c0_41 = arith.constant 0 : index
    %c1_42 = arith.constant 1 : index
    %c2_43 = arith.constant 2 : index
    %c0_44 = arith.constant 0 : index
    %36 = vector.load %arg1[%c0_40, %c0_41, %c1_42, %c2_43, %c0_44] : memref<2x1x10x10x8xf32, #tpu.memory_space<vmem>>, vector<2x1x8x8x8xf32>
    %37 = vector.shape_cast %36 : vector<2x1x8x8x8xf32> to vector<2x8x8x8xf32>
    %38 = vector.shape_cast %37 : vector<2x8x8x8xf32> to vector<128x8xf32>
    %c5 = arith.constant 5 : index
    %c0_45 = arith.constant 0 : index
    %c0_46 = arith.constant 0 : index
    %39 = vector.load %arg2[%c5, %c0_45, %c0_46] : memref<9x8x8xf32, #tpu.memory_space<vmem>>, vector<1x8x8xf32>
    %40 = vector.shape_cast %39 : vector<1x8x8xf32> to vector<8x8xf32>
    %cst_47 = arith.constant dense<0.000000e+00> : vector<128x8xf32>
    %41 = tpu.matmul %38, %40, %cst_47 {dimension_numbers = #tpu.dot_dimension_numbers<[1], [0], [0], [1], [0, 0, 1, 1], [], []>} : vector<128x8xf32>, vector<8x8xf32>, vector<128x8xf32> -> vector<128x8xf32>
    %42 = arith.addf %35, %41 : vector<128x8xf32>
    %c0_48 = arith.constant 0 : index
    %c0_49 = arith.constant 0 : index
    %c2_50 = arith.constant 2 : index
    %c0_51 = arith.constant 0 : index
    %c0_52 = arith.constant 0 : index
    %43 = vector.load %arg1[%c0_48, %c0_49, %c2_50, %c0_51, %c0_52] : memref<2x1x10x10x8xf32, #tpu.memory_space<vmem>>, vector<2x1x8x8x8xf32>
    %44 = vector.shape_cast %43 : vector<2x1x8x8x8xf32> to vector<2x8x8x8xf32>
    %45 = vector.shape_cast %44 : vector<2x8x8x8xf32> to vector<128x8xf32>
    %c6 = arith.constant 6 : index
    %c0_53 = arith.constant 0 : index
    %c0_54 = arith.constant 0 : index
    %46 = vector.load %arg2[%c6, %c0_53, %c0_54] : memref<9x8x8xf32, #tpu.memory_space<vmem>>, vector<1x8x8xf32>
    %47 = vector.shape_cast %46 : vector<1x8x8xf32> to vector<8x8xf32>
    %cst_55 = arith.constant dense<0.000000e+00> : vector<128x8xf32>
    %48 = tpu.matmul %45, %47, %cst_55 {dimension_numbers = #tpu.dot_dimension_numbers<[1], [0], [0], [1], [0, 0, 1, 1], [], []>} : vector<128x8xf32>, vector<8x8xf32>, vector<128x8xf32> -> vector<128x8xf32>
    %49 = arith.addf %42, %48 : vector<128x8xf32>
    %c0_56 = arith.constant 0 : index
    %c0_57 = arith.constant 0 : index
    %c2_58 = arith.constant 2 : index
    %c1_59 = arith.constant 1 : index
    %c0_60 = arith.constant 0 : index
    %50 = vector.load %arg1[%c0_56, %c0_57, %c2_58, %c1_59, %c0_60] : memref<2x1x10x10x8xf32, #tpu.memory_space<vmem>>, vector<2x1x8x8x8xf32>
    %51 = vector.shape_cast %50 : vector<2x1x8x8x8xf32> to vector<2x8x8x8xf32>
    %52 = vector.shape_cast %51 : vector<2x8x8x8xf32> to vector<128x8xf32>
    %c7 = arith.constant 7 : index
    %c0_61 = arith.constant 0 : index
    %c0_62 = arith.constant 0 : index
    %53 = vector.load %arg2[%c7, %c0_61, %c0_62] : memref<9x8x8xf32, #tpu.memory_space<vmem>>, vector<1x8x8xf32>
    %54 = vector.shape_cast %53 : vector<1x8x8xf32> to vector<8x8xf32>
    %cst_63 = arith.constant dense<0.000000e+00> : vector<128x8xf32>
    %55 = tpu.matmul %52, %54, %cst_63 {dimension_numbers = #tpu.dot_dimension_numbers<[1], [0], [0], [1], [0, 0, 1, 1], [], []>} : vector<128x8xf32>, vector<8x8xf32>, vector<128x8xf32> -> vector<128x8xf32>
    %56 = arith.addf %49, %55 : vector<128x8xf32>
    %c0_64 = arith.constant 0 : index
    %c0_65 = arith.constant 0 : index
    %c2_66 = arith.constant 2 : index
    %c2_67 = arith.constant 2 : index
    %c0_68 = arith.constant 0 : index
    %57 = vector.load %arg1[%c0_64, %c0_65, %c2_66, %c2_67, %c0_68] : memref<2x1x10x10x8xf32, #tpu.memory_space<vmem>>, vector<2x1x8x8x8xf32>
    %58 = vector.shape_cast %57 : vector<2x1x8x8x8xf32> to vector<2x8x8x8xf32>
    %59 = vector.shape_cast %58 : vector<2x8x8x8xf32> to vector<128x8xf32>
    %c8 = arith.constant 8 : index
    %c0_69 = arith.constant 0 : index
    %c0_70 = arith.constant 0 : index
    %60 = vector.load %arg2[%c8, %c0_69, %c0_70] : memref<9x8x8xf32, #tpu.memory_space<vmem>>, vector<1x8x8xf32>
    %61 = vector.shape_cast %60 : vector<1x8x8xf32> to vector<8x8xf32>
    %cst_71 = arith.constant dense<0.000000e+00> : vector<128x8xf32>
    %62 = tpu.matmul %59, %61, %cst_71 {dimension_numbers = #tpu.dot_dimension_numbers<[1], [0], [0], [1], [0, 0, 1, 1], [], []>} : vector<128x8xf32>, vector<8x8xf32>, vector<128x8xf32> -> vector<128x8xf32>
    %63 = arith.addf %56, %62 : vector<128x8xf32>
    %64 = vector.shape_cast %63 : vector<128x8xf32> to vector<2x64x8xf32>
    %c0_72 = arith.constant 0 : index
    %c0_73 = arith.constant 0 : index
    %c0_74 = arith.constant 0 : index
    %65 = vector.load %arg3[%c0_72, %c0_73, %c0_74] : memref<2x64x8xf32, #tpu.memory_space<vmem>>, vector<2x64x8xf32>
    tpu.vector_store %arg3[%c0_72, %c0_73, %c0_74], %64 {strides = array<i32>} : memref<2x64x8xf32, #tpu.memory_space<vmem>>, vector<2x64x8xf32>,
    %cst_75 = arith.constant dense<0.000000e+00> : vector<8xf32>
    %66 = vector.multi_reduction <add>, %63, %cst_75 [0] : vector<128x8xf32> to vector<8xf32>
    %67 = vector.shape_cast %66 : vector<8xf32> to vector<1x1x8xf32>
    %c0_76 = arith.constant 0 : index
    %c0_77 = arith.constant 0 : index
    %c0_78 = arith.constant 0 : index
    %68 = vector.load %arg4[%c0_76, %c0_77, %c0_78] : memref<1x1x8xf32, #tpu.memory_space<vmem>>, vector<1x1x8xf32>
    tpu.vector_store %arg4[%c0_76, %c0_77, %c0_78], %67 {strides = array<i32>} : memref<1x1x8xf32, #tpu.memory_space<vmem>>, vector<1x1x8xf32>,
    %69 = arith.mulf %63, %63 : vector<128x8xf32>
    %cst_79 = arith.constant dense<0.000000e+00> : vector<8xf32>
    %70 = vector.multi_reduction <add>, %69, %cst_79 [0] : vector<128x8xf32> to vector<8xf32>
    %71 = vector.shape_cast %70 : vector<8xf32> to vector<1x1x8xf32>
    %c0_80 = arith.constant 0 : index
    %c0_81 = arith.constant 0 : index
    %c0_82 = arith.constant 0 : index
    %72 = vector.load %arg5[%c0_80, %c0_81, %c0_82] : memref<1x1x8xf32, #tpu.memory_space<vmem>>, vector<1x1x8xf32>
    tpu.vector_store %arg5[%c0_80, %c0_81, %c0_82], %71 {strides = array<i32>} : memref<1x1x8xf32, #tpu.memory_space<vmem>>, vector<1x1x8xf32>,
    return
  }
  func.func @transform_0(%arg0: i32) -> (i32, i32, i32, i32, i32) {
    %c0_i32 = arith.constant 0 : i32
    %c0_i32_0 = arith.constant 0 : i32
    %c0_i32_1 = arith.constant 0 : i32
    %c0_i32_2 = arith.constant 0 : i32
    %c0_i32_3 = arith.constant 0 : i32
    return %arg0, %c0_i32, %c0_i32_0, %c0_i32_1, %c0_i32_2 : i32, i32, i32, i32, i32
  }
  func.func @transform_1(%arg0: i32) -> (i32, i32, i32) {
    %c0_i32 = arith.constant 0 : i32
    %c0_i32_0 = arith.constant 0 : i32
    %c0_i32_1 = arith.constant 0 : i32
    %c0_i32_2 = arith.constant 0 : i32
    return %c0_i32, %c0_i32_0, %c0_i32_1 : i32, i32, i32
  }
  func.func @transform_2(%arg0: i32) -> (i32, i32, i32) {
    %c0_i32 = arith.constant 0 : i32
    %c0_i32_0 = arith.constant 0 : i32
    %c0_i32_1 = arith.constant 0 : i32
    return %arg0, %c0_i32, %c0_i32_0 : i32, i32, i32
  }
  func.func @transform_3(%arg0: i32) -> (i32, i32, i32) {
    %c0_i32 = arith.constant 0 : i32
    %c0_i32_0 = arith.constant 0 : i32
    %c0_i32_1 = arith.constant 0 : i32
    return %arg0, %c0_i32, %c0_i32_0 : i32, i32, i32
  }
  func.func @transform_4(%arg0: i32) -> (i32, i32, i32) {
    %c0_i32 = arith.constant 0 : i32
    %c0_i32_0 = arith.constant 0 : i32
    %c0_i32_1 = arith.constant 0 : i32
    return %arg0, %c0_i32, %c0_i32_0 : i32, i32, i32
  }
}

</mosaic_0001>

<llo_original>
// kernel: plain_block.2
$region0: #{plain_block.2}
  #allocation0 [shape = 'u32[]', space=smem, size = 0x4, offset = 0x4, fixed_abs, tag = 'smem constant byte address 0x4 - core index']
  #allocation1 [shape = 'u32[144,128]{1,0:T(1,128)}', space=vmem, size = 0x12000, scoped, tag = 'internal scratch']
  %s0 = inlined_call_operand.vmem [shape: f32[2,4,9,9,4], index: 0, kind: input, shape index: {}]
  %s1 = inlined_call_operand.vmem [shape: f32[9,4,8], index: 1, kind: input, shape index: {}]
  %s2 = inlined_call_operand.vmem [shape: f32[2,64,8], index: 2, kind: output, shape index: {0}]
  %s3 = inlined_call_operand.vmem [shape: f32[1,1,8], index: 3, kind: output, shape index: {1}]
  %s4 = inlined_call_operand.vmem [shape: f32[1,1,8], index: 4, kind: output, shape index: {2}]
  %5 = xla_tuple %s2, %s3, %s4
  %s6 = sld [smem:[#allocation0]]
  $region34: #{plain_block.2} parent=0
    _
  %s8 = ssub.s32 1, %s6
  %s9 = scalar_select 0, %s8, %s6
  // Predicated region
  $region2: #{plain_block.2} parent=0 // pred_check
    _
  $region3: #{plain_block.2} parent=0 // pred_check_branch
    %11 = sbr.rel (0) target = $region5
  $region4: #{plain_block.2} parent=0 // pred_region
    _
  $region5: #{plain_block.2} parent=0 // pred_fallthru
    _
  // Predicated region
  $region6: #{plain_block.2} parent=0 // pred_check
    _
  $region7: #{plain_block.2} parent=0 // pred_check_branch
    %13 = sbr.rel (0) target = $region9
  $region8: #{plain_block.2} parent=0 // pred_region
    _
  $region9: #{plain_block.2} parent=0 // pred_fallthru
    _
  %v14 = vld [vmem:[%s0] sm:$0xff]
  %v15 = vld [vmem:[%s0 + $0x10] sm:$0xff]
  %v16 = vld [vmem:[%s0 + $0x20] sm:$0xff]
  %v17 = vld [vmem:[%s0 + $0x30] sm:$0xff]
  %v18 = vld [vmem:[%s0 + $0x40] sm:$0xff]
  %v19 = vld [vmem:[%s0 + $0x50] sm:$0xff]
  %v20 = vld [vmem:[%s0 + $0x60] sm:$0xff]
  %v21 = vld [vmem:[%s0 + $0x70] sm:$0xff]
  %v22 = vld [vmem:[%s0 + $0x240] sm:$0xff]
  %v23 = vld [vmem:[%s0 + $0x250] sm:$0xff]
  %v24 = vld [vmem:[%s0 + $0x260] sm:$0xff]
  %v25 = vld [vmem:[%s0 + $0x270] sm:$0xff]
  %v26 = vld [vmem:[%s0 + $0x280] sm:$0xff]
  %v27 = vld [vmem:[%s0 + $0x290] sm:$0xff]
  %v28 = vld [vmem:[%s0 + $0x2a0] sm:$0xff]
  %v29 = vld [vmem:[%s0 + $0x2b0] sm:$0xff]
  %v30 = vld [vmem:[%s1] sm:$0xf]
  %s31 = scalar_lea.vmem %s0, 144
  %v32 = vld [vmem:[%s31] sm:$0xff]
  %v33 = vld [vmem:[%s31 + $0x10] sm:$0xff]
  %v34 = vld [vmem:[%s31 + $0x20] sm:$0xff]
  %v35 = vld [vmem:[%s31 + $0x30] sm:$0xff]
  %v36 = vld [vmem:[%s31 + $0x40] sm:$0xff]
  %v37 = vld [vmem:[%s31 + $0x50] sm:$0xff]
  %v38 = vld [vmem:[%s31 + $0x60] sm:$0xff]
  %v39 = vld [vmem:[%s31 + $0x70] sm:$0xff]
  %v40 = vld [vmem:[%s31 + $0x240] sm:$0xff]
  %v41 = vld [vmem:[%s31 + $0x250] sm:$0xff]
  %v42 = vld [vmem:[%s31 + $0x260] sm:$0xff]
  %v43 = vld [vmem:[%s31 + $0x270] sm:$0xff]
  %v44 = vld [vmem:[%s31 + $0x280] sm:$0xff]
  %v45 = vld [vmem:[%s31 + $0x290] sm:$0xff]
  %v46 = vld [vmem:[%s31 + $0x2a0] sm:$0xff]
  %v47 = vld [vmem:[%s31 + $0x2b0] sm:$0xff]
  %s48 = scalar_lea.vmem %s1, 4
  %v49 = vld [vmem:[%s48] sm:$0xf]
  %vm50 = vcmask 31744
  %v52 = vsel %vm50, %v32, 0
  %v55 = vsel %vm50, %v33, 0
  %v58 = vsel %vm50, %v34, 0
  %v61 = vsel %vm50, %v35, 0
  %v64 = vsel %vm50, %v36, 0
  %v67 = vsel %vm50, %v37, 0
  %v70 = vsel %vm50, %v38, 0
  %v73 = vsel %vm50, %v39, 0
  %v76 = vsel %vm50, %v40, 0
  %v79 = vsel %vm50, %v41, 0
  %v82 = vsel %vm50, %v42, 0
  %v85 = vsel %vm50, %v43, 0
  %v88 = vsel %vm50, %v44, 0
  %v91 = vsel %vm50, %v45, 0
  %v94 = vsel %vm50, %v46, 0
  %v97 = vsel %vm50, %v47, 0
  %vm99 = vcmask 1043456
  %v101 = vsel %vm99, %v49, 0
  %103 = vmatprep.subr.mxu0 0.0
  %104 = vmatpush1.msra.mxu0 %v101
  %105 = vmatprep.subr.mxu0 0.0
  %106 = vmatpush1.msra.mxu0 0.0
  %107 = vmatprep.subr.mxu0 0.0
  %108 = vmatpush1.msra.mxu0 0.0
  %109 = vmatprep.subr.mxu0 0.0
  %110 = vmatpush1.msra.mxu0 0.0
  %111 = vmatprep.subr.mxu0 0.0
  %112 = vmatpush1.msra.mxu0 0.0
  %113 = vmatprep.subr.mxu0 0.0
  %114 = vmatpush1.msra.mxu0 0.0
  %115 = vmatprep.subr.mxu0 0.0
  %116 = vmatpush1.msra.mxu0 0.0
  %117 = vmatprep.subr.mxu0 0.0
  %118 = vmatpush1.msra.mxu0 0.0
  %119 = vmatprep.subr.mxu0 0.0
  %120 = vmatpush1.msra.mxu0 0.0
  %121 = vmatprep.subr.mxu0 0.0
  %122 = vmatpush1.msra.mxu0 0.0
  %123 = vmatprep.subr.mxu0 0.0
  %124 = vmatpush1.msra.mxu0 0.0
  %125 = vmatprep.subr.mxu0 0.0
  %126 = vmatpush1.msra.mxu0 0.0
  %127 = vmatprep.subr.mxu0 0.0
  %128 = vmatpush1.msra.mxu0 0.0
  %129 = vmatprep.subr.mxu0 0.0
  %130 = vmatpush1.msra.mxu0 0.0
  %131 = vmatprep.subr.mxu0 0.0
  %132 = vmatpush1.msra.mxu0 0.0
  %133 = vmatprep.subr.mxu0 0.0
  %134 = vmatpush1.msra.mxu0 0.0
  %135 = vmatprep.subr.mxu0 0.0
  %136 = vmatpush1.msra.mxu0 0.0
  %137 = vmatprep.subr.mxu0 0.0
  %138 = vmatpush1.msra.mxu0 0.0
  %139 = vmatprep.subr.mxu0 0.0
  %140 = vmatpush1.msra.mxu0 0.0
  %141 = vmatprep.subr.mxu0 0.0
  %142 = vmatpush1.msra.mxu0 0.0
  %143 = vmatprep.subr.mxu0 0.0
  %144 = vmatpush1.msra.mxu0 0.0
  %145 = vmatprep.subr.mxu0 0.0
  %146 = vmatpush1.msra.mxu0 0.0
  %147 = vmatprep.subr.mxu0 0.0
  %148 = vmatpush1.msra.mxu0 0.0
  %149 = vmatprep.subr.mxu0 0.0
  %150 = vmatpush1.msra.mxu0 0.0
  %151 = vmatprep.subr.mxu0 0.0
  %152 = vmatpush1.msra.mxu0 0.0
  %153 = vmatprep.subr.mxu0 0.0
  %154 = vmatpush1.msra.mxu0 0.0
  %155 = vmatprep.subr.mxu0 0.0
  %156 = vmatpush1.msra.mxu0 0.0
  %157 = vmatprep.subr.mxu0 0.0
  %158 = vmatpush1.msra.mxu0 0.0
  %159 = vmatprep.subr.mxu0 0.0
  %160 = vmatpush1.msra.mxu0 0.0
  %161 = vmatprep.subr.mxu0 0.0
  %162 = vmatpush1.msra.mxu0 0.0
  %163 = vmatprep.subr.mxu0 0.0
  %164 = vmatpush1.msra.mxu0 0.0
  %165 = vmatprep.subr.mxu0 0.0
  %166 = vmatpush1.msra.mxu0 0.0
  %167 = vmatprep.mubr.f32.mxu0 0.0
  %168 = vmatmul.mubr.f32.gmra.mrb[0].mxu0 %v52
  %v169 = vpop.f32.mrb[0].mxu0
  %v170 = vadd.f32 0.0, %v169
  %v171 = vpop.f32.mrb[0].mxu0
  %172 = vmatprep.mubr.f32.mxu0 0.0
  %173 = vmatmul.mubr.f32.gmra.mrb[0].mxu0 %v55
  %v174 = vpop.f32.mrb[0].mxu0
  %v175 = vadd.f32 0.0, %v174
  %v176 = vpop.f32.mrb[0].mxu0
  %177 = vmatprep.mubr.f32.mxu0 0.0
  %178 = vmatmul.mubr.f32.gmra.mrb[0].mxu0 %v58
  %v179 = vpop.f32.mrb[0].mxu0
  %v180 = vadd.f32 0.0, %v179
  %v181 = vpop.f32.mrb[0].mxu0
  %182 = vmatprep.mubr.f32.mxu0 0.0
  %183 = vmatmul.mubr.f32.gmra.mrb[0].mxu0 %v61
  %v184 = vpop.f32.mrb[0].mxu0
  %v185 = vadd.f32 0.0, %v184
  %v186 = vpop.f32.mrb[0].mxu0
  %187 = vmatprep.mubr.f32.mxu0 0.0
  %188 = vmatmul.mubr.f32.gmra.mrb[0].mxu0 %v64
  %v189 = vpop.f32.mrb[0].mxu0
  %v190 = vadd.f32 0.0, %v189
  %v191 = vpop.f32.mrb[0].mxu0
  %192 = vmatprep.mubr.f32.mxu0 0.0
  %193 = vmatmul.mubr.f32.gmra.mrb[0].mxu0 %v67
  %v194 = vpop.f32.mrb[0].mxu0
  %v195 = vadd.f32 0.0, %v194
  %v196 = vpop.f32.mrb[0].mxu0
  %197 = vmatprep.mubr.f32.mxu0 0.0
  %198 = vmatmul.mubr.f32.gmra.mrb[0].mxu0 %v70
  %v199 = vpop.f32.mrb[0].mxu0
  %v200 = vadd.f32 0.0, %v199
  %v201 = vpop.f32.mrb[0].mxu0
  %202 = vmatprep.mubr.f32.mxu0 0.0
  %203 = vmatmul.mubr.f32.gmra.mrb[0].mxu0 %v73
  %v204 = vpop.f32.mrb[0].mxu0
  %v205 = vadd.f32 0.0, %v204
  %v206 = vpop.f32.mrb[0].mxu0
  %207 = vmatprep.mubr.f32.mxu0 0.0
  %208 = vmatmul.mubr.f32.gmra.mrb[0].mxu0 %v76
  %v209 = vpop.f32.mrb[0].mxu0
  %v210 = vadd.f32 0.0, %v209
  %v211 = vpop.f32.mrb[0].mxu0
  %212 = vmatprep.mubr.f32.mxu0 0.0
  %213 = vmatmul.mubr.f32.gmra.mrb[0].mxu0 %v79
  %v214 = vpop.f32.mrb[0].mxu0
  %v215 = vadd.f32 0.0, %v214
  %v216 = vpop.f32.mrb[0].mxu0
  %217 = vmatprep.mubr.f32.mxu0 0.0
  %218 = vmatmul.mubr.f32.gmra.mrb[0].mxu0 %v82
  %v219 = vpop.f32.mrb[0].mxu0
  %v220 = vadd.f32 0.0, %v219
  %v221 = vpop.f32.mrb[0].mxu0
  %222 = vmatprep.mubr.f32.mxu0 0.0
  %223 = vmatmul.mubr.f32.gmra.mrb[0].mxu0 %v85
  %v224 = vpop.f32.mrb[0].mxu0
  %v225 = vadd.f32 0.0, %v224
  %v226 = vpop.f32.mrb[0].mxu0
  %227 = vmatprep.mubr.f32.mxu0 0.0
  %228 = vmatmul.mubr.f32.gmra.mrb[0].mxu0 %v88
  %v229 = vpop.f32.mrb[0].mxu0
  %v230 = vadd.f32 0.0, %v229
  %v231 = vpop.f32.mrb[0].mxu0
  %232 = vmatprep.mubr.f32.mxu0 0.0
  %233 = vmatmul.mubr.f32.gmra.mrb[0].mxu0 %v91
  %v234 = vpop.f32.mrb[0].mxu0
  %v235 = vadd.f32 0.0, %v234
  %v236 = vpop.f32.mrb[0].mxu0
  %237 = vmatprep.mubr.f32.mxu0 0.0
  %238 = vmatmul.mubr.f32.gmra.mrb[0].mxu0 %v94
  %v239 = vpop.f32.mrb[0].mxu0
  %v240 = vadd.f32 0.0, %v239
  %v241 = vpop.f32.mrb[0].mxu0
  %242 = vmatprep.mubr.f32.mxu0 0.0
  %243 = vmatmul.mubr.f32.gmra.mrb[0].mxu0 %v97
  %v244 = vpop.f32.mrb[0].mxu0
  %v245 = vadd.f32 0.0, %v244
  %v246 = vpop.f32.mrb[0].mxu0
  %247 = vdwg.mxu0
  %v249 = vsel %vm50, %v14, 0
  %v252 = vsel %vm50, %v15, 0
  %v255 = vsel %vm50, %v16, 0
  %v258 = vsel %vm50, %v17, 0
  %v261 = vsel %vm50, %v18, 0
  %v264 = vsel %vm50, %v19, 0
  %v267 = vsel %vm50, %v20, 0
  %v270 = vsel %vm50, %v21, 0
  %v273 = vsel %vm50, %v22, 0
  %v276 = vsel %vm50, %v23, 0
  %v279 = vsel %vm50, %v24, 0
  %v282 = vsel %vm50, %v25, 0
  %v285 = vsel %vm50, %v26, 0
  %v288 = vsel %vm50, %v27, 0
  %v291 = vsel %vm50, %v28, 0
  %v294 = vsel %vm50, %v29, 0
  %v297 = vsel %vm99, %v30, 0
  %299 = vmatprep.subr.mxu0 0.0
  %300 = vmatpush1.msra.mxu0 %v297
  %301 = vmatprep.subr.mxu0 0.0
  %302 = vmatpush1.msra.mxu0 0.0
  %303 = vmatprep.subr.mxu0 0.0
  %304 = vmatpush1.msra.mxu0 0.0
  %305 = vmatprep.subr.mxu0 0.0
  %306 = vmatpush1.msra.mxu0 0.0
  %307 = vmatprep.subr.mxu0 0.0
  %308 = vmatpush1.msra.mxu0 0.0
  %309 = vmatprep.subr.mxu0 0.0
  %310 = vmatpush1.msra.mxu0 0.0
  %311 = vmatprep.subr.mxu0 0.0
  %312 = vmatpush1.msra.mxu0 0.0
  %313 = vmatprep.subr.mxu0 0.0
  %314 = vmatpush1.msra.mxu0 0.0
  %315 = vmatprep.subr.mxu0 0.0
  %316 = vmatpush1.msra.mxu0 0.0
  %317 = vmatprep.subr.mxu0 0.0
  %318 = vmatpush1.msra.mxu0 0.0
  %319 = vmatprep.subr.mxu0 0.0
  %320 = vmatpush1.msra.mxu0 0.0
  %321 = vmatprep.subr.mxu0 0.0
  %322 = vmatpush1.msra.mxu0 0.0
  %323 = vmatprep.subr.mxu0 0.0
  %324 = vmatpush1.msra.mxu0 0.0
  %325 = vmatprep.subr.mxu0 0.0
  %326 = vmatpush1.msra.mxu0 0.0
  %327 = vmatprep.subr.mxu0 0.0
  %328 = vmatpush1.msra.mxu0 0.0
  %329 = vmatprep.subr.mxu0 0.0
  %330 = vmatpush1.msra.mxu0 0.0
  %331 = vmatprep.subr.mxu0 0.0
  %332 = vmatpush1.msra.mxu0 0.0
  %333 = vmatprep.subr.mxu0 0.0
  %334 = vmatpush1.msra.mxu0 0.0
  %335 = vmatprep.subr.mxu0 0.0
  %336 = vmatpush1.msra.mxu0 0.0
  %337 = vmatprep.subr.mxu0 0.0
  %338 = vmatpush1.msra.mxu0 0.0
  %339 = vmatprep.subr.mxu0 0.0
  %340 = vmatpush1.msra.mxu0 0.0
  %341 = vmatprep.subr.mxu0 0.0
  %342 = vmatpush1.msra.mxu0 0.0
  %343 = vmatprep.subr.mxu0 0.0
  %344 = vmatpush1.msra.mxu0 0.0
  %345 = vmatprep.subr.mxu0 0.0
  %346 = vmatpush1.msra.mxu0 0.0
  %347 = vmatprep.subr.mxu0 0.0
  %348 = vmatpush1.msra.mxu0 0.0
  %349 = vmatprep.subr.mxu0 0.0
  %350 = vmatpush1.msra.mxu0 0.0
  %351 = vmatprep.subr.mxu0 0.0
  %352 = vmatpush1.msra.mxu0 0.0
  %353 = vmatprep.subr.mxu0 0.0
  %354 = vmatpush1.msra.mxu0 0.0
  %355 = vmatprep.subr.mxu0 0.0
  %356 = vmatpush1.msra.mxu0 0.0
  %357 = vmatprep.subr.mxu0 0.0
  %358 = vmatpush1.msra.mxu0 0.0
  %359 = vmatprep.subr.mxu0 0.0
  %360 = vmatpush1.msra.mxu0 0.0
  %361 = vmatprep.subr.mxu0 0.0
  %362 = vmatpush1.msra.mxu0 0.0
  %363 = vmatprep.mubr.f32.mxu0 0.0
  %364 = vmatmul.mubr.f32.gmra.mrb[0].mxu0 %v249
  %v365 = vpop.f32.mrb[0].mxu0
  %v366 = vadd.f32 %v170, %v365
  %v367 = vpop.f32.mrb[0].mxu0
  %368 = vmatprep.mubr.f32.mxu0 0.0
  %369 = vmatmul.mubr.f32.gmra.mrb[0].mxu0 %v252
  %v370 = vpop.f32.mrb[0].mxu0
  %v371 = vadd.f32 %v175, %v370
  %v372 = vpop.f32.mrb[0].mxu0
  %373 = vmatprep.mubr.f32.mxu0 0.0
  %374 = vmatmul.mubr.f32.gmra.mrb[0].mxu0 %v255
  %v375 = vpop.f32.mrb[0].mxu0
  %v376 = vadd.f32 %v180, %v375
  %v377 = vpop.f32.mrb[0].mxu0
  %378 = vmatprep.mubr.f32.mxu0 0.0
  %379 = vmatmul.mubr.f32.gmra.mrb[0].mxu0 %v258
  %v380 = vpop.f32.mrb[0].mxu0
  %v381 = vadd.f32 %v185, %v380
  %v382 = vpop.f32.mrb[0].mxu0
  %383 = vmatprep.mubr.f32.mxu0 0.0
  %384 = vmatmul.mubr.f32.gmra.mrb[0].mxu0 %v261
  %v385 = vpop.f32.mrb[0].mxu0
  %v386 = vadd.f32 %v190, %v385
  %v387 = vpop.f32.mrb[0].mxu0
  %388 = vmatprep.mubr.f32.mxu0 0.0
  %389 = vmatmul.mubr.f32.gmra.mrb[0].mxu0 %v264
  %v390 = vpop.f32.mrb[0].mxu0
  %v391 = vadd.f32 %v195, %v390
  %v392 = vpop.f32.mrb[0].mxu0
  %393 = vmatprep.mubr.f32.mxu0 0.0
  %394 = vmatmul.mubr.f32.gmra.mrb[0].mxu0 %v267
  %v395 = vpop.f32.mrb[0].mxu0
  %v396 = vadd.f32 %v200, %v395
  %v397 = vpop.f32.mrb[0].mxu0
  %398 = vmatprep.mubr.f32.mxu0 0.0
  %399 = vmatmul.mubr.f32.gmra.mrb[0].mxu0 %v270
  %v400 = vpop.f32.mrb[0].mxu0
  %v401 = vadd.f32 %v205, %v400
  %v402 = vpop.f32.mrb[0].mxu0
  %403 = vmatprep.mubr.f32.mxu0 0.0
  %404 = vmatmul.mubr.f32.gmra.mrb[0].mxu0 %v273
  %v405 = vpop.f32.mrb[0].mxu0
  %v406 = vadd.f32 %v210, %v405
  %v407 = vpop.f32.mrb[0].mxu0
  %408 = vmatprep.mubr.f32.mxu0 0.0
  %409 = vmatmul.mubr.f32.gmra.mrb[0].mxu0 %v276
  %v410 = vpop.f32.mrb[0].mxu0
  %v411 = vadd.f32 %v215, %v410
  %v412 = vpop.f32.mrb[0].mxu0
  %413 = vmatprep.mubr.f32.mxu0 0.0
  %414 = vmatmul.mubr.f32.gmra.mrb[0].mxu0 %v279
  %v415 = vpop.f32.mrb[0].mxu0
  %v416 = vadd.f32 %v220, %v415
  %v417 = vpop.f32.mrb[0].mxu0
  %418 = vmatprep.mubr.f32.mxu0 0.0
  %419 = vmatmul.mubr.f32.gmra.mrb[0].mxu0 %v282
  %v420 = vpop.f32.mrb[0].mxu0
  %v421 = vadd.f32 %v225, %v420
  %v422 = vpop.f32.mrb[0].mxu0
  %423 = vmatprep.mubr.f32.mxu0 0.0
  %424 = vmatmul.mubr.f32.gmra.mrb[0].mxu0 %v285
  %v425 = vpop.f32.mrb[0].mxu0
  %v426 = vadd.f32 %v230, %v425
  %v427 = vpop.f32.mrb[0].mxu0
  %428 = vmatprep.mubr.f32.mxu0 0.0
  %429 = vmatmul.mubr.f32.gmra.mrb[0].mxu0 %v288
  %v430 = vpop.f32.mrb[0].mxu0
  %v431 = vadd.f32 %v235, %v430
  %v432 = vpop.f32.mrb[0].mxu0
  %433 = vmatprep.mubr.f32.mxu0 0.0
  %434 = vmatmul.mubr.f32.gmra.mrb[0].mxu0 %v291
  %v435 = vpop.f32.mrb[0].mxu0
  %v436 = vadd.f32 %v240, %v435
  %v437 = vpop.f32.mrb[0].mxu0
  %438 = vmatprep.mubr.f32.mxu0 0.0
  %439 = vmatmul.mubr.f32.gmra.mrb[0].mxu0 %v294
  %v440 = vpop.f32.mrb[0].mxu0
  %v441 = vadd.f32 %v245, %v440
  %v442 = vpop.f32.mrb[0].mxu0
  %443 = vdwg.mxu0
  %v444 = vld [vmem:[%s0 + $0x1] sm:$0xff]
  %v445 = vld [vmem:[%s0 + $0x11] sm:$0xff]
  %v446 = vld [vmem:[%s0 + $0x21] sm:$0xff]
  %v447 = vld [vmem:[%s0 + $0x31] sm:$0xff]
  %v448 = vld [vmem:[%s0 + $0x41] sm:$0xff]
  %v449 = vld [vmem:[%s0 + $0x51] sm:$0xff]
  %v450 = vld [vmem:[%s0 + $0x61] sm:$0xff]
  %v451 = vld [vmem:[%s0 + $0x71] sm:$0xff]
  %v452 = vld [vmem:[%s0 + $0x241] sm:$0xff]
  %v453 = vld [vmem:[%s0 + $0x251] sm:$0xff]
  %v454 = vld [vmem:[%s0 + $0x261] sm:$0xff]
  %v455 = vld [vmem:[%s0 + $0x271] sm:$0xff]
  %v456 = vld [vmem:[%s0 + $0x281] sm:$0xff]
  %v457 = vld [vmem:[%s0 + $0x291] sm:$0xff]
  %v458 = vld [vmem:[%s0 + $0x2a1] sm:$0xff]
  %v459 = vld [vmem:[%s0 + $0x2b1] sm:$0xff]
  %s460 = scalar_lea.vmem %s1, 8
  %v461 = vld [vmem:[%s460] sm:$0xf]
  %v463 = vsel %vm50, %v444, 0
  %v466 = vsel %vm50, %v445, 0
  %v469 = vsel %vm50, %v446, 0
  %v472 = vsel %vm50, %v447, 0
  %v475 = vsel %vm50, %v448, 0
  %v478 = vsel %vm50, %v449, 0
  %v481 = vsel %vm50, %v450, 0
  %v484 = vsel %vm50, %v451, 0
  %v487 = vsel %vm50, %v452, 0
  %v490 = vsel %vm50, %v453, 0
  %v493 = vsel %vm50, %v454, 0
  %v496 = vsel %vm50, %v455, 0
  %v499 = vsel %vm50, %v456, 0
  %v502 = vsel %vm50, %v457, 0
  %v505 = vsel %vm50, %v458, 0
  %v508 = vsel %vm50, %v459, 0
  %v511 = vsel %vm99, %v461, 0
  %513 = vmatprep.subr.mxu0 0.0
  %514 = vmatpush1.msra.mxu0 %v511
  %515 = vmatprep.subr.mxu0 0.0
  %516 = vmatpush1.msra.mxu0 0.0
  %517 = vmatprep.subr.mxu0 0.0
  %518 = vmatpush1.msra.mxu0 0.0
  %519 = vmatprep.subr.mxu0 0.0
  %520 = vmatpush1.msra.mxu0 0.0
  %521 = vmatprep.subr.mxu0 0.0
  %522 = vmatpush1.msra.mxu0 0.0
  %523 = vmatprep.subr.mxu0 0.0
  %524 = vmatpush1.msra.mxu0 0.0
  %525 = vmatprep.subr.mxu0 0.0
  %526 = vmatpush1.msra.mxu0 0.0
  %527 = vmatprep.subr.mxu0 0.0
  %528 = vmatpush1.msra.mxu0 0.0
  %529 = vmatprep.subr.mxu0 0.0
  %530 = vmatpush1.msra.mxu0 0.0
  %531 = vmatprep.subr.mxu0 0.0
  %532 = vmatpush1.msra.mxu0 0.0
  %533 = vmatprep.subr.mxu0 0.0
  %534 = vmatpush1.msra.mxu0 0.0
  %535 = vmatprep.subr.mxu0 0.0
  %536 = vmatpush1.msra.mxu0 0.0
  %537 = vmatprep.subr.mxu0 0.0
  %538 = vmatpush1.msra.mxu0 0.0
  %539 = vmatprep.subr.mxu0 0.0
  %540 = vmatpush1.msra.mxu0 0.0
  %541 = vmatprep.subr.mxu0 0.0
  %542 = vmatpush1.msra.mxu0 0.0
  %543 = vmatprep.subr.mxu0 0.0
  %544 = vmatpush1.msra.mxu0 0.0
  %545 = vmatprep.subr.mxu0 0.0
  %546 = vmatpush1.msra.mxu0 0.0
  %547 = vmatprep.subr.mxu0 0.0
  %548 = vmatpush1.msra.mxu0 0.0
  %549 = vmatprep.subr.mxu0 0.0
  %550 = vmatpush1.msra.mxu0 0.0
  %551 = vmatprep.subr.mxu0 0.0
  %552 = vmatpush1.msra.mxu0 0.0
  %553 = vmatprep.subr.mxu0 0.0
  %554 = vmatpush1.msra.mxu0 0.0
  %555 = vmatprep.subr.mxu0 0.0
  %556 = vmatpush1.msra.mxu0 0.0
  %557 = vmatprep.subr.mxu0 0.0
  %558 = vmatpush1.msra.mxu0 0.0
  %559 = vmatprep.subr.mxu0 0.0
  %560 = vmatpush1.msra.mxu0 0.0
  %561 = vmatprep.subr.mxu0 0.0
  %562 = vmatpush1.msra.mxu0 0.0
  %563 = vmatprep.subr.mxu0 0.0
  %564 = vmatpush1.msra.mxu0 0.0
  %565 = vmatprep.subr.mxu0 0.0
  %566 = vmatpush1.msra.mxu0 0.0
  %567 = vmatprep.subr.mxu0 0.0
  %568 = vmatpush1.msra.mxu0 0.0
  %569 = vmatprep.subr.mxu0 0.0
  %570 = vmatpush1.msra.mxu0 0.0
  %571 = vmatprep.subr.mxu0 0.0
  %572 = vmatpush1.msra.mxu0 0.0
  %573 = vmatprep.subr.mxu0 0.0
  %574 = vmatpush1.msra.mxu0 0.0
  %575 = vmatprep.subr.mxu0 0.0
  %576 = vmatpush1.msra.mxu0 0.0
  %577 = vmatprep.mubr.f32.mxu0 0.0
  %578 = vmatmul.mubr.f32.gmra.mrb[0].mxu0 %v463
  %v579 = vpop.f32.mrb[0].mxu0
  %v580 = vadd.f32 0.0, %v579
  %v581 = vpop.f32.mrb[0].mxu0
  %582 = vmatprep.mubr.f32.mxu0 0.0
  %583 = vmatmul.mubr.f32.gmra.mrb[0].mxu0 %v466
  %v584 = vpop.f32.mrb[0].mxu0
  %v585 = vadd.f32 0.0, %v584
  %v586 = vpop.f32.mrb[0].mxu0
  %587 = vmatprep.mubr.f32.mxu0 0.0
  %588 = vmatmul.mubr.f32.gmra.mrb[0].mxu0 %v469
  %v589 = vpop.f32.mrb[0].mxu0
  %v590 = vadd.f32 0.0, %v589
  %v591 = vpop.f32.mrb[0].mxu0
  %592 = vmatprep.mubr.f32.mxu0 0.0
  %593 = vmatmul.mubr.f32.gmra.mrb[0].mxu0 %v472
  %v594 = vpop.f32.mrb[0].mxu0
  %v595 = vadd.f32 0.0, %v594
  %v596 = vpop.f32.mrb[0].mxu0
  %597 = vmatprep.mubr.f32.mxu0 0.0
  %598 = vmatmul.mubr.f32.gmra.mrb[0].mxu0 %v475
  %v599 = vpop.f32.mrb[0].mxu0
  %v600 = vadd.f32 0.0, %v599
  %v601 = vpop.f32.mrb[0].mxu0
  %602 = vmatprep.mubr.f32.mxu0 0.0
  %603 = vmatmul.mubr.f32.gmra.mrb[0].mxu0 %v478
  %v604 = vpop.f32.mrb[0].mxu0
  %v605 = vadd.f32 0.0, %v604
  %v606 = vpop.f32.mrb[0].mxu0
  %607 = vmatprep.mubr.f32.mxu0 0.0
  %608 = vmatmul.mubr.f32.gmra.mrb[0].mxu0 %v481
  %v609 = vpop.f32.mrb[0].mxu0
  %v610 = vadd.f32 0.0, %v609
  %v611 = vpop.f32.mrb[0].mxu0
  %612 = vmatprep.mubr.f32.mxu0 0.0
  %613 = vmatmul.mubr.f32.gmra.mrb[0].mxu0 %v484
  %v614 = vpop.f32.mrb[0].mxu0
  %v615 = vadd.f32 0.0, %v614
  %v616 = vpop.f32.mrb[0].mxu0
  %617 = vmatprep.mubr.f32.mxu0 0.0
  %618 = vmatmul.mubr.f32.gmra.mrb[0].mxu0 %v487
  %v619 = vpop.f32.mrb[0].mxu0
  %v620 = vadd.f32 0.0, %v619
  %v621 = vpop.f32.mrb[0].mxu0
  %622 = vmatprep.mubr.f32.mxu0 0.0
  %623 = vmatmul.mubr.f32.gmra.mrb[0].mxu0 %v490
  %v624 = vpop.f32.mrb[0].mxu0
  %v625 = vadd.f32 0.0, %v624
  %v626 = vpop.f32.mrb[0].mxu0
  %627 = vmatprep.mubr.f32.mxu0 0.0
  %628 = vmatmul.mubr.f32.gmra.mrb[0].mxu0 %v493
  %v629 = vpop.f32.mrb[0].mxu0
  %v630 = vadd.f32 0.0, %v629
  %v631 = vpop.f32.mrb[0].mxu0
  %632 = vmatprep.mubr.f32.mxu0 0.0
  %633 = vmatmul.mubr.f32.gmra.mrb[0].mxu0 %v496
  %v634 = vpop.f32.mrb[0].mxu0
  %v635 = vadd.f32 0.0, %v634
  %v636 = vpop.f32.mrb[0].mxu0
  %637 = vmatprep.mubr.f32.mxu0 0.0
  %638 = vmatmul.mubr.f32.gmra.mrb[0].mxu0 %v499
  %v639 = vpop.f32.mrb[0].mxu0
  %v640 = vadd.f32 0.0, %v639
  %v641 = vpop.f32.mrb[0].mxu0
  %642 = vmatprep.mubr.f32.mxu0 0.0
  %643 = vmatmul.mubr.f32.gmra.mrb[0].mxu0 %v502
  %v644 = vpop.f32.mrb[0].mxu0
  %v645 = vadd.f32 0.0, %v644
  %v646 = vpop.f32.mrb[0].mxu0
  %647 = vmatprep.mubr.f32.mxu0 0.0
  %648 = vmatmul.mubr.f32.gmra.mrb[0].mxu0 %v505
  %v649 = vpop.f32.mrb[0].mxu0
  %v650 = vadd.f32 0.0, %v649
  %v651 = vpop.f32.mrb[0].mxu0
  %652 = vmatprep.mubr.f32.mxu0 0.0
  %653 = vmatmul.mubr.f32.gmra.mrb[0].mxu0 %v508
  %v654 = vpop.f32.mrb[0].mxu0
  %v655 = vadd.f32 0.0, %v654
  %v656 = vpop.f32.mrb[0].mxu0
  %657 = vdwg.mxu0
  %v658 = vadd.f32 %v366, %v580
  %v659 = vadd.f32 %v371, %v585
  %v660 = vadd.f32 %v376, %v590
  %v661 = vadd.f32 %v381, %v595
  %v662 = vadd.f32 %v386, %v600
  %v663 = vadd.f32 %v391, %v605
  %v664 = vadd.f32 %v396, %v610
  %v665 = vadd.f32 %v401, %v615
  %v666 = vadd.f32 %v406, %v620
  %v667 = vadd.f32 %v411, %v625
  %v668 = vadd.f32 %v416, %v630
  %v669 = vadd.f32 %v421, %v635
  %v670 = vadd.f32 %v426, %v640
  %v671 = vadd.f32 %v431, %v645
  %v672 = vadd.f32 %v436, %v650
  %v673 = vadd.f32 %v441, %v655
  %s674 = scalar_lea.vmem %s0, 288
  %v675 = vld [vmem:[%s674] sm:$0xff]
  %v676 = vld [vmem:[%s674 + $0x10] sm:$0xff]
  %v677 = vld [vmem:[%s674 + $0x20] sm:$0xff]
  %v678 = vld [vmem:[%s674 + $0x30] sm:$0xff]
  %v679 = vld [vmem:[%s674 + $0x40] sm:$0xff]
  %v680 = vld [vmem:[%s674 + $0x50] sm:$0xff]
  %v681 = vld [vmem:[%s674 + $0x60] sm:$0xff]
  %v682 = vld [vmem:[%s674 + $0x70] sm:$0xff]
  %v683 = vld [vmem:[%s674 + $0x240] sm:$0xff]
  %v684 = vld [vmem:[%s674 + $0x250] sm:$0xff]
  %v685 = vld [vmem:[%s674 + $0x260] sm:$0xff]
  %v686 = vld [vmem:[%s674 + $0x270] sm:$0xff]
  %v687 = vld [vmem:[%s674 + $0x280] sm:$0xff]
  %v688 = vld [vmem:[%s674 + $0x290] sm:$0xff]
  %v689 = vld [vmem:[%s674 + $0x2a0] sm:$0xff]
  %v690 = vld [vmem:[%s674 + $0x2b0] sm:$0xff]
  %s691 = scalar_lea.vmem %s1, 12
  %v692 = vld [vmem:[%s691] sm:$0xf]
  %v694 = vsel %vm50, %v675, 0
  %v697 = vsel %vm50, %v676, 0
  %v700 = vsel %vm50, %v677, 0
  %v703 = vsel %vm50, %v678, 0
  %v706 = vsel %vm50, %v679, 0
  %v709 = vsel %vm50, %v680, 0
  %v712 = vsel %vm50, %v681, 0
  %v715 = vsel %vm50, %v682, 0
  %v718 = vsel %vm50, %v683, 0
  %v721 = vsel %vm50, %v684, 0
  %v724 = vsel %vm50, %v685, 0
  %v727 = vsel %vm50, %v686, 0
  %v730 = vsel %vm50, %v687, 0
  %v733 = vsel %vm50, %v688, 0
  %v736 = vsel %vm50, %v689, 0
  %v739 = vsel %vm50, %v690, 0
  %v742 = vsel %vm99, %v692, 0
  %744 = vmatprep.subr.mxu0 0.0
  %745 = vmatpush1.msra.mxu0 %v742
  %746 = vmatprep.subr.mxu0 0.0
  %747 = vmatpush1.msra.mxu0 0.0
  %748 = vmatprep.subr.mxu0 0.0
  %749 = vmatpush1.msra.mxu0 0.0
  %750 = vmatprep.subr.mxu0 0.0
  %751 = vmatpush1.msra.mxu0 0.0
  %752 = vmatprep.subr.mxu0 0.0
  %753 = vmatpush1.msra.mxu0 0.0
  %754 = vmatprep.subr.mxu0 0.0
  %755 = vmatpush1.msra.mxu0 0.0
  %756 = vmatprep.subr.mxu0 0.0
  %757 = vmatpush1.msra.mxu0 0.0
  %758 = vmatprep.subr.mxu0 0.0
  %759 = vmatpush1.msra.mxu0 0.0
  %760 = vmatprep.subr.mxu0 0.0
  %761 = vmatpush1.msra.mxu0 0.0
  %762 = vmatprep.subr.mxu0 0.0
  %763 = vmatpush1.msra.mxu0 0.0
  %764 = vmatprep.subr.mxu0 0.0
  %765 = vmatpush1.msra.mxu0 0.0
  %766 = vmatprep.subr.mxu0 0.0
  %767 = vmatpush1.msra.mxu0 0.0
  %768 = vmatprep.subr.mxu0 0.0
  %769 = vmatpush1.msra.mxu0 0.0
  %770 = vmatprep.subr.mxu0 0.0
  %771 = vmatpush1.msra.mxu0 0.0
  %772 = vmatprep.subr.mxu0 0.0
  %773 = vmatpush1.msra.mxu0 0.0
  %774 = vmatprep.subr.mxu0 0.0
  %775 = vmatpush1.msra.mxu0 0.0
  %776 = vmatprep.subr.mxu0 0.0
  %777 = vmatpush1.msra.mxu0 0.0
  %778 = vmatprep.subr.mxu0 0.0
  %779 = vmatpush1.msra.mxu0 0.0
  %780 = vmatprep.subr.mxu0 0.0
  %781 = vmatpush1.msra.mxu0 0.0
  %782 = vmatprep.subr.mxu0 0.0
  %783 = vmatpush1.msra.mxu0 0.0
  %784 = vmatprep.subr.mxu0 0.0
  %785 = vmatpush1.msra.mxu0 0.0
  %786 = vmatprep.subr.mxu0 0.0
  %787 = vmatpush1.msra.mxu0 0.0
  %788 = vmatprep.subr.mxu0 0.0
  %789 = vmatpush1.msra.mxu0 0.0
  %790 = vmatprep.subr.mxu0 0.0
  %791 = vmatpush1.msra.mxu0 0.0
  %792 = vmatprep.subr.mxu0 0.0
  %793 = vmatpush1.msra.mxu0 0.0
  %794 = vmatprep.subr.mxu0 0.0
  %795 = vmatpush1.msra.mxu0 0.0
  %796 = vmatprep.subr.mxu0 0.0
  %797 = vmatpush1.msra.mxu0 0.0
  %798 = vmatprep.subr.mxu0 0.0
  %799 = vmatpush1.msra.mxu0 0.0
  %800 = vmatprep.subr.mxu0 0.0
  %801 = vmatpush1.msra.mxu0 0.0
  %802 = vmatprep.subr.mxu0 0.0
  %803 = vmatpush1.msra.mxu0 0.0
  %804 = vmatprep.subr.mxu0 0.0
  %805 = vmatpush1.msra.mxu0 0.0
  %806 = vmatprep.subr.mxu0 0.0
  %807 = vmatpush1.msra.mxu0 0.0
  %808 = vmatprep.mubr.f32.mxu0 0.0
  %809 = vmatmul.mubr.f32.gmra.mrb[0].mxu0 %v694
  %v810 = vpop.f32.mrb[0].mxu0
  %v811 = vadd.f32 0.0, %v810
  %v812 = vpop.f32.mrb[0].mxu0
  %813 = vmatprep.mubr.f32.mxu0 0.0
  %814 = vmatmul.mubr.f32.gmra.mrb[0].mxu0 %v697
  %v815 = vpop.f32.mrb[0].mxu0
  %v816 = vadd.f32 0.0, %v815
  %v817 = vpop.f32.mrb[0].mxu0
  %818 = vmatprep.mubr.f32.mxu0 0.0
  %819 = vmatmul.mubr.f32.gmra.mrb[0].mxu0 %v700
  %v820 = vpop.f32.mrb[0].mxu0
  %v821 = vadd.f32 0.0, %v820
  %v822 = vpop.f32.mrb[0].mxu0
  %823 = vmatprep.mubr.f32.mxu0 0.0
  %824 = vmatmul.mubr.f32.gmra.mrb[0].mxu0 %v703
  %v825 = vpop.f32.mrb[0].mxu0
  %v826 = vadd.f32 0.0, %v825
  %v827 = vpop.f32.mrb[0].mxu0
  %828 = vmatprep.mubr.f32.mxu0 0.0
  %829 = vmatmul.mubr.f32.gmra.mrb[0].mxu0 %v706
  %v830 = vpop.f32.mrb[0].mxu0
  %v831 = vadd.f32 0.0, %v830
  %v832 = vpop.f32.mrb[0].mxu0
  %833 = vmatprep.mubr.f32.mxu0 0.0
  %834 = vmatmul.mubr.f32.gmra.mrb[0].mxu0 %v709
  %v835 = vpop.f32.mrb[0].mxu0
  %v836 = vadd.f32 0.0, %v835
  %v837 = vpop.f32.mrb[0].mxu0
  %838 = vmatprep.mubr.f32.mxu0 0.0
  %839 = vmatmul.mubr.f32.gmra.mrb[0].mxu0 %v712
  %v840 = vpop.f32.mrb[0].mxu0
  %v841 = vadd.f32 0.0, %v840
  %v842 = vpop.f32.mrb[0].mxu0
  %843 = vmatprep.mubr.f32.mxu0 0.0
  %844 = vmatmul.mubr.f32.gmra.mrb[0].mxu0 %v715
  %v845 = vpop.f32.mrb[0].mxu0
  %v846 = vadd.f32 0.0, %v845
  %v847 = vpop.f32.mrb[0].mxu0
  %848 = vmatprep.mubr.f32.mxu0 0.0
  %849 = vmatmul.mubr.f32.gmra.mrb[0].mxu0 %v718
  %v850 = vpop.f32.mrb[0].mxu0
  %v851 = vadd.f32 0.0, %v850
  %v852 = vpop.f32.mrb[0].mxu0
  %853 = vmatprep.mubr.f32.mxu0 0.0
  %854 = vmatmul.mubr.f32.gmra.mrb[0].mxu0 %v721
  %v855 = vpop.f32.mrb[0].mxu0
  %v856 = vadd.f32 0.0, %v855
  %v857 = vpop.f32.mrb[0].mxu0
  %858 = vmatprep.mubr.f32.mxu0 0.0
  %859 = vmatmul.mubr.f32.gmra.mrb[0].mxu0 %v724
  %v860 = vpop.f32.mrb[0].mxu0
  %v861 = vadd.f32 0.0, %v860
  %v862 = vpop.f32.mrb[0].mxu0
  %863 = vmatprep.mubr.f32.mxu0 0.0
  %864 = vmatmul.mubr.f32.gmra.mrb[0].mxu0 %v727
  %v865 = vpop.f32.mrb[0].mxu0
  %v866 = vadd.f32 0.0, %v865
  %v867 = vpop.f32.mrb[0].mxu0
  %868 = vmatprep.mubr.f32.mxu0 0.0
  %869 = vmatmul.mubr.f32.gmra.mrb[0].mxu0 %v730
  %v870 = vpop.f32.mrb[0].mxu0
  %v871 = vadd.f32 0.0, %v870
  %v872 = vpop.f32.mrb[0].mxu0
  %873 = vmatprep.mubr.f32.mxu0 0.0
  %874 = vmatmul.mubr.f32.gmra.mrb[0].mxu0 %v733
  %v875 = vpop.f32.mrb[0].mxu0
  %v876 = vadd.f32 0.0, %v875
  %v877 = vpop.f32.mrb[0].mxu0
  %878 = vmatprep.mubr.f32.mxu0 0.0
  %879 = vmatmul.mubr.f32.gmra.mrb[0].mxu0 %v736
  %v880 = vpop.f32.mrb[0].mxu0
  %v881 = vadd.f32 0.0, %v880
  %v882 = vpop.f32.mrb[0].mxu0
  %883 = vmatprep.mubr.f32.mxu0 0.0
  %884 = vmatmul.mubr.f32.gmra.mrb[0].mxu0 %v739
  %v885 = vpop.f32.mrb[0].mxu0
  %v886 = vadd.f32 0.0, %v885
  %v887 = vpop.f32.mrb[0].mxu0
  %888 = vdwg.mxu0
  %v889 = vadd.f32 %v658, %v811
  %v890 = vadd.f32 %v659, %v816
  %v891 = vadd.f32 %v660, %v821
  %v892 = vadd.f32 %v661, %v826
  %v893 = vadd.f32 %v662, %v831
  %v894 = vadd.f32 %v663, %v836
  %v895 = vadd.f32 %v664, %v841
  %v896 = vadd.f32 %v665, %v846
  %v897 = vadd.f32 %v666, %v851
  %v898 = vadd.f32 %v667, %v856
  %v899 = vadd.f32 %v668, %v861
  %v900 = vadd.f32 %v669, %v866
  %v901 = vadd.f32 %v670, %v871
  %v902 = vadd.f32 %v671, %v876
  %v903 = vadd.f32 %v672, %v881
  %v904 = vadd.f32 %v673, %v886
  %s905 = scalar_lea.vmem %s0, 432
  %v906 = vld [vmem:[%s905] sm:$0xff]
  %v907 = vld [vmem:[%s905 + $0x10] sm:$0xff]
  %v908 = vld [vmem:[%s905 + $0x20] sm:$0xff]
  %v909 = vld [vmem:[%s905 + $0x30] sm:$0xff]
  %v910 = vld [vmem:[%s905 + $0x40] sm:$0xff]
  %v911 = vld [vmem:[%s905 + $0x50] sm:$0xff]
  %v912 = vld [vmem:[%s905 + $0x60] sm:$0xff]
  %v913 = vld [vmem:[%s905 + $0x70] sm:$0xff]
  %v914 = vld [vmem:[%s905 + $0x240] sm:$0xff]
  %v915 = vld [vmem:[%s905 + $0x250] sm:$0xff]
  %v916 = vld [vmem:[%s905 + $0x260] sm:$0xff]
  %v917 = vld [vmem:[%s905 + $0x270] sm:$0xff]
  %v918 = vld [vmem:[%s905 + $0x280] sm:$0xff]
  %v919 = vld [vmem:[%s905 + $0x290] sm:$0xff]
  %v920 = vld [vmem:[%s905 + $0x2a0] sm:$0xff]
  %v921 = vld [vmem:[%s905 + $0x2b0] sm:$0xff]
  %s922 = scalar_lea.vmem %s1, 16
  %v923 = vld [vmem:[%s922] sm:$0xf]
  %v925 = vsel %vm50, %v906, 0
  %v928 = vsel %vm50, %v907, 0
  %v931 = vsel %vm50, %v908, 0
  %v934 = vsel %vm50, %v909, 0
  %v937 = vsel %vm50, %v910, 0
  %v940 = vsel %vm50, %v911, 0
  %v943 = vsel %vm50, %v912, 0
  %v946 = vsel %vm50, %v913, 0
  %v949 = vsel %vm50, %v914, 0
  %v952 = vsel %vm50, %v915, 0
  %v955 = vsel %vm50, %v916, 0
  %v958 = vsel %vm50, %v917, 0
  %v961 = vsel %vm50, %v918, 0
  %v964 = vsel %vm50, %v919, 0
  %v967 = vsel %vm50, %v920, 0
  %v970 = vsel %vm50, %v921, 0
  %v973 = vsel %vm99, %v923, 0
  %975 = vmatprep.subr.mxu0 0.0
  %976 = vmatpush1.msra.mxu0 %v973
  %977 = vmatprep.subr.mxu0 0.0
  %978 = vmatpush1.msra.mxu0 0.0
  %979 = vmatprep.subr.mxu0 0.0
  %980 = vmatpush1.msra.mxu0 0.0
  %981 = vmatprep.subr.mxu0 0.0
  %982 = vmatpush1.msra.mxu0 0.0
  %983 = vmatprep.subr.mxu0 0.0
  %984 = vmatpush1.msra.mxu0 0.0
  %985 = vmatprep.subr.mxu0 0.0
  %986 = vmatpush1.msra.mxu0 0.0
  %987 = vmatprep.subr.mxu0 0.0
  %988 = vmatpush1.msra.mxu0 0.0
  %989 = vmatprep.subr.mxu0 0.0
  %990 = vmatpush1.msra.mxu0 0.0
  %991 = vmatprep.subr.mxu0 0.0
  %992 = vmatpush1.msra.mxu0 0.0
  %993 = vmatprep.subr.mxu0 0.0
  %994 = vmatpush1.msra.mxu0 0.0
  %995 = vmatprep.subr.mxu0 0.0
  %996 = vmatpush1.msra.mxu0 0.0
  %997 = vmatprep.subr.mxu0 0.0
  %998 = vmatpush1.msra.mxu0 0.0
  %999 = vmatprep.subr.mxu0 0.0
  %1000 = vmatpush1.msra.mxu0 0.0
  %1001 = vmatprep.subr.mxu0 0.0
  %1002 = vmatpush1.msra.mxu0 0.0
  %1003 = vmatprep.subr.mxu0 0.0
  %1004 = vmatpush1.msra.mxu0 0.0
  %1005 = vmatprep.subr.mxu0 0.0
  %1006 = vmatpush1.msra.mxu0 0.0
  %1007 = vmatprep.subr.mxu0 0.0
  %1008 = vmatpush1.msra.mxu0 0.0
  %1009 = vmatprep.subr.mxu0 0.0
  %1010 = vmatpush1.msra.mxu0 0.0
  %1011 = vmatprep.subr.mxu0 0.0
  %1012 = vmatpush1.msra.mxu0 0.0
  %1013 = vmatprep.subr.mxu0 0.0
  %1014 = vmatpush1.msra.mxu0 0.0
  %1015 = vmatprep.subr.mxu0 0.0
  %1016 = vmatpush1.msra.mxu0 0.0
  %1017 = vmatprep.subr.mxu0 0.0
  %1018 = vmatpush1.msra.mxu0 0.0
  %1019 = vmatprep.subr.mxu0 0.0
  %1020 = vmatpush1.msra.mxu0 0.0
  %1021 = vmatprep.subr.mxu0 0.0
  %1022 = vmatpush1.msra.mxu0 0.0
  %1023 = vmatprep.subr.mxu0 0.0
  %1024 = vmatpush1.msra.mxu0 0.0
  %1025 = vmatprep.subr.mxu0 0.0
  %1026 = vmatpush1.msra.mxu0 0.0
  %1027 = vmatprep.subr.mxu0 0.0
  %1028 = vmatpush1.msra.mxu0 0.0
  %1029 = vmatprep.subr.mxu0 0.0
  %1030 = vmatpush1.msra.mxu0 0.0
  %1031 = vmatprep.subr.mxu0 0.0
  %1032 = vmatpush1.msra.mxu0 0.0
  %1033 = vmatprep.subr.mxu0 0.0
  %1034 = vmatpush1.msra.mxu0 0.0
  %1035 = vmatprep.subr.mxu0 0.0
  %1036 = vmatpush1.msra.mxu0 0.0
  %1037 = vmatprep.subr.mxu0 0.0
  %1038 = vmatpush1.msra.mxu0 0.0
  %1039 = vmatprep.mubr.f32.mxu0 0.0
  %1040 = vmatmul.mubr.f32.gmra.mrb[0].mxu0 %v925
  %v1041 = vpop.f32.mrb[0].mxu0
  %v1042 = vadd.f32 0.0, %v1041
  %v1043 = vpop.f32.mrb[0].mxu0
  %1044 = vmatprep.mubr.f32.mxu0 0.0
  %1045 = vmatmul.mubr.f32.gmra.mrb[0].mxu0 %v928
  %v1046 = vpop.f32.mrb[0].mxu0
  %v1047 = vadd.f32 0.0, %v1046
  %v1048 = vpop.f32.mrb[0].mxu0
  %1049 = vmatprep.mubr.f32.mxu0 0.0
  %1050 = vmatmul.mubr.f32.gmra.mrb[0].mxu0 %v931
  %v1051 = vpop.f32.mrb[0].mxu0
  %v1052 = vadd.f32 0.0, %v1051
  %v1053 = vpop.f32.mrb[0].mxu0
  %1054 = vmatprep.mubr.f32.mxu0 0.0
  %1055 = vmatmul.mubr.f32.gmra.mrb[0].mxu0 %v934
  %v1056 = vpop.f32.mrb[0].mxu0
  %v1057 = vadd.f32 0.0, %v1056
  %v1058 = vpop.f32.mrb[0].mxu0
  %1059 = vmatprep.mubr.f32.mxu0 0.0
  %1060 = vmatmul.mubr.f32.gmra.mrb[0].mxu0 %v937
  %v1061 = vpop.f32.mrb[0].mxu0
  %v1062 = vadd.f32 0.0, %v1061
  %v1063 = vpop.f32.mrb[0].mxu0
  %1064 = vmatprep.mubr.f32.mxu0 0.0
  %1065 = vmatmul.mubr.f32.gmra.mrb[0].mxu0 %v940
  %v1066 = vpop.f32.mrb[0].mxu0
  %v1067 = vadd.f32 0.0, %v1066
  %v1068 = vpop.f32.mrb[0].mxu0
  %1069 = vmatprep.mubr.f32.mxu0 0.0
  %1070 = vmatmul.mubr.f32.gmra.mrb[0].mxu0 %v943
  %v1071 = vpop.f32.mrb[0].mxu0
  %v1072 = vadd.f32 0.0, %v1071
  %v1073 = vpop.f32.mrb[0].mxu0
  %1074 = vmatprep.mubr.f32.mxu0 0.0
  %1075 = vmatmul.mubr.f32.gmra.mrb[0].mxu0 %v946
  %v1076 = vpop.f32.mrb[0].mxu0
  %v1077 = vadd.f32 0.0, %v1076
  %v1078 = vpop.f32.mrb[0].mxu0
  %1079 = vmatprep.mubr.f32.mxu0 0.0
  %1080 = vmatmul.mubr.f32.gmra.mrb[0].mxu0 %v949
  %v1081 = vpop.f32.mrb[0].mxu0
  %v1082 = vadd.f32 0.0, %v1081
  %v1083 = vpop.f32.mrb[0].mxu0
  %1084 = vmatprep.mubr.f32.mxu0 0.0
  %1085 = vmatmul.mubr.f32.gmra.mrb[0].mxu0 %v952
  %v1086 = vpop.f32.mrb[0].mxu0
  %v1087 = vadd.f32 0.0, %v1086
  %v1088 = vpop.f32.mrb[0].mxu0
  %1089 = vmatprep.mubr.f32.mxu0 0.0
  %1090 = vmatmul.mubr.f32.gmra.mrb[0].mxu0 %v955
  %v1091 = vpop.f32.mrb[0].mxu0
  %v1092 = vadd.f32 0.0, %v1091
  %v1093 = vpop.f32.mrb[0].mxu0
  %1094 = vmatprep.mubr.f32.mxu0 0.0
  %1095 = vmatmul.mubr.f32.gmra.mrb[0].mxu0 %v958
  %v1096 = vpop.f32.mrb[0].mxu0
  %v1097 = vadd.f32 0.0, %v1096
  %v1098 = vpop.f32.mrb[0].mxu0
  %1099 = vmatprep.mubr.f32.mxu0 0.0
  %1100 = vmatmul.mubr.f32.gmra.mrb[0].mxu0 %v961
  %v1101 = vpop.f32.mrb[0].mxu0
  %v1102 = vadd.f32 0.0, %v1101
  %v1103 = vpop.f32.mrb[0].mxu0
  %1104 = vmatprep.mubr.f32.mxu0 0.0
  %1105 = vmatmul.mubr.f32.gmra.mrb[0].mxu0 %v964
  %v1106 = vpop.f32.mrb[0].mxu0
  %v1107 = vadd.f32 0.0, %v1106
  %v1108 = vpop.f32.mrb[0].mxu0
  %1109 = vmatprep.mubr.f32.mxu0 0.0
  %1110 = vmatmul.mubr.f32.gmra.mrb[0].mxu0 %v967
  %v1111 = vpop.f32.mrb[0].mxu0
  %v1112 = vadd.f32 0.0, %v1111
  %v1113 = vpop.f32.mrb[0].mxu0
  %1114 = vmatprep.mubr.f32.mxu0 0.0
  %1115 = vmatmul.mubr.f32.gmra.mrb[0].mxu0 %v970
  %v1116 = vpop.f32.mrb[0].mxu0
  %v1117 = vadd.f32 0.0, %v1116
  %v1118 = vpop.f32.mrb[0].mxu0
  %1119 = vdwg.mxu0
  %v1120 = vadd.f32 %v889, %v1042
  %v1121 = vadd.f32 %v890, %v1047
  %v1122 = vadd.f32 %v891, %v1052
  %v1123 = vadd.f32 %v892, %v1057
  %v1124 = vadd.f32 %v893, %v1062
  %v1125 = vadd.f32 %v894, %v1067
  %v1126 = vadd.f32 %v895, %v1072
  %v1127 = vadd.f32 %v896, %v1077
  %v1128 = vadd.f32 %v897, %v1082
  %v1129 = vadd.f32 %v898, %v1087
  %v1130 = vadd.f32 %v899, %v1092
  %v1131 = vadd.f32 %v900, %v1097
  %v1132 = vadd.f32 %v901, %v1102
  %v1133 = vadd.f32 %v902, %v1107
  %v1134 = vadd.f32 %v903, %v1112
  %v1135 = vadd.f32 %v904, %v1117
  %v1136 = vld [vmem:[%s674 + $0x1] sm:$0xff]
  %v1137 = vld [vmem:[%s674 + $0x11] sm:$0xff]
  %v1138 = vld [vmem:[%s674 + $0x21] sm:$0xff]
  %v1139 = vld [vmem:[%s674 + $0x31] sm:$0xff]
  %v1140 = vld [vmem:[%s674 + $0x41] sm:$0xff]
  %v1141 = vld [vmem:[%s674 + $0x51] sm:$0xff]
  %v1142 = vld [vmem:[%s674 + $0x61] sm:$0xff]
  %v1143 = vld [vmem:[%s674 + $0x71] sm:$0xff]
  %v1144 = vld [vmem:[%s674 + $0x241] sm:$0xff]
  %v1145 = vld [vmem:[%s674 + $0x251] sm:$0xff]
  %v1146 = vld [vmem:[%s674 + $0x261] sm:$0xff]
  %v1147 = vld [vmem:[%s674 + $0x271] sm:$0xff]
  %v1148 = vld [vmem:[%s674 + $0x281] sm:$0xff]
  %v1149 = vld [vmem:[%s674 + $0x291] sm:$0xff]
  %v1150 = vld [vmem:[%s674 + $0x2a1] sm:$0xff]
  %v1151 = vld [vmem:[%s674 + $0x2b1] sm:$0xff]
  %s1152 = scalar_lea.vmem %s1, 20
  %v1153 = vld [vmem:[%s1152] sm:$0xf]
  %v1155 = vsel %vm50, %v1136, 0
  %v1158 = vsel %vm50, %v1137, 0
  %v1161 = vsel %vm50, %v1138, 0
  %v1164 = vsel %vm50, %v1139, 0
  %v1167 = vsel %vm50, %v1140, 0
  %v1170 = vsel %vm50, %v1141, 0
  %v1173 = vsel %vm50, %v1142, 0
  %v1176 = vsel %vm50, %v1143, 0
  %v1179 = vsel %vm50, %v1144, 0
  %v1182 = vsel %vm50, %v1145, 0
  %v1185 = vsel %vm50, %v1146, 0
  %v1188 = vsel %vm50, %v1147, 0
  %v1191 = vsel %vm50, %v1148, 0
  %v1194 = vsel %vm50, %v1149, 0
  %v1197 = vsel %vm50, %v1150, 0
  %v1200 = vsel %vm50, %v1151, 0
  %v1203 = vsel %vm99, %v1153, 0
  %1205 = vmatprep.subr.mxu0 0.0
  %1206 = vmatpush1.msra.mxu0 %v1203
  %1207 = vmatprep.subr.mxu0 0.0
  %1208 = vmatpush1.msra.mxu0 0.0
  %1209 = vmatprep.subr.mxu0 0.0
  %1210 = vmatpush1.msra.mxu0 0.0
  %1211 = vmatprep.subr.mxu0 0.0
  %1212 = vmatpush1.msra.mxu0 0.0
  %1213 = vmatprep.subr.mxu0 0.0
  %1214 = vmatpush1.msra.mxu0 0.0
  %1215 = vmatprep.subr.mxu0 0.0
  %1216 = vmatpush1.msra.mxu0 0.0
  %1217 = vmatprep.subr.mxu0 0.0
  %1218 = vmatpush1.msra.mxu0 0.0
  %1219 = vmatprep.subr.mxu0 0.0
  %1220 = vmatpush1.msra.mxu0 0.0
  %1221 = vmatprep.subr.mxu0 0.0
  %1222 = vmatpush1.msra.mxu0 0.0
  %1223 = vmatprep.subr.mxu0 0.0
  %1224 = vmatpush1.msra.mxu0 0.0
  %1225 = vmatprep.subr.mxu0 0.0
  %1226 = vmatpush1.msra.mxu0 0.0
  %1227 = vmatprep.subr.mxu0 0.0
  %1228 = vmatpush1.msra.mxu0 0.0
  %1229 = vmatprep.subr.mxu0 0.0
  %1230 = vmatpush1.msra.mxu0 0.0
  %1231 = vmatprep.subr.mxu0 0.0
  %1232 = vmatpush1.msra.mxu0 0.0
  %1233 = vmatprep.subr.mxu0 0.0
  %1234 = vmatpush1.msra.mxu0 0.0
  %1235 = vmatprep.subr.mxu0 0.0
  %1236 = vmatpush1.msra.mxu0 0.0
  %1237 = vmatprep.subr.mxu0 0.0
  %1238 = vmatpush1.msra.mxu0 0.0
  %1239 = vmatprep.subr.mxu0 0.0
  %1240 = vmatpush1.msra.mxu0 0.0
  %1241 = vmatprep.subr.mxu0 0.0
  %1242 = vmatpush1.msra.mxu0 0.0
  %1243 = vmatprep.subr.mxu0 0.0
  %1244 = vmatpush1.msra.mxu0 0.0
  %1245 = vmatprep.subr.mxu0 0.0
  %1246 = vmatpush1.msra.mxu0 0.0
  %1247 = vmatprep.subr.mxu0 0.0
  %1248 = vmatpush1.msra.mxu0 0.0
  %1249 = vmatprep.subr.mxu0 0.0
  %1250 = vmatpush1.msra.mxu0 0.0
  %1251 = vmatprep.subr.mxu0 0.0
  %1252 = vmatpush1.msra.mxu0 0.0
  %1253 = vmatprep.subr.mxu0 0.0
  %1254 = vmatpush1.msra.mxu0 0.0
  %1255 = vmatprep.subr.mxu0 0.0
  %1256 = vmatpush1.msra.mxu0 0.0
  %1257 = vmatprep.subr.mxu0 0.0
  %1258 = vmatpush1.msra.mxu0 0.0
  %1259 = vmatprep.subr.mxu0 0.0
  %1260 = vmatpush1.msra.mxu0 0.0
  %1261 = vmatprep.subr.mxu0 0.0
  %1262 = vmatpush1.msra.mxu0 0.0
  %1263 = vmatprep.subr.mxu0 0.0
  %1264 = vmatpush1.msra.mxu0 0.0
  %1265 = vmatprep.subr.mxu0 0.0
  %1266 = vmatpush1.msra.mxu0 0.0
  %1267 = vmatprep.subr.mxu0 0.0
  %1268 = vmatpush1.msra.mxu0 0.0
  %1269 = vmatprep.mubr.f32.mxu0 0.0
  %1270 = vmatmul.mubr.f32.gmra.mrb[0].mxu0 %v1155
  %v1271 = vpop.f32.mrb[0].mxu0
  %v1272 = vadd.f32 0.0, %v1271
  %v1273 = vpop.f32.mrb[0].mxu0
  %1274 = vmatprep.mubr.f32.mxu0 0.0
  %1275 = vmatmul.mubr.f32.gmra.mrb[0].mxu0 %v1158
  %v1276 = vpop.f32.mrb[0].mxu0
  %v1277 = vadd.f32 0.0, %v1276
  %v1278 = vpop.f32.mrb[0].mxu0
  %1279 = vmatprep.mubr.f32.mxu0 0.0
  %1280 = vmatmul.mubr.f32.gmra.mrb[0].mxu0 %v1161
  %v1281 = vpop.f32.mrb[0].mxu0
  %v1282 = vadd.f32 0.0, %v1281
  %v1283 = vpop.f32.mrb[0].mxu0
  %1284 = vmatprep.mubr.f32.mxu0 0.0
  %1285 = vmatmul.mubr.f32.gmra.mrb[0].mxu0 %v1164
  %v1286 = vpop.f32.mrb[0].mxu0
  %v1287 = vadd.f32 0.0, %v1286
  %v1288 = vpop.f32.mrb[0].mxu0
  %1289 = vmatprep.mubr.f32.mxu0 0.0
  %1290 = vmatmul.mubr.f32.gmra.mrb[0].mxu0 %v1167
  %v1291 = vpop.f32.mrb[0].mxu0
  %v1292 = vadd.f32 0.0, %v1291
  %v1293 = vpop.f32.mrb[0].mxu0
  %1294 = vmatprep.mubr.f32.mxu0 0.0
  %1295 = vmatmul.mubr.f32.gmra.mrb[0].mxu0 %v1170
  %v1296 = vpop.f32.mrb[0].mxu0
  %v1297 = vadd.f32 0.0, %v1296
  %v1298 = vpop.f32.mrb[0].mxu0
  %1299 = vmatprep.mubr.f32.mxu0 0.0
  %1300 = vmatmul.mubr.f32.gmra.mrb[0].mxu0 %v1173
  %v1301 = vpop.f32.mrb[0].mxu0
  %v1302 = vadd.f32 0.0, %v1301
  %v1303 = vpop.f32.mrb[0].mxu0
  %1304 = vmatprep.mubr.f32.mxu0 0.0
  %1305 = vmatmul.mubr.f32.gmra.mrb[0].mxu0 %v1176
  %v1306 = vpop.f32.mrb[0].mxu0
  %v1307 = vadd.f32 0.0, %v1306
  %v1308 = vpop.f32.mrb[0].mxu0
  %1309 = vmatprep.mubr.f32.mxu0 0.0
  %1310 = vmatmul.mubr.f32.gmra.mrb[0].mxu0 %v1179
  %v1311 = vpop.f32.mrb[0].mxu0
  %v1312 = vadd.f32 0.0, %v1311
  %v1313 = vpop.f32.mrb[0].mxu0
  %1314 = vmatprep.mubr.f32.mxu0 0.0
  %1315 = vmatmul.mubr.f32.gmra.mrb[0].mxu0 %v1182
  %v1316 = vpop.f32.mrb[0].mxu0
  %v1317 = vadd.f32 0.0, %v1316
  %v1318 = vpop.f32.mrb[0].mxu0
  %1319 = vmatprep.mubr.f32.mxu0 0.0
  %1320 = vmatmul.mubr.f32.gmra.mrb[0].mxu0 %v1185
  %v1321 = vpop.f32.mrb[0].mxu0
  %v1322 = vadd.f32 0.0, %v1321
  %v1323 = vpop.f32.mrb[0].mxu0
  %1324 = vmatprep.mubr.f32.mxu0 0.0
  %1325 = vmatmul.mubr.f32.gmra.mrb[0].mxu0 %v1188
  %v1326 = vpop.f32.mrb[0].mxu0
  %v1327 = vadd.f32 0.0, %v1326
  %v1328 = vpop.f32.mrb[0].mxu0
  %1329 = vmatprep.mubr.f32.mxu0 0.0
  %1330 = vmatmul.mubr.f32.gmra.mrb[0].mxu0 %v1191
  %v1331 = vpop.f32.mrb[0].mxu0
  %v1332 = vadd.f32 0.0, %v1331
  %v1333 = vpop.f32.mrb[0].mxu0
  %1334 = vmatprep.mubr.f32.mxu0 0.0
  %1335 = vmatmul.mubr.f32.gmra.mrb[0].mxu0 %v1194
  %v1336 = vpop.f32.mrb[0].mxu0
  %v1337 = vadd.f32 0.0, %v1336
  %v1338 = vpop.f32.mrb[0].mxu0
  %1339 = vmatprep.mubr.f32.mxu0 0.0
  %1340 = vmatmul.mubr.f32.gmra.mrb[0].mxu0 %v1197
  %v1341 = vpop.f32.mrb[0].mxu0
  %v1342 = vadd.f32 0.0, %v1341
  %v1343 = vpop.f32.mrb[0].mxu0
  %1344 = vmatprep.mubr.f32.mxu0 0.0
  %1345 = vmatmul.mubr.f32.gmra.mrb[0].mxu0 %v1200
  %v1346 = vpop.f32.mrb[0].mxu0
  %v1347 = vadd.f32 0.0, %v1346
  %v1348 = vpop.f32.mrb[0].mxu0
  %1349 = vdwg.mxu0
  %v1350 = vadd.f32 %v1120, %v1272
  %v1351 = vadd.f32 %v1121, %v1277
  %v1352 = vadd.f32 %v1122, %v1282
  %v1353 = vadd.f32 %v1123, %v1287
  %v1354 = vadd.f32 %v1124, %v1292
  %v1355 = vadd.f32 %v1125, %v1297
  %v1356 = vadd.f32 %v1126, %v1302
  %v1357 = vadd.f32 %v1127, %v1307
  %v1358 = vadd.f32 %v1128, %v1312
  %v1359 = vadd.f32 %v1129, %v1317
  %v1360 = vadd.f32 %v1130, %v1322
  %v1361 = vadd.f32 %v1131, %v1327
  %v1362 = vadd.f32 %v1132, %v1332
  %v1363 = vadd.f32 %v1133, %v1337
  %v1364 = vadd.f32 %v1134, %v1342
  %v1365 = vadd.f32 %v1135, %v1347
  %s1366 = scalar_lea.vmem %s0, 16
  %v1367 = vld [vmem:[%s1366] sm:$0xff]
  %v1368 = vld [vmem:[%s1366 + $0x10] sm:$0xff]
  %v1369 = vld [vmem:[%s1366 + $0x20] sm:$0xff]
  %v1370 = vld [vmem:[%s1366 + $0x30] sm:$0xff]
  %v1371 = vld [vmem:[%s1366 + $0x40] sm:$0xff]
  %v1372 = vld [vmem:[%s1366 + $0x50] sm:$0xff]
  %v1373 = vld [vmem:[%s1366 + $0x60] sm:$0xff]
  %v1374 = vld [vmem:[%s1366 + $0x70] sm:$0xff]
  %v1375 = vld [vmem:[%s1366 + $0x240] sm:$0xff]
  %v1376 = vld [vmem:[%s1366 + $0x250] sm:$0xff]
  %v1377 = vld [vmem:[%s1366 + $0x260] sm:$0xff]
  %v1378 = vld [vmem:[%s1366 + $0x270] sm:$0xff]
  %v1379 = vld [vmem:[%s1366 + $0x280] sm:$0xff]
  %v1380 = vld [vmem:[%s1366 + $0x290] sm:$0xff]
  %v1381 = vld [vmem:[%s1366 + $0x2a0] sm:$0xff]
  %v1382 = vld [vmem:[%s1366 + $0x2b0] sm:$0xff]
  %s1383 = scalar_lea.vmem %s1, 24
  %v1384 = vld [vmem:[%s1383] sm:$0xf]
  %v1386 = vsel %vm50, %v1367, 0
  %v1389 = vsel %vm50, %v1368, 0
  %v1392 = vsel %vm50, %v1369, 0
  %v1395 = vsel %vm50, %v1370, 0
  %v1398 = vsel %vm50, %v1371, 0
  %v1401 = vsel %vm50, %v1372, 0
  %v1404 = vsel %vm50, %v1373, 0
  %v1407 = vsel %vm50, %v1374, 0
  %v1410 = vsel %vm50, %v1375, 0
  %v1413 = vsel %vm50, %v1376, 0
  %v1416 = vsel %vm50, %v1377, 0
  %v1419 = vsel %vm50, %v1378, 0
  %v1422 = vsel %vm50, %v1379, 0
  %v1425 = vsel %vm50, %v1380, 0
  %v1428 = vsel %vm50, %v1381, 0
  %v1431 = vsel %vm50, %v1382, 0
  %v1434 = vsel %vm99, %v1384, 0
  %1436 = vmatprep.subr.mxu0 0.0
  %1437 = vmatpush1.msra.mxu0 %v1434
  %1438 = vmatprep.subr.mxu0 0.0
  %1439 = vmatpush1.msra.mxu0 0.0
  %1440 = vmatprep.subr.mxu0 0.0
  %1441 = vmatpush1.msra.mxu0 0.0
  %1442 = vmatprep.subr.mxu0 0.0
  %1443 = vmatpush1.msra.mxu0 0.0
  %1444 = vmatprep.subr.mxu0 0.0
  %1445 = vmatpush1.msra.mxu0 0.0
  %1446 = vmatprep.subr.mxu0 0.0
  %1447 = vmatpush1.msra.mxu0 0.0
  %1448 = vmatprep.subr.mxu0 0.0
  %1449 = vmatpush1.msra.mxu0 0.0
  %1450 = vmatprep.subr.mxu0 0.0
  %1451 = vmatpush1.msra.mxu0 0.0
  %1452 = vmatprep.subr.mxu0 0.0
  %1453 = vmatpush1.msra.mxu0 0.0
  %1454 = vmatprep.subr.mxu0 0.0
  %1455 = vmatpush1.msra.mxu0 0.0
  %1456 = vmatprep.subr.mxu0 0.0
  %1457 = vmatpush1.msra.mxu0 0.0
  %1458 = vmatprep.subr.mxu0 0.0
  %1459 = vmatpush1.msra.mxu0 0.0
  %1460 = vmatprep.subr.mxu0 0.0
  %1461 = vmatpush1.msra.mxu0 0.0
  %1462 = vmatprep.subr.mxu0 0.0
  %1463 = vmatpush1.msra.mxu0 0.0
  %1464 = vmatprep.subr.mxu0 0.0
  %1465 = vmatpush1.msra.mxu0 0.0
  %1466 = vmatprep.subr.mxu0 0.0
  %1467 = vmatpush1.msra.mxu0 0.0
  %1468 = vmatprep.subr.mxu0 0.0
  %1469 = vmatpush1.msra.mxu0 0.0
  %1470 = vmatprep.subr.mxu0 0.0
  %1471 = vmatpush1.msra.mxu0 0.0
  %1472 = vmatprep.subr.mxu0 0.0
  %1473 = vmatpush1.msra.mxu0 0.0
  %1474 = vmatprep.subr.mxu0 0.0
  %1475 = vmatpush1.msra.mxu0 0.0
  %1476 = vmatprep.subr.mxu0 0.0
  %1477 = vmatpush1.msra.mxu0 0.0
  %1478 = vmatprep.subr.mxu0 0.0
  %1479 = vmatpush1.msra.mxu0 0.0
  %1480 = vmatprep.subr.mxu0 0.0
  %1481 = vmatpush1.msra.mxu0 0.0
  %1482 = vmatprep.subr.mxu0 0.0
  %1483 = vmatpush1.msra.mxu0 0.0
  %1484 = vmatprep.subr.mxu0 0.0
  %1485 = vmatpush1.msra.mxu0 0.0
  %1486 = vmatprep.subr.mxu0 0.0
  %1487 = vmatpush1.msra.mxu0 0.0
  %1488 = vmatprep.subr.mxu0 0.0
  %1489 = vmatpush1.msra.mxu0 0.0
  %1490 = vmatprep.subr.mxu0 0.0
  %1491 = vmatpush1.msra.mxu0 0.0
  %1492 = vmatprep.subr.mxu0 0.0
  %1493 = vmatpush1.msra.mxu0 0.0
  %1494 = vmatprep.subr.mxu0 0.0
  %1495 = vmatpush1.msra.mxu0 0.0
  %1496 = vmatprep.subr.mxu0 0.0
  %1497 = vmatpush1.msra.mxu0 0.0
  %1498 = vmatprep.subr.mxu0 0.0
  %1499 = vmatpush1.msra.mxu0 0.0
  %1500 = vmatprep.mubr.f32.mxu0 0.0
  %1501 = vmatmul.mubr.f32.gmra.mrb[0].mxu0 %v1386
  %v1502 = vpop.f32.mrb[0].mxu0
  %v1503 = vadd.f32 0.0, %v1502
  %v1504 = vpop.f32.mrb[0].mxu0
  %1505 = vmatprep.mubr.f32.mxu0 0.0
  %1506 = vmatmul.mubr.f32.gmra.mrb[0].mxu0 %v1389
  %v1507 = vpop.f32.mrb[0].mxu0
  %v1508 = vadd.f32 0.0, %v1507
  %v1509 = vpop.f32.mrb[0].mxu0
  %1510 = vmatprep.mubr.f32.mxu0 0.0
  %1511 = vmatmul.mubr.f32.gmra.mrb[0].mxu0 %v1392
  %v1512 = vpop.f32.mrb[0].mxu0
  %v1513 = vadd.f32 0.0, %v1512
  %v1514 = vpop.f32.mrb[0].mxu0
  %1515 = vmatprep.mubr.f32.mxu0 0.0
  %1516 = vmatmul.mubr.f32.gmra.mrb[0].mxu0 %v1395
  %v1517 = vpop.f32.mrb[0].mxu0
  %v1518 = vadd.f32 0.0, %v1517
  %v1519 = vpop.f32.mrb[0].mxu0
  %1520 = vmatprep.mubr.f32.mxu0 0.0
  %1521 = vmatmul.mubr.f32.gmra.mrb[0].mxu0 %v1398
  %v1522 = vpop.f32.mrb[0].mxu0
  %v1523 = vadd.f32 0.0, %v1522
  %v1524 = vpop.f32.mrb[0].mxu0
  %1525 = vmatprep.mubr.f32.mxu0 0.0
  %1526 = vmatmul.mubr.f32.gmra.mrb[0].mxu0 %v1401
  %v1527 = vpop.f32.mrb[0].mxu0
  %v1528 = vadd.f32 0.0, %v1527
  %v1529 = vpop.f32.mrb[0].mxu0
  %1530 = vmatprep.mubr.f32.mxu0 0.0
  %1531 = vmatmul.mubr.f32.gmra.mrb[0].mxu0 %v1404
  %v1532 = vpop.f32.mrb[0].mxu0
  %v1533 = vadd.f32 0.0, %v1532
  %v1534 = vpop.f32.mrb[0].mxu0
  %1535 = vmatprep.mubr.f32.mxu0 0.0
  %1536 = vmatmul.mubr.f32.gmra.mrb[0].mxu0 %v1407
  %v1537 = vpop.f32.mrb[0].mxu0
  %v1538 = vadd.f32 0.0, %v1537
  %v1539 = vpop.f32.mrb[0].mxu0
  %1540 = vmatprep.mubr.f32.mxu0 0.0
  %1541 = vmatmul.mubr.f32.gmra.mrb[0].mxu0 %v1410
  %v1542 = vpop.f32.mrb[0].mxu0
  %v1543 = vadd.f32 0.0, %v1542
  %v1544 = vpop.f32.mrb[0].mxu0
  %1545 = vmatprep.mubr.f32.mxu0 0.0
  %1546 = vmatmul.mubr.f32.gmra.mrb[0].mxu0 %v1413
  %v1547 = vpop.f32.mrb[0].mxu0
  %v1548 = vadd.f32 0.0, %v1547
  %v1549 = vpop.f32.mrb[0].mxu0
  %1550 = vmatprep.mubr.f32.mxu0 0.0
  %1551 = vmatmul.mubr.f32.gmra.mrb[0].mxu0 %v1416
  %v1552 = vpop.f32.mrb[0].mxu0
  %v1553 = vadd.f32 0.0, %v1552
  %v1554 = vpop.f32.mrb[0].mxu0
  %1555 = vmatprep.mubr.f32.mxu0 0.0
  %1556 = vmatmul.mubr.f32.gmra.mrb[0].mxu0 %v1419
  %v1557 = vpop.f32.mrb[0].mxu0
  %v1558 = vadd.f32 0.0, %v1557
  %v1559 = vpop.f32.mrb[0].mxu0
  %1560 = vmatprep.mubr.f32.mxu0 0.0
  %1561 = vmatmul.mubr.f32.gmra.mrb[0].mxu0 %v1422
  %v1562 = vpop.f32.mrb[0].mxu0
  %v1563 = vadd.f32 0.0, %v1562
  %v1564 = vpop.f32.mrb[0].mxu0
  %1565 = vmatprep.mubr.f32.mxu0 0.0
  %1566 = vmatmul.mubr.f32.gmra.mrb[0].mxu0 %v1425
  %v1567 = vpop.f32.mrb[0].mxu0
  %v1568 = vadd.f32 0.0, %v1567
  %v1569 = vpop.f32.mrb[0].mxu0
  %1570 = vmatprep.mubr.f32.mxu0 0.0
  %1571 = vmatmul.mubr.f32.gmra.mrb[0].mxu0 %v1428
  %v1572 = vpop.f32.mrb[0].mxu0
  %v1573 = vadd.f32 0.0, %v1572
  %v1574 = vpop.f32.mrb[0].mxu0
  %1575 = vmatprep.mubr.f32.mxu0 0.0
  %1576 = vmatmul.mubr.f32.gmra.mrb[0].mxu0 %v1431
  %v1577 = vpop.f32.mrb[0].mxu0
  %v1578 = vadd.f32 0.0, %v1577
  %v1579 = vpop.f32.mrb[0].mxu0
  %1580 = vdwg.mxu0
  %v1581 = vadd.f32 %v1350, %v1503
  %v1582 = vadd.f32 %v1351, %v1508
  %v1583 = vadd.f32 %v1352, %v1513
  %v1584 = vadd.f32 %v1353, %v1518
  %v1585 = vadd.f32 %v1354, %v1523
  %v1586 = vadd.f32 %v1355, %v1528
  %v1587 = vadd.f32 %v1356, %v1533
  %v1588 = vadd.f32 %v1357, %v1538
  %v1589 = vadd.f32 %v1358, %v1543
  %v1590 = vadd.f32 %v1359, %v1548
  %v1591 = vadd.f32 %v1360, %v1553
  %v1592 = vadd.f32 %v1361, %v1558
  %v1593 = vadd.f32 %v1362, %v1563
  %v1594 = vadd.f32 %v1363, %v1568
  %v1595 = vadd.f32 %v1364, %v1573
  %v1596 = vadd.f32 %v1365, %v1578
  %s1597 = scalar_lea.vmem %s0, 160
  %v1598 = vld [vmem:[%s1597] sm:$0xff]
  %v1599 = vld [vmem:[%s1597 + $0x10] sm:$0xff]
  %v1600 = vld [vmem:[%s1597 + $0x20] sm:$0xff]
  %v1601 = vld [vmem:[%s1597 + $0x30] sm:$0xff]
  %v1602 = vld [vmem:[%s1597 + $0x40] sm:$0xff]
  %v1603 = vld [vmem:[%s1597 + $0x50] sm:$0xff]
  %v1604 = vld [vmem:[%s1597 + $0x60] sm:$0xff]
  %v1605 = vld [vmem:[%s1597 + $0x70] sm:$0xff]
  %v1606 = vld [vmem:[%s1597 + $0x240] sm:$0xff]
  %v1607 = vld [vmem:[%s1597 + $0x250] sm:$0xff]
  %v1608 = vld [vmem:[%s1597 + $0x260] sm:$0xff]
  %v1609 = vld [vmem:[%s1597 + $0x270] sm:$0xff]
  %v1610 = vld [vmem:[%s1597 + $0x280] sm:$0xff]
  %v1611 = vld [vmem:[%s1597 + $0x290] sm:$0xff]
  %v1612 = vld [vmem:[%s1597 + $0x2a0] sm:$0xff]
  %v1613 = vld [vmem:[%s1597 + $0x2b0] sm:$0xff]
  %s1614 = scalar_lea.vmem %s1, 28
  %v1615 = vld [vmem:[%s1614] sm:$0xf]
  %v1617 = vsel %vm50, %v1598, 0
  %v1620 = vsel %vm50, %v1599, 0
  %v1623 = vsel %vm50, %v1600, 0
  %v1626 = vsel %vm50, %v1601, 0
  %v1629 = vsel %vm50, %v1602, 0
  %v1632 = vsel %vm50, %v1603, 0
  %v1635 = vsel %vm50, %v1604, 0
  %v1638 = vsel %vm50, %v1605, 0
  %v1641 = vsel %vm50, %v1606, 0
  %v1644 = vsel %vm50, %v1607, 0
  %v1647 = vsel %vm50, %v1608, 0
  %v1650 = vsel %vm50, %v1609, 0
  %v1653 = vsel %vm50, %v1610, 0
  %v1656 = vsel %vm50, %v1611, 0
  %v1659 = vsel %vm50, %v1612, 0
  %v1662 = vsel %vm50, %v1613, 0
  %v1665 = vsel %vm99, %v1615, 0
  %1667 = vmatprep.subr.mxu0 0.0
  %1668 = vmatpush1.msra.mxu0 %v1665
  %1669 = vmatprep.subr.mxu0 0.0
  %1670 = vmatpush1.msra.mxu0 0.0
  %1671 = vmatprep.subr.mxu0 0.0
  %1672 = vmatpush1.msra.mxu0 0.0
  %1673 = vmatprep.subr.mxu0 0.0
  %1674 = vmatpush1.msra.mxu0 0.0
  %1675 = vmatprep.subr.mxu0 0.0
  %1676 = vmatpush1.msra.mxu0 0.0
  %1677 = vmatprep.subr.mxu0 0.0
  %1678 = vmatpush1.msra.mxu0 0.0
  %1679 = vmatprep.subr.mxu0 0.0
  %1680 = vmatpush1.msra.mxu0 0.0
  %1681 = vmatprep.subr.mxu0 0.0
  %1682 = vmatpush1.msra.mxu0 0.0
  %1683 = vmatprep.subr.mxu0 0.0
  %1684 = vmatpush1.msra.mxu0 0.0
  %1685 = vmatprep.subr.mxu0 0.0
  %1686 = vmatpush1.msra.mxu0 0.0
  %1687 = vmatprep.subr.mxu0 0.0
  %1688 = vmatpush1.msra.mxu0 0.0
  %1689 = vmatprep.subr.mxu0 0.0
  %1690 = vmatpush1.msra.mxu0 0.0
  %1691 = vmatprep.subr.mxu0 0.0
  %1692 = vmatpush1.msra.mxu0 0.0
  %1693 = vmatprep.subr.mxu0 0.0
  %1694 = vmatpush1.msra.mxu0 0.0
  %1695 = vmatprep.subr.mxu0 0.0
  %1696 = vmatpush1.msra.mxu0 0.0
  %1697 = vmatprep.subr.mxu0 0.0
  %1698 = vmatpush1.msra.mxu0 0.0
  %1699 = vmatprep.subr.mxu0 0.0
  %1700 = vmatpush1.msra.mxu0 0.0
  %1701 = vmatprep.subr.mxu0 0.0
  %1702 = vmatpush1.msra.mxu0 0.0
  %1703 = vmatprep.subr.mxu0 0.0
  %1704 = vmatpush1.msra.mxu0 0.0
  %1705 = vmatprep.subr.mxu0 0.0
  %1706 = vmatpush1.msra.mxu0 0.0
  %1707 = vmatprep.subr.mxu0 0.0
  %1708 = vmatpush1.msra.mxu0 0.0
  %1709 = vmatprep.subr.mxu0 0.0
  %1710 = vmatpush1.msra.mxu0 0.0
  %1711 = vmatprep.subr.mxu0 0.0
  %1712 = vmatpush1.msra.mxu0 0.0
  %1713 = vmatprep.subr.mxu0 0.0
  %1714 = vmatpush1.msra.mxu0 0.0
  %1715 = vmatprep.subr.mxu0 0.0
  %1716 = vmatpush1.msra.mxu0 0.0
  %1717 = vmatprep.subr.mxu0 0.0
  %1718 = vmatpush1.msra.mxu0 0.0
  %1719 = vmatprep.subr.mxu0 0.0
  %1720 = vmatpush1.msra.mxu0 0.0
  %1721 = vmatprep.subr.mxu0 0.0
  %1722 = vmatpush1.msra.mxu0 0.0
  %1723 = vmatprep.subr.mxu0 0.0
  %1724 = vmatpush1.msra.mxu0 0.0
  %1725 = vmatprep.subr.mxu0 0.0
  %1726 = vmatpush1.msra.mxu0 0.0
  %1727 = vmatprep.subr.mxu0 0.0
  %1728 = vmatpush1.msra.mxu0 0.0
  %1729 = vmatprep.subr.mxu0 0.0
  %1730 = vmatpush1.msra.mxu0 0.0
  %1731 = vmatprep.mubr.f32.mxu0 0.0
  %1732 = vmatmul.mubr.f32.gmra.mrb[0].mxu0 %v1617
  %v1733 = vpop.f32.mrb[0].mxu0
  %v1734 = vadd.f32 0.0, %v1733
  %v1735 = vpop.f32.mrb[0].mxu0
  %1736 = vmatprep.mubr.f32.mxu0 0.0
  %1737 = vmatmul.mubr.f32.gmra.mrb[0].mxu0 %v1620
  %v1738 = vpop.f32.mrb[0].mxu0
  %v1739 = vadd.f32 0.0, %v1738
  %v1740 = vpop.f32.mrb[0].mxu0
  %1741 = vmatprep.mubr.f32.mxu0 0.0
  %1742 = vmatmul.mubr.f32.gmra.mrb[0].mxu0 %v1623
  %v1743 = vpop.f32.mrb[0].mxu0
  %v1744 = vadd.f32 0.0, %v1743
  %v1745 = vpop.f32.mrb[0].mxu0
  %1746 = vmatprep.mubr.f32.mxu0 0.0
  %1747 = vmatmul.mubr.f32.gmra.mrb[0].mxu0 %v1626
  %v1748 = vpop.f32.mrb[0].mxu0
  %v1749 = vadd.f32 0.0, %v1748
  %v1750 = vpop.f32.mrb[0].mxu0
  %1751 = vmatprep.mubr.f32.mxu0 0.0
  %1752 = vmatmul.mubr.f32.gmra.mrb[0].mxu0 %v1629
  %v1753 = vpop.f32.mrb[0].mxu0
  %v1754 = vadd.f32 0.0, %v1753
  %v1755 = vpop.f32.mrb[0].mxu0
  %1756 = vmatprep.mubr.f32.mxu0 0.0
  %1757 = vmatmul.mubr.f32.gmra.mrb[0].mxu0 %v1632
  %v1758 = vpop.f32.mrb[0].mxu0
  %v1759 = vadd.f32 0.0, %v1758
  %v1760 = vpop.f32.mrb[0].mxu0
  %1761 = vmatprep.mubr.f32.mxu0 0.0
  %1762 = vmatmul.mubr.f32.gmra.mrb[0].mxu0 %v1635
  %v1763 = vpop.f32.mrb[0].mxu0
  %v1764 = vadd.f32 0.0, %v1763
  %v1765 = vpop.f32.mrb[0].mxu0
  %1766 = vmatprep.mubr.f32.mxu0 0.0
  %1767 = vmatmul.mubr.f32.gmra.mrb[0].mxu0 %v1638
  %v1768 = vpop.f32.mrb[0].mxu0
  %v1769 = vadd.f32 0.0, %v1768
  %v1770 = vpop.f32.mrb[0].mxu0
  %1771 = vmatprep.mubr.f32.mxu0 0.0
  %1772 = vmatmul.mubr.f32.gmra.mrb[0].mxu0 %v1641
  %v1773 = vpop.f32.mrb[0].mxu0
  %v1774 = vadd.f32 0.0, %v1773
  %v1775 = vpop.f32.mrb[0].mxu0
  %1776 = vmatprep.mubr.f32.mxu0 0.0
  %1777 = vmatmul.mubr.f32.gmra.mrb[0].mxu0 %v1644
  %v1778 = vpop.f32.mrb[0].mxu0
  %v1779 = vadd.f32 0.0, %v1778
  %v1780 = vpop.f32.mrb[0].mxu0
  %1781 = vmatprep.mubr.f32.mxu0 0.0
  %1782 = vmatmul.mubr.f32.gmra.mrb[0].mxu0 %v1647
  %v1783 = vpop.f32.mrb[0].mxu0
  %v1784 = vadd.f32 0.0, %v1783
  %v1785 = vpop.f32.mrb[0].mxu0
  %1786 = vmatprep.mubr.f32.mxu0 0.0
  %1787 = vmatmul.mubr.f32.gmra.mrb[0].mxu0 %v1650
  %v1788 = vpop.f32.mrb[0].mxu0
  %v1789 = vadd.f32 0.0, %v1788
  %v1790 = vpop.f32.mrb[0].mxu0
  %1791 = vmatprep.mubr.f32.mxu0 0.0
  %1792 = vmatmul.mubr.f32.gmra.mrb[0].mxu0 %v1653
  %v1793 = vpop.f32.mrb[0].mxu0
  %v1794 = vadd.f32 0.0, %v1793
  %v1795 = vpop.f32.mrb[0].mxu0
  %1796 = vmatprep.mubr.f32.mxu0 0.0
  %1797 = vmatmul.mubr.f32.gmra.mrb[0].mxu0 %v1656
  %v1798 = vpop.f32.mrb[0].mxu0
  %v1799 = vadd.f32 0.0, %v1798
  %v1800 = vpop.f32.mrb[0].mxu0
  %1801 = vmatprep.mubr.f32.mxu0 0.0
  %1802 = vmatmul.mubr.f32.gmra.mrb[0].mxu0 %v1659
  %v1803 = vpop.f32.mrb[0].mxu0
  %v1804 = vadd.f32 0.0, %v1803
  %v1805 = vpop.f32.mrb[0].mxu0
  %1806 = vmatprep.mubr.f32.mxu0 0.0
  %1807 = vmatmul.mubr.f32.gmra.mrb[0].mxu0 %v1662
  %v1808 = vpop.f32.mrb[0].mxu0
  %v1809 = vadd.f32 0.0, %v1808
  %v1810 = vpop.f32.mrb[0].mxu0
  %1811 = vdwg.mxu0
  %v1812 = vadd.f32 %v1581, %v1734
  %v1813 = vadd.f32 %v1582, %v1739
  %v1814 = vadd.f32 %v1583, %v1744
  %v1815 = vadd.f32 %v1584, %v1749
  %v1816 = vadd.f32 %v1585, %v1754
  %v1817 = vadd.f32 %v1586, %v1759
  %v1818 = vadd.f32 %v1587, %v1764
  %v1819 = vadd.f32 %v1588, %v1769
  %v1820 = vadd.f32 %v1589, %v1774
  %v1821 = vadd.f32 %v1590, %v1779
  %v1822 = vadd.f32 %v1591, %v1784
  %v1823 = vadd.f32 %v1592, %v1789
  %v1824 = vadd.f32 %v1593, %v1794
  %v1825 = vadd.f32 %v1594, %v1799
  %v1826 = vadd.f32 %v1595, %v1804
  %v1827 = vadd.f32 %v1596, %v1809
  %v1828 = vld [vmem:[%s1366 + $0x1] sm:$0xff]
  %v1829 = vld [vmem:[%s1366 + $0x11] sm:$0xff]
  %v1830 = vld [vmem:[%s1366 + $0x21] sm:$0xff]
  %v1831 = vld [vmem:[%s1366 + $0x31] sm:$0xff]
  %v1832 = vld [vmem:[%s1366 + $0x41] sm:$0xff]
  %v1833 = vld [vmem:[%s1366 + $0x51] sm:$0xff]
  %v1834 = vld [vmem:[%s1366 + $0x61] sm:$0xff]
  %v1835 = vld [vmem:[%s1366 + $0x71] sm:$0xff]
  %v1836 = vld [vmem:[%s1366 + $0x241] sm:$0xff]
  %v1837 = vld [vmem:[%s1366 + $0x251] sm:$0xff]
  %v1838 = vld [vmem:[%s1366 + $0x261] sm:$0xff]
  %v1839 = vld [vmem:[%s1366 + $0x271] sm:$0xff]
  %v1840 = vld [vmem:[%s1366 + $0x281] sm:$0xff]
  %v1841 = vld [vmem:[%s1366 + $0x291] sm:$0xff]
  %v1842 = vld [vmem:[%s1366 + $0x2a1] sm:$0xff]
  %v1843 = vld [vmem:[%s1366 + $0x2b1] sm:$0xff]
  %s1844 = scalar_lea.vmem %s1, 32
  %v1845 = vld [vmem:[%s1844] sm:$0xf]
  %v1847 = vsel %vm50, %v1828, 0
  %v1850 = vsel %vm50, %v1829, 0
  %v1853 = vsel %vm50, %v1830, 0
  %v1856 = vsel %vm50, %v1831, 0
  %v1859 = vsel %vm50, %v1832, 0
  %v1862 = vsel %vm50, %v1833, 0
  %v1865 = vsel %vm50, %v1834, 0
  %v1868 = vsel %vm50, %v1835, 0
  %v1871 = vsel %vm50, %v1836, 0
  %v1874 = vsel %vm50, %v1837, 0
  %v1877 = vsel %vm50, %v1838, 0
  %v1880 = vsel %vm50, %v1839, 0
  %v1883 = vsel %vm50, %v1840, 0
  %v1886 = vsel %vm50, %v1841, 0
  %v1889 = vsel %vm50, %v1842, 0
  %v1892 = vsel %vm50, %v1843, 0
  %v1895 = vsel %vm99, %v1845, 0
  %1897 = vmatprep.subr.mxu0 0.0
  %1898 = vmatpush1.msra.mxu0 %v1895
  %1899 = vmatprep.subr.mxu0 0.0
  %1900 = vmatpush1.msra.mxu0 0.0
  %1901 = vmatprep.subr.mxu0 0.0
  %1902 = vmatpush1.msra.mxu0 0.0
  %1903 = vmatprep.subr.mxu0 0.0
  %1904 = vmatpush1.msra.mxu0 0.0
  %1905 = vmatprep.subr.mxu0 0.0
  %1906 = vmatpush1.msra.mxu0 0.0
  %1907 = vmatprep.subr.mxu0 0.0
  %1908 = vmatpush1.msra.mxu0 0.0
  %1909 = vmatprep.subr.mxu0 0.0
  %1910 = vmatpush1.msra.mxu0 0.0
  %1911 = vmatprep.subr.mxu0 0.0
  %1912 = vmatpush1.msra.mxu0 0.0
  %1913 = vmatprep.subr.mxu0 0.0
  %1914 = vmatpush1.msra.mxu0 0.0
  %1915 = vmatprep.subr.mxu0 0.0
  %1916 = vmatpush1.msra.mxu0 0.0
  %1917 = vmatprep.subr.mxu0 0.0
  %1918 = vmatpush1.msra.mxu0 0.0
  %1919 = vmatprep.subr.mxu0 0.0
  %1920 = vmatpush1.msra.mxu0 0.0
  %1921 = vmatprep.subr.mxu0 0.0
  %1922 = vmatpush1.msra.mxu0 0.0
  %1923 = vmatprep.subr.mxu0 0.0
  %1924 = vmatpush1.msra.mxu0 0.0
  %1925 = vmatprep.subr.mxu0 0.0
  %1926 = vmatpush1.msra.mxu0 0.0
  %1927 = vmatprep.subr.mxu0 0.0
  %1928 = vmatpush1.msra.mxu0 0.0
  %1929 = vmatprep.subr.mxu0 0.0
  %1930 = vmatpush1.msra.mxu0 0.0
  %1931 = vmatprep.subr.mxu0 0.0
  %1932 = vmatpush1.msra.mxu0 0.0
  %1933 = vmatprep.subr.mxu0 0.0
  %1934 = vmatpush1.msra.mxu0 0.0
  %1935 = vmatprep.subr.mxu0 0.0
  %1936 = vmatpush1.msra.mxu0 0.0
  %1937 = vmatprep.subr.mxu0 0.0
  %1938 = vmatpush1.msra.mxu0 0.0
  %1939 = vmatprep.subr.mxu0 0.0
  %1940 = vmatpush1.msra.mxu0 0.0
  %1941 = vmatprep.subr.mxu0 0.0
  %1942 = vmatpush1.msra.mxu0 0.0
  %1943 = vmatprep.subr.mxu0 0.0
  %1944 = vmatpush1.msra.mxu0 0.0
  %1945 = vmatprep.subr.mxu0 0.0
  %1946 = vmatpush1.msra.mxu0 0.0
  %1947 = vmatprep.subr.mxu0 0.0
  %1948 = vmatpush1.msra.mxu0 0.0
  %1949 = vmatprep.subr.mxu0 0.0
  %1950 = vmatpush1.msra.mxu0 0.0
  %1951 = vmatprep.subr.mxu0 0.0
  %1952 = vmatpush1.msra.mxu0 0.0
  %1953 = vmatprep.subr.mxu0 0.0
  %1954 = vmatpush1.msra.mxu0 0.0
  %1955 = vmatprep.subr.mxu0 0.0
  %1956 = vmatpush1.msra.mxu0 0.0
  %1957 = vmatprep.subr.mxu0 0.0
  %1958 = vmatpush1.msra.mxu0 0.0
  %1959 = vmatprep.subr.mxu0 0.0
  %1960 = vmatpush1.msra.mxu0 0.0
  %1961 = vmatprep.mubr.f32.mxu0 0.0
  %1962 = vmatmul.mubr.f32.gmra.mrb[0].mxu0 %v1847
  %v1963 = vpop.f32.mrb[0].mxu0
  %v1964 = vadd.f32 0.0, %v1963
  %v1965 = vpop.f32.mrb[0].mxu0
  %1966 = vmatprep.mubr.f32.mxu0 0.0
  %1967 = vmatmul.mubr.f32.gmra.mrb[0].mxu0 %v1850
  %v1968 = vpop.f32.mrb[0].mxu0
  %v1969 = vadd.f32 0.0, %v1968
  %v1970 = vpop.f32.mrb[0].mxu0
  %1971 = vmatprep.mubr.f32.mxu0 0.0
  %1972 = vmatmul.mubr.f32.gmra.mrb[0].mxu0 %v1853
  %v1973 = vpop.f32.mrb[0].mxu0
  %v1974 = vadd.f32 0.0, %v1973
  %v1975 = vpop.f32.mrb[0].mxu0
  %1976 = vmatprep.mubr.f32.mxu0 0.0
  %1977 = vmatmul.mubr.f32.gmra.mrb[0].mxu0 %v1856
  %v1978 = vpop.f32.mrb[0].mxu0
  %v1979 = vadd.f32 0.0, %v1978
  %v1980 = vpop.f32.mrb[0].mxu0
  %1981 = vmatprep.mubr.f32.mxu0 0.0
  %1982 = vmatmul.mubr.f32.gmra.mrb[0].mxu0 %v1859
  %v1983 = vpop.f32.mrb[0].mxu0
  %v1984 = vadd.f32 0.0, %v1983
  %v1985 = vpop.f32.mrb[0].mxu0
  %1986 = vmatprep.mubr.f32.mxu0 0.0
  %1987 = vmatmul.mubr.f32.gmra.mrb[0].mxu0 %v1862
  %v1988 = vpop.f32.mrb[0].mxu0
  %v1989 = vadd.f32 0.0, %v1988
  %v1990 = vpop.f32.mrb[0].mxu0
  %1991 = vmatprep.mubr.f32.mxu0 0.0
  %1992 = vmatmul.mubr.f32.gmra.mrb[0].mxu0 %v1865
  %v1993 = vpop.f32.mrb[0].mxu0
  %v1994 = vadd.f32 0.0, %v1993
  %v1995 = vpop.f32.mrb[0].mxu0
  %1996 = vmatprep.mubr.f32.mxu0 0.0
  %1997 = vmatmul.mubr.f32.gmra.mrb[0].mxu0 %v1868
  %v1998 = vpop.f32.mrb[0].mxu0
  %v1999 = vadd.f32 0.0, %v1998
  %v2000 = vpop.f32.mrb[0].mxu0
  %2001 = vmatprep.mubr.f32.mxu0 0.0
  %2002 = vmatmul.mubr.f32.gmra.mrb[0].mxu0 %v1871
  %v2003 = vpop.f32.mrb[0].mxu0
  %v2004 = vadd.f32 0.0, %v2003
  %v2005 = vpop.f32.mrb[0].mxu0
  %2006 = vmatprep.mubr.f32.mxu0 0.0
  %2007 = vmatmul.mubr.f32.gmra.mrb[0].mxu0 %v1874
  %v2008 = vpop.f32.mrb[0].mxu0
  %v2009 = vadd.f32 0.0, %v2008
  %v2010 = vpop.f32.mrb[0].mxu0
  %2011 = vmatprep.mubr.f32.mxu0 0.0
  %2012 = vmatmul.mubr.f32.gmra.mrb[0].mxu0 %v1877
  %v2013 = vpop.f32.mrb[0].mxu0
  %v2014 = vadd.f32 0.0, %v2013
  %v2015 = vpop.f32.mrb[0].mxu0
  %2016 = vmatprep.mubr.f32.mxu0 0.0
  %2017 = vmatmul.mubr.f32.gmra.mrb[0].mxu0 %v1880
  %v2018 = vpop.f32.mrb[0].mxu0
  %v2019 = vadd.f32 0.0, %v2018
  %v2020 = vpop.f32.mrb[0].mxu0
  %2021 = vmatprep.mubr.f32.mxu0 0.0
  %2022 = vmatmul.mubr.f32.gmra.mrb[0].mxu0 %v1883
  %v2023 = vpop.f32.mrb[0].mxu0
  %v2024 = vadd.f32 0.0, %v2023
  %v2025 = vpop.f32.mrb[0].mxu0
  %2026 = vmatprep.mubr.f32.mxu0 0.0
  %2027 = vmatmul.mubr.f32.gmra.mrb[0].mxu0 %v1886
  %v2028 = vpop.f32.mrb[0].mxu0
  %v2029 = vadd.f32 0.0, %v2028
  %v2030 = vpop.f32.mrb[0].mxu0
  %2031 = vmatprep.mubr.f32.mxu0 0.0
  %2032 = vmatmul.mubr.f32.gmra.mrb[0].mxu0 %v1889
  %v2033 = vpop.f32.mrb[0].mxu0
  %v2034 = vadd.f32 0.0, %v2033
  %v2035 = vpop.f32.mrb[0].mxu0
  %2036 = vmatprep.mubr.f32.mxu0 0.0
  %2037 = vmatmul.mubr.f32.gmra.mrb[0].mxu0 %v1892
  %v2038 = vpop.f32.mrb[0].mxu0
  %v2039 = vadd.f32 0.0, %v2038
  %v2040 = vpop.f32.mrb[0].mxu0
  %2041 = vdwg.mxu0
  %v2042 = vadd.f32 %v1812, %v1964
  %v2043 = vadd.f32 %v1813, %v1969
  %v2044 = vadd.f32 %v1814, %v1974
  %v2045 = vadd.f32 %v1815, %v1979
  %v2046 = vadd.f32 %v1816, %v1984
  %v2047 = vadd.f32 %v1817, %v1989
  %v2048 = vadd.f32 %v1818, %v1994
  %v2049 = vadd.f32 %v1819, %v1999
  %v2050 = vadd.f32 %v1820, %v2004
  %v2051 = vadd.f32 %v1821, %v2009
  %v2052 = vadd.f32 %v1822, %v2014
  %v2053 = vadd.f32 %v1823, %v2019
  %v2054 = vadd.f32 %v1824, %v2024
  %v2055 = vadd.f32 %v1825, %v2029
  %v2056 = vadd.f32 %v1826, %v2034
  %v2057 = vadd.f32 %v1827, %v2039
  %vm2058 = vcmask 64512
  %2059 = vst.msk [vmem:[%s2] sm:$0xff] %vm2058, %v2042
  %2060 = vst.msk [vmem:[%s2 + $0x8] sm:$0xff] %vm2058, %v2043
  %2061 = vst.msk [vmem:[%s2 + $0x10] sm:$0xff] %vm2058, %v2044
  %2062 = vst.msk [vmem:[%s2 + $0x18] sm:$0xff] %vm2058, %v2045
  %2063 = vst.msk [vmem:[%s2 + $0x20] sm:$0xff] %vm2058, %v2046
  %2064 = vst.msk [vmem:[%s2 + $0x28] sm:$0xff] %vm2058, %v2047
  %2065 = vst.msk [vmem:[%s2 + $0x30] sm:$0xff] %vm2058, %v2048
  %2066 = vst.msk [vmem:[%s2 + $0x38] sm:$0xff] %vm2058, %v2049
  %2067 = vst.msk [vmem:[%s2 + $0x40] sm:$0xff] %vm2058, %v2050
  %2068 = vst.msk [vmem:[%s2 + $0x48] sm:$0xff] %vm2058, %v2051
  %2069 = vst.msk [vmem:[%s2 + $0x50] sm:$0xff] %vm2058, %v2052
  %2070 = vst.msk [vmem:[%s2 + $0x58] sm:$0xff] %vm2058, %v2053
  %2071 = vst.msk [vmem:[%s2 + $0x60] sm:$0xff] %vm2058, %v2054
  %2072 = vst.msk [vmem:[%s2 + $0x68] sm:$0xff] %vm2058, %v2055
  %2073 = vst.msk [vmem:[%s2 + $0x70] sm:$0xff] %vm2058, %v2056
  %2074 = vst.msk [vmem:[%s2 + $0x78] sm:$0xff] %vm2058, %v2057
  %v2075 = vsel %vm2058, %v2042, 0.0
  %v2076 = vsel %vm2058, %v2043, 0.0
  %v2077 = vadd.f32 %v2075, %v2076
  %v2078 = vsel %vm2058, %v2044, 0.0
  %v2079 = vadd.f32 %v2077, %v2078
  %v2080 = vsel %vm2058, %v2045, 0.0
  %v2081 = vadd.f32 %v2079, %v2080
  %v2082 = vsel %vm2058, %v2046, 0.0
  %v2083 = vadd.f32 %v2081, %v2082
  %v2084 = vsel %vm2058, %v2047, 0.0
  %v2085 = vadd.f32 %v2083, %v2084
  %v2086 = vsel %vm2058, %v2048, 0.0
  %v2087 = vadd.f32 %v2085, %v2086
  %v2088 = vsel %vm2058, %v2049, 0.0
  %v2089 = vadd.f32 %v2087, %v2088
  %v2090 = vsel %vm2058, %v2050, 0.0
  %v2091 = vadd.f32 %v2089, %v2090
  %v2092 = vsel %vm2058, %v2051, 0.0
  %v2093 = vadd.f32 %v2091, %v2092
  %v2094 = vsel %vm2058, %v2052, 0.0
  %v2095 = vadd.f32 %v2093, %v2094
  %v2096 = vsel %vm2058, %v2053, 0.0
  %v2097 = vadd.f32 %v2095, %v2096
  %v2098 = vsel %vm2058, %v2054, 0.0
  %v2099 = vadd.f32 %v2097, %v2098
  %v2100 = vsel %vm2058, %v2055, 0.0
  %v2101 = vadd.f32 %v2099, %v2100
  %v2102 = vsel %vm2058, %v2056, 0.0
  %v2103 = vadd.f32 %v2101, %v2102
  %v2104 = vsel %vm2058, %v2057, 0.0
  %v2105 = vadd.f32 %v2103, %v2104
  %v2106 = vrot.slane %v2105, 4
  %v2107 = vadd.f32 %v2105, %v2106
  %v2108 = vrot.slane %v2107, 2
  %v2109 = vadd.f32 %v2107, %v2108
  %v2110 = vrot.slane %v2109, 1
  %v2111 = vadd.f32 %v2109, %v2110
  %vm2112 = vcmask 57344
  %2113 = vst.msk [vmem:[%s3] sm:$0x1] %vm2112, %v2111
  %v2114 = vmul.f32 %v2042, %v2042
  %v2115 = vmul.f32 %v2043, %v2043
  %v2116 = vmul.f32 %v2044, %v2044
  %v2117 = vmul.f32 %v2045, %v2045
  %v2118 = vmul.f32 %v2046, %v2046
  %v2119 = vmul.f32 %v2047, %v2047
  %v2120 = vmul.f32 %v2048, %v2048
  %v2121 = vmul.f32 %v2049, %v2049
  %v2122 = vmul.f32 %v2050, %v2050
  %v2123 = vmul.f32 %v2051, %v2051
  %v2124 = vmul.f32 %v2052, %v2052
  %v2125 = vmul.f32 %v2053, %v2053
  %v2126 = vmul.f32 %v2054, %v2054
  %v2127 = vmul.f32 %v2055, %v2055
  %v2128 = vmul.f32 %v2056, %v2056
  %v2129 = vmul.f32 %v2057, %v2057
  %v2130 = vsel %vm2058, %v2114, 0.0
  %v2131 = vsel %vm2058, %v2115, 0.0
  %v2132 = vadd.f32 %v2130, %v2131
  %v2133 = vsel %vm2058, %v2116, 0.0
  %v2134 = vadd.f32 %v2132, %v2133
  %v2135 = vsel %vm2058, %v2117, 0.0
  %v2136 = vadd.f32 %v2134, %v2135
  %v2137 = vsel %vm2058, %v2118, 0.0
  %v2138 = vadd.f32 %v2136, %v2137
  %v2139 = vsel %vm2058, %v2119, 0.0
  %v2140 = vadd.f32 %v2138, %v2139
  %v2141 = vsel %vm2058, %v2120, 0.0
  %v2142 = vadd.f32 %v2140, %v2141
  %v2143 = vsel %vm2058, %v2121, 0.0
  %v2144 = vadd.f32 %v2142, %v2143
  %v2145 = vsel %vm2058, %v2122, 0.0
  %v2146 = vadd.f32 %v2144, %v2145
  %v2147 = vsel %vm2058, %v2123, 0.0
  %v2148 = vadd.f32 %v2146, %v2147
  %v2149 = vsel %vm2058, %v2124, 0.0
  %v2150 = vadd.f32 %v2148, %v2149
  %v2151 = vsel %vm2058, %v2125, 0.0
  %v2152 = vadd.f32 %v2150, %v2151
  %v2153 = vsel %vm2058, %v2126, 0.0
  %v2154 = vadd.f32 %v2152, %v2153
  %v2155 = vsel %vm2058, %v2127, 0.0
  %v2156 = vadd.f32 %v2154, %v2155
  %v2157 = vsel %vm2058, %v2128, 0.0
  %v2158 = vadd.f32 %v2156, %v2157
  %v2159 = vsel %vm2058, %v2129, 0.0
  %v2160 = vadd.f32 %v2158, %v2159
  %v2161 = vrot.slane %v2160, 4
  %v2162 = vadd.f32 %v2160, %v2161
  %v2163 = vrot.slane %v2162, 2
  %v2164 = vadd.f32 %v2162, %v2163
  %v2165 = vrot.slane %v2164, 1
  %v2166 = vadd.f32 %v2164, %v2165
  %2167 = vst.msk [vmem:[%s4] sm:$0x1] %vm2112, %v2166
  // Predicated region
  $region10: #{plain_block.2} parent=0 // pred_check
    _
  $region11: #{plain_block.2} parent=0 // pred_check_branch
    %2169 = sbr.rel (0) target = $region13
  $region12: #{plain_block.2} parent=0 // pred_region
    _
  $region13: #{plain_block.2} parent=0 // pred_fallthru
    _
  // Predicated region
  $region14: #{plain_block.2} parent=0 // pred_check
    _
  $region15: #{plain_block.2} parent=0 // pred_check_branch
    %2171 = sbr.rel (0) target = $region17
  $region16: #{plain_block.2} parent=0 // pred_region
    _
  $region17: #{plain_block.2} parent=0 // pred_fallthru
    _
  // Predicated region
  $region18: #{plain_block.2} parent=0 // pred_check
    _
  $region19: #{plain_block.2} parent=0 // pred_check_branch
    %2173 = sbr.rel (0) target = $region21
  $region20: #{plain_block.2} parent=0 // pred_region
    _
  $region21: #{plain_block.2} parent=0 // pred_fallthru
    _
  // Predicated region
  $region22: #{plain_block.2} parent=0 // pred_check
    _
  $region23: #{plain_block.2} parent=0 // pred_check_branch
    %2175 = sbr.rel (0) target = $region25
  $region24: #{plain_block.2} parent=0 // pred_region
    _
  $region25: #{plain_block.2} parent=0 // pred_fallthru
    _
  // Predicated region
  $region26: #{plain_block.2} parent=0 // pred_check
    _
  $region27: #{plain_block.2} parent=0 // pred_check_branch
    %2177 = sbr.rel (0) target = $region29
  $region28: #{plain_block.2} parent=0 // pred_region
    _
  $region29: #{plain_block.2} parent=0 // pred_fallthru
    _
  // Predicated region
  $region30: #{plain_block.2} parent=0 // pred_check
    _
  $region31: #{plain_block.2} parent=0 // pred_check_branch
    %2179 = sbr.rel (0) target = $region33
  $region32: #{plain_block.2} parent=0 // pred_region
    _
  $region33: #{plain_block.2} parent=0 // pred_fallthru
    _

// kernel: plain_block.3
$region0: #{plain_block.3}
  #allocation0 [shape = 'u32[]', space=smem, size = 0x4, offset = 0x4, fixed_abs, tag = 'smem constant byte address 0x4 - core index']
  #allocation1 [shape = 'u32[144,128]{1,0:T(1,128)}', space=vmem, size = 0x12000, scoped, tag = 'internal scratch']
  %s0 = inlined_call_operand.vmem [shape: f32[2,1,10,10,8], index: 0, kind: input, shape index: {}]
  %s1 = inlined_call_operand.vmem [shape: f32[9,8,8], index: 1, kind: input, shape index: {}]
  %s2 = inlined_call_operand.vmem [shape: f32[2,64,8], index: 2, kind: output, shape index: {0}]
  %s3 = inlined_call_operand.vmem [shape: f32[1,1,8], index: 3, kind: output, shape index: {1}]
  %s4 = inlined_call_operand.vmem [shape: f32[1,1,8], index: 4, kind: output, shape index: {2}]
  %5 = xla_tuple %s2, %s3, %s4
  %s6 = sld [smem:[#allocation0]]
  $region34: #{plain_block.3} parent=0
    _
  %s8 = ssub.s32 1, %s6
  %s9 = scalar_select 0, %s8, %s6
  // Predicated region
  $region2: #{plain_block.3} parent=0 // pred_check
    _
  $region3: #{plain_block.3} parent=0 // pred_check_branch
    %11 = sbr.rel (0) target = $region5
  $region4: #{plain_block.3} parent=0 // pred_region
    _
  $region5: #{plain_block.3} parent=0 // pred_fallthru
    _
  // Predicated region
  $region6: #{plain_block.3} parent=0 // pred_check
    _
  $region7: #{plain_block.3} parent=0 // pred_check_branch
    %13 = sbr.rel (0) target = $region9
  $region8: #{plain_block.3} parent=0 // pred_region
    _
  $region9: #{plain_block.3} parent=0 // pred_fallthru
    _
  %v14 = vld [vmem:[%s0] sm:$0xff]
  %v15 = vld [vmem:[%s0 + $0x10] sm:$0xff]
  %v16 = vld [vmem:[%s0 + $0x20] sm:$0xff]
  %v17 = vld [vmem:[%s0 + $0x30] sm:$0xff]
  %v18 = vld [vmem:[%s0 + $0x40] sm:$0xff]
  %v19 = vld [vmem:[%s0 + $0x50] sm:$0xff]
  %v20 = vld [vmem:[%s0 + $0x60] sm:$0xff]
  %v21 = vld [vmem:[%s0 + $0x70] sm:$0xff]
  %v22 = vld [vmem:[%s0 + $0xa0] sm:$0xff]
  %v23 = vld [vmem:[%s0 + $0xb0] sm:$0xff]
  %v24 = vld [vmem:[%s0 + $0xc0] sm:$0xff]
  %v25 = vld [vmem:[%s0 + $0xd0] sm:$0xff]
  %v26 = vld [vmem:[%s0 + $0xe0] sm:$0xff]
  %v27 = vld [vmem:[%s0 + $0xf0] sm:$0xff]
  %v28 = vld [vmem:[%s0 + $0x100] sm:$0xff]
  %v29 = vld [vmem:[%s0 + $0x110] sm:$0xff]
  %v30 = vld [vmem:[%s1] sm:$0xff]
  %v31 = vld [vmem:[%s0 + $0x1] sm:$0xff]
  %v32 = vld [vmem:[%s0 + $0x11] sm:$0xff]
  %v33 = vld [vmem:[%s0 + $0x21] sm:$0xff]
  %v34 = vld [vmem:[%s0 + $0x31] sm:$0xff]
  %v35 = vld [vmem:[%s0 + $0x41] sm:$0xff]
  %v36 = vld [vmem:[%s0 + $0x51] sm:$0xff]
  %v37 = vld [vmem:[%s0 + $0x61] sm:$0xff]
  %v38 = vld [vmem:[%s0 + $0x71] sm:$0xff]
  %v39 = vld [vmem:[%s0 + $0xa1] sm:$0xff]
  %v40 = vld [vmem:[%s0 + $0xb1] sm:$0xff]
  %v41 = vld [vmem:[%s0 + $0xc1] sm:$0xff]
  %v42 = vld [vmem:[%s0 + $0xd1] sm:$0xff]
  %v43 = vld [vmem:[%s0 + $0xe1] sm:$0xff]
  %v44 = vld [vmem:[%s0 + $0xf1] sm:$0xff]
  %v45 = vld [vmem:[%s0 + $0x101] sm:$0xff]
  %v46 = vld [vmem:[%s0 + $0x111] sm:$0xff]
  %s47 = scalar_lea.vmem %s1, 8
  %v48 = vld [vmem:[%s47] sm:$0xff]
  %vm49 = vcmask 64512
  %v51 = vsel %vm49, %v31, 0
  %v54 = vsel %vm49, %v32, 0
  %v57 = vsel %vm49, %v33, 0
  %v60 = vsel %vm49, %v34, 0
  %v63 = vsel %vm49, %v35, 0
  %v66 = vsel %vm49, %v36, 0
  %v69 = vsel %vm49, %v37, 0
  %v72 = vsel %vm49, %v38, 0
  %v75 = vsel %vm49, %v39, 0
  %v78 = vsel %vm49, %v40, 0
  %v81 = vsel %vm49, %v41, 0
  %v84 = vsel %vm49, %v42, 0
  %v87 = vsel %vm49, %v43, 0
  %v90 = vsel %vm49, %v44, 0
  %v93 = vsel %vm49, %v45, 0
  %v96 = vsel %vm49, %v46, 0
  %98 = vmatprep.subr.mxu0 0.0
  %99 = vmatpush1.msra.mxu0 %v48
  %100 = vmatprep.subr.mxu0 0.0
  %101 = vmatpush1.msra.mxu0 0.0
  %102 = vmatprep.subr.mxu0 0.0
  %103 = vmatpush1.msra.mxu0 0.0
  %104 = vmatprep.subr.mxu0 0.0
  %105 = vmatpush1.msra.mxu0 0.0
  %106 = vmatprep.subr.mxu0 0.0
  %107 = vmatpush1.msra.mxu0 0.0
  %108 = vmatprep.subr.mxu0 0.0
  %109 = vmatpush1.msra.mxu0 0.0
  %110 = vmatprep.subr.mxu0 0.0
  %111 = vmatpush1.msra.mxu0 0.0
  %112 = vmatprep.subr.mxu0 0.0
  %113 = vmatpush1.msra.mxu0 0.0
  %114 = vmatprep.subr.mxu0 0.0
  %115 = vmatpush1.msra.mxu0 0.0
  %116 = vmatprep.subr.mxu0 0.0
  %117 = vmatpush1.msra.mxu0 0.0
  %118 = vmatprep.subr.mxu0 0.0
  %119 = vmatpush1.msra.mxu0 0.0
  %120 = vmatprep.subr.mxu0 0.0
  %121 = vmatpush1.msra.mxu0 0.0
  %122 = vmatprep.subr.mxu0 0.0
  %123 = vmatpush1.msra.mxu0 0.0
  %124 = vmatprep.subr.mxu0 0.0
  %125 = vmatpush1.msra.mxu0 0.0
  %126 = vmatprep.subr.mxu0 0.0
  %127 = vmatpush1.msra.mxu0 0.0
  %128 = vmatprep.subr.mxu0 0.0
  %129 = vmatpush1.msra.mxu0 0.0
  %130 = vmatprep.subr.mxu0 0.0
  %131 = vmatpush1.msra.mxu0 0.0
  %132 = vmatprep.subr.mxu0 0.0
  %133 = vmatpush1.msra.mxu0 0.0
  %134 = vmatprep.subr.mxu0 0.0
  %135 = vmatpush1.msra.mxu0 0.0
  %136 = vmatprep.subr.mxu0 0.0
  %137 = vmatpush1.msra.mxu0 0.0
  %138 = vmatprep.subr.mxu0 0.0
  %139 = vmatpush1.msra.mxu0 0.0
  %140 = vmatprep.subr.mxu0 0.0
  %141 = vmatpush1.msra.mxu0 0.0
  %142 = vmatprep.subr.mxu0 0.0
  %143 = vmatpush1.msra.mxu0 0.0
  %144 = vmatprep.subr.mxu0 0.0
  %145 = vmatpush1.msra.mxu0 0.0
  %146 = vmatprep.subr.mxu0 0.0
  %147 = vmatpush1.msra.mxu0 0.0
  %148 = vmatprep.subr.mxu0 0.0
  %149 = vmatpush1.msra.mxu0 0.0
  %150 = vmatprep.subr.mxu0 0.0
  %151 = vmatpush1.msra.mxu0 0.0
  %152 = vmatprep.subr.mxu0 0.0
  %153 = vmatpush1.msra.mxu0 0.0
  %154 = vmatprep.subr.mxu0 0.0
  %155 = vmatpush1.msra.mxu0 0.0
  %156 = vmatprep.subr.mxu0 0.0
  %157 = vmatpush1.msra.mxu0 0.0
  %158 = vmatprep.subr.mxu0 0.0
  %159 = vmatpush1.msra.mxu0 0.0
  %160 = vmatprep.subr.mxu0 0.0
  %161 = vmatpush1.msra.mxu0 0.0
  %162 = vmatprep.mubr.f32.mxu0 0.0
  %163 = vmatmul.mubr.f32.gmra.mrb[0].mxu0 %v51
  %v164 = vpop.f32.mrb[0].mxu0
  %v165 = vadd.f32 0.0, %v164
  %v166 = vpop.f32.mrb[0].mxu0
  %167 = vmatprep.mubr.f32.mxu0 0.0
  %168 = vmatmul.mubr.f32.gmra.mrb[0].mxu0 %v54
  %v169 = vpop.f32.mrb[0].mxu0
  %v170 = vadd.f32 0.0, %v169
  %v171 = vpop.f32.mrb[0].mxu0
  %172 = vmatprep.mubr.f32.mxu0 0.0
  %173 = vmatmul.mubr.f32.gmra.mrb[0].mxu0 %v57
  %v174 = vpop.f32.mrb[0].mxu0
  %v175 = vadd.f32 0.0, %v174
  %v176 = vpop.f32.mrb[0].mxu0
  %177 = vmatprep.mubr.f32.mxu0 0.0
  %178 = vmatmul.mubr.f32.gmra.mrb[0].mxu0 %v60
  %v179 = vpop.f32.mrb[0].mxu0
  %v180 = vadd.f32 0.0, %v179
  %v181 = vpop.f32.mrb[0].mxu0
  %182 = vmatprep.mubr.f32.mxu0 0.0
  %183 = vmatmul.mubr.f32.gmra.mrb[0].mxu0 %v63
  %v184 = vpop.f32.mrb[0].mxu0
  %v185 = vadd.f32 0.0, %v184
  %v186 = vpop.f32.mrb[0].mxu0
  %187 = vmatprep.mubr.f32.mxu0 0.0
  %188 = vmatmul.mubr.f32.gmra.mrb[0].mxu0 %v66
  %v189 = vpop.f32.mrb[0].mxu0
  %v190 = vadd.f32 0.0, %v189
  %v191 = vpop.f32.mrb[0].mxu0
  %192 = vmatprep.mubr.f32.mxu0 0.0
  %193 = vmatmul.mubr.f32.gmra.mrb[0].mxu0 %v69
  %v194 = vpop.f32.mrb[0].mxu0
  %v195 = vadd.f32 0.0, %v194
  %v196 = vpop.f32.mrb[0].mxu0
  %197 = vmatprep.mubr.f32.mxu0 0.0
  %198 = vmatmul.mubr.f32.gmra.mrb[0].mxu0 %v72
  %v199 = vpop.f32.mrb[0].mxu0
  %v200 = vadd.f32 0.0, %v199
  %v201 = vpop.f32.mrb[0].mxu0
  %202 = vmatprep.mubr.f32.mxu0 0.0
  %203 = vmatmul.mubr.f32.gmra.mrb[0].mxu0 %v75
  %v204 = vpop.f32.mrb[0].mxu0
  %v205 = vadd.f32 0.0, %v204
  %v206 = vpop.f32.mrb[0].mxu0
  %207 = vmatprep.mubr.f32.mxu0 0.0
  %208 = vmatmul.mubr.f32.gmra.mrb[0].mxu0 %v78
  %v209 = vpop.f32.mrb[0].mxu0
  %v210 = vadd.f32 0.0, %v209
  %v211 = vpop.f32.mrb[0].mxu0
  %212 = vmatprep.mubr.f32.mxu0 0.0
  %213 = vmatmul.mubr.f32.gmra.mrb[0].mxu0 %v81
  %v214 = vpop.f32.mrb[0].mxu0
  %v215 = vadd.f32 0.0, %v214
  %v216 = vpop.f32.mrb[0].mxu0
  %217 = vmatprep.mubr.f32.mxu0 0.0
  %218 = vmatmul.mubr.f32.gmra.mrb[0].mxu0 %v84
  %v219 = vpop.f32.mrb[0].mxu0
  %v220 = vadd.f32 0.0, %v219
  %v221 = vpop.f32.mrb[0].mxu0
  %222 = vmatprep.mubr.f32.mxu0 0.0
  %223 = vmatmul.mubr.f32.gmra.mrb[0].mxu0 %v87
  %v224 = vpop.f32.mrb[0].mxu0
  %v225 = vadd.f32 0.0, %v224
  %v226 = vpop.f32.mrb[0].mxu0
  %227 = vmatprep.mubr.f32.mxu0 0.0
  %228 = vmatmul.mubr.f32.gmra.mrb[0].mxu0 %v90
  %v229 = vpop.f32.mrb[0].mxu0
  %v230 = vadd.f32 0.0, %v229
  %v231 = vpop.f32.mrb[0].mxu0
  %232 = vmatprep.mubr.f32.mxu0 0.0
  %233 = vmatmul.mubr.f32.gmra.mrb[0].mxu0 %v93
  %v234 = vpop.f32.mrb[0].mxu0
  %v235 = vadd.f32 0.0, %v234
  %v236 = vpop.f32.mrb[0].mxu0
  %237 = vmatprep.mubr.f32.mxu0 0.0
  %238 = vmatmul.mubr.f32.gmra.mrb[0].mxu0 %v96
  %v239 = vpop.f32.mrb[0].mxu0
  %v240 = vadd.f32 0.0, %v239
  %v241 = vpop.f32.mrb[0].mxu0
  %242 = vdwg.mxu0
  %v244 = vsel %vm49, %v14, 0
  %v247 = vsel %vm49, %v15, 0
  %v250 = vsel %vm49, %v16, 0
  %v253 = vsel %vm49, %v17, 0
  %v256 = vsel %vm49, %v18, 0
  %v259 = vsel %vm49, %v19, 0
  %v262 = vsel %vm49, %v20, 0
  %v265 = vsel %vm49, %v21, 0
  %v268 = vsel %vm49, %v22, 0
  %v271 = vsel %vm49, %v23, 0
  %v274 = vsel %vm49, %v24, 0
  %v277 = vsel %vm49, %v25, 0
  %v280 = vsel %vm49, %v26, 0
  %v283 = vsel %vm49, %v27, 0
  %v286 = vsel %vm49, %v28, 0
  %v289 = vsel %vm49, %v29, 0
  %291 = vmatprep.subr.mxu0 0.0
  %292 = vmatpush1.msra.mxu0 %v30
  %293 = vmatprep.subr.mxu0 0.0
  %294 = vmatpush1.msra.mxu0 0.0
  %295 = vmatprep.subr.mxu0 0.0
  %296 = vmatpush1.msra.mxu0 0.0
  %297 = vmatprep.subr.mxu0 0.0
  %298 = vmatpush1.msra.mxu0 0.0
  %299 = vmatprep.subr.mxu0 0.0
  %300 = vmatpush1.msra.mxu0 0.0
  %301 = vmatprep.subr.mxu0 0.0
  %302 = vmatpush1.msra.mxu0 0.0
  %303 = vmatprep.subr.mxu0 0.0
  %304 = vmatpush1.msra.mxu0 0.0
  %305 = vmatprep.subr.mxu0 0.0
  %306 = vmatpush1.msra.mxu0 0.0
  %307 = vmatprep.subr.mxu0 0.0
  %308 = vmatpush1.msra.mxu0 0.0
  %309 = vmatprep.subr.mxu0 0.0
  %310 = vmatpush1.msra.mxu0 0.0
  %311 = vmatprep.subr.mxu0 0.0
  %312 = vmatpush1.msra.mxu0 0.0
  %313 = vmatprep.subr.mxu0 0.0
  %314 = vmatpush1.msra.mxu0 0.0
  %315 = vmatprep.subr.mxu0 0.0
  %316 = vmatpush1.msra.mxu0 0.0
  %317 = vmatprep.subr.mxu0 0.0
  %318 = vmatpush1.msra.mxu0 0.0
  %319 = vmatprep.subr.mxu0 0.0
  %320 = vmatpush1.msra.mxu0 0.0
  %321 = vmatprep.subr.mxu0 0.0
  %322 = vmatpush1.msra.mxu0 0.0
  %323 = vmatprep.subr.mxu0 0.0
  %324 = vmatpush1.msra.mxu0 0.0
  %325 = vmatprep.subr.mxu0 0.0
  %326 = vmatpush1.msra.mxu0 0.0
  %327 = vmatprep.subr.mxu0 0.0
  %328 = vmatpush1.msra.mxu0 0.0
  %329 = vmatprep.subr.mxu0 0.0
  %330 = vmatpush1.msra.mxu0 0.0
  %331 = vmatprep.subr.mxu0 0.0
  %332 = vmatpush1.msra.mxu0 0.0
  %333 = vmatprep.subr.mxu0 0.0
  %334 = vmatpush1.msra.mxu0 0.0
  %335 = vmatprep.subr.mxu0 0.0
  %336 = vmatpush1.msra.mxu0 0.0
  %337 = vmatprep.subr.mxu0 0.0
  %338 = vmatpush1.msra.mxu0 0.0
  %339 = vmatprep.subr.mxu0 0.0
  %340 = vmatpush1.msra.mxu0 0.0
  %341 = vmatprep.subr.mxu0 0.0
  %342 = vmatpush1.msra.mxu0 0.0
  %343 = vmatprep.subr.mxu0 0.0
  %344 = vmatpush1.msra.mxu0 0.0
  %345 = vmatprep.subr.mxu0 0.0
  %346 = vmatpush1.msra.mxu0 0.0
  %347 = vmatprep.subr.mxu0 0.0
  %348 = vmatpush1.msra.mxu0 0.0
  %349 = vmatprep.subr.mxu0 0.0
  %350 = vmatpush1.msra.mxu0 0.0
  %351 = vmatprep.subr.mxu0 0.0
  %352 = vmatpush1.msra.mxu0 0.0
  %353 = vmatprep.subr.mxu0 0.0
  %354 = vmatpush1.msra.mxu0 0.0
  %355 = vmatprep.mubr.f32.mxu0 0.0
  %356 = vmatmul.mubr.f32.gmra.mrb[0].mxu0 %v244
  %v357 = vpop.f32.mrb[0].mxu0
  %v358 = vadd.f32 %v165, %v357
  %v359 = vpop.f32.mrb[0].mxu0
  %360 = vmatprep.mubr.f32.mxu0 0.0
  %361 = vmatmul.mubr.f32.gmra.mrb[0].mxu0 %v247
  %v362 = vpop.f32.mrb[0].mxu0
  %v363 = vadd.f32 %v170, %v362
  %v364 = vpop.f32.mrb[0].mxu0
  %365 = vmatprep.mubr.f32.mxu0 0.0
  %366 = vmatmul.mubr.f32.gmra.mrb[0].mxu0 %v250
  %v367 = vpop.f32.mrb[0].mxu0
  %v368 = vadd.f32 %v175, %v367
  %v369 = vpop.f32.mrb[0].mxu0
  %370 = vmatprep.mubr.f32.mxu0 0.0
  %371 = vmatmul.mubr.f32.gmra.mrb[0].mxu0 %v253
  %v372 = vpop.f32.mrb[0].mxu0
  %v373 = vadd.f32 %v180, %v372
  %v374 = vpop.f32.mrb[0].mxu0
  %375 = vmatprep.mubr.f32.mxu0 0.0
  %376 = vmatmul.mubr.f32.gmra.mrb[0].mxu0 %v256
  %v377 = vpop.f32.mrb[0].mxu0
  %v378 = vadd.f32 %v185, %v377
  %v379 = vpop.f32.mrb[0].mxu0
  %380 = vmatprep.mubr.f32.mxu0 0.0
  %381 = vmatmul.mubr.f32.gmra.mrb[0].mxu0 %v259
  %v382 = vpop.f32.mrb[0].mxu0
  %v383 = vadd.f32 %v190, %v382
  %v384 = vpop.f32.mrb[0].mxu0
  %385 = vmatprep.mubr.f32.mxu0 0.0
  %386 = vmatmul.mubr.f32.gmra.mrb[0].mxu0 %v262
  %v387 = vpop.f32.mrb[0].mxu0
  %v388 = vadd.f32 %v195, %v387
  %v389 = vpop.f32.mrb[0].mxu0
  %390 = vmatprep.mubr.f32.mxu0 0.0
  %391 = vmatmul.mubr.f32.gmra.mrb[0].mxu0 %v265
  %v392 = vpop.f32.mrb[0].mxu0
  %v393 = vadd.f32 %v200, %v392
  %v394 = vpop.f32.mrb[0].mxu0
  %395 = vmatprep.mubr.f32.mxu0 0.0
  %396 = vmatmul.mubr.f32.gmra.mrb[0].mxu0 %v268
  %v397 = vpop.f32.mrb[0].mxu0
  %v398 = vadd.f32 %v205, %v397
  %v399 = vpop.f32.mrb[0].mxu0
  %400 = vmatprep.mubr.f32.mxu0 0.0
  %401 = vmatmul.mubr.f32.gmra.mrb[0].mxu0 %v271
  %v402 = vpop.f32.mrb[0].mxu0
  %v403 = vadd.f32 %v210, %v402
  %v404 = vpop.f32.mrb[0].mxu0
  %405 = vmatprep.mubr.f32.mxu0 0.0
  %406 = vmatmul.mubr.f32.gmra.mrb[0].mxu0 %v274
  %v407 = vpop.f32.mrb[0].mxu0
  %v408 = vadd.f32 %v215, %v407
  %v409 = vpop.f32.mrb[0].mxu0
  %410 = vmatprep.mubr.f32.mxu0 0.0
  %411 = vmatmul.mubr.f32.gmra.mrb[0].mxu0 %v277
  %v412 = vpop.f32.mrb[0].mxu0
  %v413 = vadd.f32 %v220, %v412
  %v414 = vpop.f32.mrb[0].mxu0
  %415 = vmatprep.mubr.f32.mxu0 0.0
  %416 = vmatmul.mubr.f32.gmra.mrb[0].mxu0 %v280
  %v417 = vpop.f32.mrb[0].mxu0
  %v418 = vadd.f32 %v225, %v417
  %v419 = vpop.f32.mrb[0].mxu0
  %420 = vmatprep.mubr.f32.mxu0 0.0
  %421 = vmatmul.mubr.f32.gmra.mrb[0].mxu0 %v283
  %v422 = vpop.f32.mrb[0].mxu0
  %v423 = vadd.f32 %v230, %v422
  %v424 = vpop.f32.mrb[0].mxu0
  %425 = vmatprep.mubr.f32.mxu0 0.0
  %426 = vmatmul.mubr.f32.gmra.mrb[0].mxu0 %v286
  %v427 = vpop.f32.mrb[0].mxu0
  %v428 = vadd.f32 %v235, %v427
  %v429 = vpop.f32.mrb[0].mxu0
  %430 = vmatprep.mubr.f32.mxu0 0.0
  %431 = vmatmul.mubr.f32.gmra.mrb[0].mxu0 %v289
  %v432 = vpop.f32.mrb[0].mxu0
  %v433 = vadd.f32 %v240, %v432
  %v434 = vpop.f32.mrb[0].mxu0
  %435 = vdwg.mxu0
  %v436 = vld [vmem:[%s0 + $0x2] sm:$0xff]
  %v437 = vld [vmem:[%s0 + $0x12] sm:$0xff]
  %v438 = vld [vmem:[%s0 + $0x22] sm:$0xff]
  %v439 = vld [vmem:[%s0 + $0x32] sm:$0xff]
  %v440 = vld [vmem:[%s0 + $0x42] sm:$0xff]
  %v441 = vld [vmem:[%s0 + $0x52] sm:$0xff]
  %v442 = vld [vmem:[%s0 + $0x62] sm:$0xff]
  %v443 = vld [vmem:[%s0 + $0x72] sm:$0xff]
  %v444 = vld [vmem:[%s0 + $0xa2] sm:$0xff]
  %v445 = vld [vmem:[%s0 + $0xb2] sm:$0xff]
  %v446 = vld [vmem:[%s0 + $0xc2] sm:$0xff]
  %v447 = vld [vmem:[%s0 + $0xd2] sm:$0xff]
  %v448 = vld [vmem:[%s0 + $0xe2] sm:$0xff]
  %v449 = vld [vmem:[%s0 + $0xf2] sm:$0xff]
  %v450 = vld [vmem:[%s0 + $0x102] sm:$0xff]
  %v451 = vld [vmem:[%s0 + $0x112] sm:$0xff]
  %s452 = scalar_lea.vmem %s1, 16
  %v453 = vld [vmem:[%s452] sm:$0xff]
  %v455 = vsel %vm49, %v436, 0
  %v458 = vsel %vm49, %v437, 0
  %v461 = vsel %vm49, %v438, 0
  %v464 = vsel %vm49, %v439, 0
  %v467 = vsel %vm49, %v440, 0
  %v470 = vsel %vm49, %v441, 0
  %v473 = vsel %vm49, %v442, 0
  %v476 = vsel %vm49, %v443, 0
  %v479 = vsel %vm49, %v444, 0
  %v482 = vsel %vm49, %v445, 0
  %v485 = vsel %vm49, %v446, 0
  %v488 = vsel %vm49, %v447, 0
  %v491 = vsel %vm49, %v448, 0
  %v494 = vsel %vm49, %v449, 0
  %v497 = vsel %vm49, %v450, 0
  %v500 = vsel %vm49, %v451, 0
  %502 = vmatprep.subr.mxu0 0.0
  %503 = vmatpush1.msra.mxu0 %v453
  %504 = vmatprep.subr.mxu0 0.0
  %505 = vmatpush1.msra.mxu0 0.0
  %506 = vmatprep.subr.mxu0 0.0
  %507 = vmatpush1.msra.mxu0 0.0
  %508 = vmatprep.subr.mxu0 0.0
  %509 = vmatpush1.msra.mxu0 0.0
  %510 = vmatprep.subr.mxu0 0.0
  %511 = vmatpush1.msra.mxu0 0.0
  %512 = vmatprep.subr.mxu0 0.0
  %513 = vmatpush1.msra.mxu0 0.0
  %514 = vmatprep.subr.mxu0 0.0
  %515 = vmatpush1.msra.mxu0 0.0
  %516 = vmatprep.subr.mxu0 0.0
  %517 = vmatpush1.msra.mxu0 0.0
  %518 = vmatprep.subr.mxu0 0.0
  %519 = vmatpush1.msra.mxu0 0.0
  %520 = vmatprep.subr.mxu0 0.0
  %521 = vmatpush1.msra.mxu0 0.0
  %522 = vmatprep.subr.mxu0 0.0
  %523 = vmatpush1.msra.mxu0 0.0
  %524 = vmatprep.subr.mxu0 0.0
  %525 = vmatpush1.msra.mxu0 0.0
  %526 = vmatprep.subr.mxu0 0.0
  %527 = vmatpush1.msra.mxu0 0.0
  %528 = vmatprep.subr.mxu0 0.0
  %529 = vmatpush1.msra.mxu0 0.0
  %530 = vmatprep.subr.mxu0 0.0
  %531 = vmatpush1.msra.mxu0 0.0
  %532 = vmatprep.subr.mxu0 0.0
  %533 = vmatpush1.msra.mxu0 0.0
  %534 = vmatprep.subr.mxu0 0.0
  %535 = vmatpush1.msra.mxu0 0.0
  %536 = vmatprep.subr.mxu0 0.0
  %537 = vmatpush1.msra.mxu0 0.0
  %538 = vmatprep.subr.mxu0 0.0
  %539 = vmatpush1.msra.mxu0 0.0
  %540 = vmatprep.subr.mxu0 0.0
  %541 = vmatpush1.msra.mxu0 0.0
  %542 = vmatprep.subr.mxu0 0.0
  %543 = vmatpush1.msra.mxu0 0.0
  %544 = vmatprep.subr.mxu0 0.0
  %545 = vmatpush1.msra.mxu0 0.0
  %546 = vmatprep.subr.mxu0 0.0
  %547 = vmatpush1.msra.mxu0 0.0
  %548 = vmatprep.subr.mxu0 0.0
  %549 = vmatpush1.msra.mxu0 0.0
  %550 = vmatprep.subr.mxu0 0.0
  %551 = vmatpush1.msra.mxu0 0.0
  %552 = vmatprep.subr.mxu0 0.0
  %553 = vmatpush1.msra.mxu0 0.0
  %554 = vmatprep.subr.mxu0 0.0
  %555 = vmatpush1.msra.mxu0 0.0
  %556 = vmatprep.subr.mxu0 0.0
  %557 = vmatpush1.msra.mxu0 0.0
  %558 = vmatprep.subr.mxu0 0.0
  %559 = vmatpush1.msra.mxu0 0.0
  %560 = vmatprep.subr.mxu0 0.0
  %561 = vmatpush1.msra.mxu0 0.0
  %562 = vmatprep.subr.mxu0 0.0
  %563 = vmatpush1.msra.mxu0 0.0
  %564 = vmatprep.subr.mxu0 0.0
  %565 = vmatpush1.msra.mxu0 0.0
  %566 = vmatprep.mubr.f32.mxu0 0.0
  %567 = vmatmul.mubr.f32.gmra.mrb[0].mxu0 %v455
  %v568 = vpop.f32.mrb[0].mxu0
  %v569 = vadd.f32 0.0, %v568
  %v570 = vpop.f32.mrb[0].mxu0
  %571 = vmatprep.mubr.f32.mxu0 0.0
  %572 = vmatmul.mubr.f32.gmra.mrb[0].mxu0 %v458
  %v573 = vpop.f32.mrb[0].mxu0
  %v574 = vadd.f32 0.0, %v573
  %v575 = vpop.f32.mrb[0].mxu0
  %576 = vmatprep.mubr.f32.mxu0 0.0
  %577 = vmatmul.mubr.f32.gmra.mrb[0].mxu0 %v461
  %v578 = vpop.f32.mrb[0].mxu0
  %v579 = vadd.f32 0.0, %v578
  %v580 = vpop.f32.mrb[0].mxu0
  %581 = vmatprep.mubr.f32.mxu0 0.0
  %582 = vmatmul.mubr.f32.gmra.mrb[0].mxu0 %v464
  %v583 = vpop.f32.mrb[0].mxu0
  %v584 = vadd.f32 0.0, %v583
  %v585 = vpop.f32.mrb[0].mxu0
  %586 = vmatprep.mubr.f32.mxu0 0.0
  %587 = vmatmul.mubr.f32.gmra.mrb[0].mxu0 %v467
  %v588 = vpop.f32.mrb[0].mxu0
  %v589 = vadd.f32 0.0, %v588
  %v590 = vpop.f32.mrb[0].mxu0
  %591 = vmatprep.mubr.f32.mxu0 0.0
  %592 = vmatmul.mubr.f32.gmra.mrb[0].mxu0 %v470
  %v593 = vpop.f32.mrb[0].mxu0
  %v594 = vadd.f32 0.0, %v593
  %v595 = vpop.f32.mrb[0].mxu0
  %596 = vmatprep.mubr.f32.mxu0 0.0
  %597 = vmatmul.mubr.f32.gmra.mrb[0].mxu0 %v473
  %v598 = vpop.f32.mrb[0].mxu0
  %v599 = vadd.f32 0.0, %v598
  %v600 = vpop.f32.mrb[0].mxu0
  %601 = vmatprep.mubr.f32.mxu0 0.0
  %602 = vmatmul.mubr.f32.gmra.mrb[0].mxu0 %v476
  %v603 = vpop.f32.mrb[0].mxu0
  %v604 = vadd.f32 0.0, %v603
  %v605 = vpop.f32.mrb[0].mxu0
  %606 = vmatprep.mubr.f32.mxu0 0.0
  %607 = vmatmul.mubr.f32.gmra.mrb[0].mxu0 %v479
  %v608 = vpop.f32.mrb[0].mxu0
  %v609 = vadd.f32 0.0, %v608
  %v610 = vpop.f32.mrb[0].mxu0
  %611 = vmatprep.mubr.f32.mxu0 0.0
  %612 = vmatmul.mubr.f32.gmra.mrb[0].mxu0 %v482
  %v613 = vpop.f32.mrb[0].mxu0
  %v614 = vadd.f32 0.0, %v613
  %v615 = vpop.f32.mrb[0].mxu0
  %616 = vmatprep.mubr.f32.mxu0 0.0
  %617 = vmatmul.mubr.f32.gmra.mrb[0].mxu0 %v485
  %v618 = vpop.f32.mrb[0].mxu0
  %v619 = vadd.f32 0.0, %v618
  %v620 = vpop.f32.mrb[0].mxu0
  %621 = vmatprep.mubr.f32.mxu0 0.0
  %622 = vmatmul.mubr.f32.gmra.mrb[0].mxu0 %v488
  %v623 = vpop.f32.mrb[0].mxu0
  %v624 = vadd.f32 0.0, %v623
  %v625 = vpop.f32.mrb[0].mxu0
  %626 = vmatprep.mubr.f32.mxu0 0.0
  %627 = vmatmul.mubr.f32.gmra.mrb[0].mxu0 %v491
  %v628 = vpop.f32.mrb[0].mxu0
  %v629 = vadd.f32 0.0, %v628
  %v630 = vpop.f32.mrb[0].mxu0
  %631 = vmatprep.mubr.f32.mxu0 0.0
  %632 = vmatmul.mubr.f32.gmra.mrb[0].mxu0 %v494
  %v633 = vpop.f32.mrb[0].mxu0
  %v634 = vadd.f32 0.0, %v633
  %v635 = vpop.f32.mrb[0].mxu0
  %636 = vmatprep.mubr.f32.mxu0 0.0
  %637 = vmatmul.mubr.f32.gmra.mrb[0].mxu0 %v497
  %v638 = vpop.f32.mrb[0].mxu0
  %v639 = vadd.f32 0.0, %v638
  %v640 = vpop.f32.mrb[0].mxu0
  %641 = vmatprep.mubr.f32.mxu0 0.0
  %642 = vmatmul.mubr.f32.gmra.mrb[0].mxu0 %v500
  %v643 = vpop.f32.mrb[0].mxu0
  %v644 = vadd.f32 0.0, %v643
  %v645 = vpop.f32.mrb[0].mxu0
  %646 = vdwg.mxu0
  %v647 = vadd.f32 %v358, %v569
  %v648 = vadd.f32 %v363, %v574
  %v649 = vadd.f32 %v368, %v579
  %v650 = vadd.f32 %v373, %v584
  %v651 = vadd.f32 %v378, %v589
  %v652 = vadd.f32 %v383, %v594
  %v653 = vadd.f32 %v388, %v599
  %v654 = vadd.f32 %v393, %v604
  %v655 = vadd.f32 %v398, %v609
  %v656 = vadd.f32 %v403, %v614
  %v657 = vadd.f32 %v408, %v619
  %v658 = vadd.f32 %v413, %v624
  %v659 = vadd.f32 %v418, %v629
  %v660 = vadd.f32 %v423, %v634
  %v661 = vadd.f32 %v428, %v639
  %v662 = vadd.f32 %v433, %v644
  %s663 = scalar_lea.vmem %s0, 16
  %v664 = vld [vmem:[%s663] sm:$0xff]
  %v665 = vld [vmem:[%s663 + $0x10] sm:$0xff]
  %v666 = vld [vmem:[%s663 + $0x20] sm:$0xff]
  %v667 = vld [vmem:[%s663 + $0x30] sm:$0xff]
  %v668 = vld [vmem:[%s663 + $0x40] sm:$0xff]
  %v669 = vld [vmem:[%s663 + $0x50] sm:$0xff]
  %v670 = vld [vmem:[%s663 + $0x60] sm:$0xff]
  %v671 = vld [vmem:[%s663 + $0x70] sm:$0xff]
  %v672 = vld [vmem:[%s663 + $0xa0] sm:$0xff]
  %v673 = vld [vmem:[%s663 + $0xb0] sm:$0xff]
  %v674 = vld [vmem:[%s663 + $0xc0] sm:$0xff]
  %v675 = vld [vmem:[%s663 + $0xd0] sm:$0xff]
  %v676 = vld [vmem:[%s663 + $0xe0] sm:$0xff]
  %v677 = vld [vmem:[%s663 + $0xf0] sm:$0xff]
  %v678 = vld [vmem:[%s663 + $0x100] sm:$0xff]
  %v679 = vld [vmem:[%s663 + $0x110] sm:$0xff]
  %s680 = scalar_lea.vmem %s1, 24
  %v681 = vld [vmem:[%s680] sm:$0xff]
  %v683 = vsel %vm49, %v664, 0
  %v686 = vsel %vm49, %v665, 0
  %v689 = vsel %vm49, %v666, 0
  %v692 = vsel %vm49, %v667, 0
  %v695 = vsel %vm49, %v668, 0
  %v698 = vsel %vm49, %v669, 0
  %v701 = vsel %vm49, %v670, 0
  %v704 = vsel %vm49, %v671, 0
  %v707 = vsel %vm49, %v672, 0
  %v710 = vsel %vm49, %v673, 0
  %v713 = vsel %vm49, %v674, 0
  %v716 = vsel %vm49, %v675, 0
  %v719 = vsel %vm49, %v676, 0
  %v722 = vsel %vm49, %v677, 0
  %v725 = vsel %vm49, %v678, 0
  %v728 = vsel %vm49, %v679, 0
  %730 = vmatprep.subr.mxu0 0.0
  %731 = vmatpush1.msra.mxu0 %v681
  %732 = vmatprep.subr.mxu0 0.0
  %733 = vmatpush1.msra.mxu0 0.0
  %734 = vmatprep.subr.mxu0 0.0
  %735 = vmatpush1.msra.mxu0 0.0
  %736 = vmatprep.subr.mxu0 0.0
  %737 = vmatpush1.msra.mxu0 0.0
  %738 = vmatprep.subr.mxu0 0.0
  %739 = vmatpush1.msra.mxu0 0.0
  %740 = vmatprep.subr.mxu0 0.0
  %741 = vmatpush1.msra.mxu0 0.0
  %742 = vmatprep.subr.mxu0 0.0
  %743 = vmatpush1.msra.mxu0 0.0
  %744 = vmatprep.subr.mxu0 0.0
  %745 = vmatpush1.msra.mxu0 0.0
  %746 = vmatprep.subr.mxu0 0.0
  %747 = vmatpush1.msra.mxu0 0.0
  %748 = vmatprep.subr.mxu0 0.0
  %749 = vmatpush1.msra.mxu0 0.0
  %750 = vmatprep.subr.mxu0 0.0
  %751 = vmatpush1.msra.mxu0 0.0
  %752 = vmatprep.subr.mxu0 0.0
  %753 = vmatpush1.msra.mxu0 0.0
  %754 = vmatprep.subr.mxu0 0.0
  %755 = vmatpush1.msra.mxu0 0.0
  %756 = vmatprep.subr.mxu0 0.0
  %757 = vmatpush1.msra.mxu0 0.0
  %758 = vmatprep.subr.mxu0 0.0
  %759 = vmatpush1.msra.mxu0 0.0
  %760 = vmatprep.subr.mxu0 0.0
  %761 = vmatpush1.msra.mxu0 0.0
  %762 = vmatprep.subr.mxu0 0.0
  %763 = vmatpush1.msra.mxu0 0.0
  %764 = vmatprep.subr.mxu0 0.0
  %765 = vmatpush1.msra.mxu0 0.0
  %766 = vmatprep.subr.mxu0 0.0
  %767 = vmatpush1.msra.mxu0 0.0
  %768 = vmatprep.subr.mxu0 0.0
  %769 = vmatpush1.msra.mxu0 0.0
  %770 = vmatprep.subr.mxu0 0.0
  %771 = vmatpush1.msra.mxu0 0.0
  %772 = vmatprep.subr.mxu0 0.0
  %773 = vmatpush1.msra.mxu0 0.0
  %774 = vmatprep.subr.mxu0 0.0
  %775 = vmatpush1.msra.mxu0 0.0
  %776 = vmatprep.subr.mxu0 0.0
  %777 = vmatpush1.msra.mxu0 0.0
  %778 = vmatprep.subr.mxu0 0.0
  %779 = vmatpush1.msra.mxu0 0.0
  %780 = vmatprep.subr.mxu0 0.0
  %781 = vmatpush1.msra.mxu0 0.0
  %782 = vmatprep.subr.mxu0 0.0
  %783 = vmatpush1.msra.mxu0 0.0
  %784 = vmatprep.subr.mxu0 0.0
  %785 = vmatpush1.msra.mxu0 0.0
  %786 = vmatprep.subr.mxu0 0.0
  %787 = vmatpush1.msra.mxu0 0.0
  %788 = vmatprep.subr.mxu0 0.0
  %789 = vmatpush1.msra.mxu0 0.0
  %790 = vmatprep.subr.mxu0 0.0
  %791 = vmatpush1.msra.mxu0 0.0
  %792 = vmatprep.subr.mxu0 0.0
  %793 = vmatpush1.msra.mxu0 0.0
  %794 = vmatprep.mubr.f32.mxu0 0.0
  %795 = vmatmul.mubr.f32.gmra.mrb[0].mxu0 %v683
  %v796 = vpop.f32.mrb[0].mxu0
  %v797 = vadd.f32 0.0, %v796
  %v798 = vpop.f32.mrb[0].mxu0
  %799 = vmatprep.mubr.f32.mxu0 0.0
  %800 = vmatmul.mubr.f32.gmra.mrb[0].mxu0 %v686
  %v801 = vpop.f32.mrb[0].mxu0
  %v802 = vadd.f32 0.0, %v801
  %v803 = vpop.f32.mrb[0].mxu0
  %804 = vmatprep.mubr.f32.mxu0 0.0
  %805 = vmatmul.mubr.f32.gmra.mrb[0].mxu0 %v689
  %v806 = vpop.f32.mrb[0].mxu0
  %v807 = vadd.f32 0.0, %v806
  %v808 = vpop.f32.mrb[0].mxu0
  %809 = vmatprep.mubr.f32.mxu0 0.0
  %810 = vmatmul.mubr.f32.gmra.mrb[0].mxu0 %v692
  %v811 = vpop.f32.mrb[0].mxu0
  %v812 = vadd.f32 0.0, %v811
  %v813 = vpop.f32.mrb[0].mxu0
  %814 = vmatprep.mubr.f32.mxu0 0.0
  %815 = vmatmul.mubr.f32.gmra.mrb[0].mxu0 %v695
  %v816 = vpop.f32.mrb[0].mxu0
  %v817 = vadd.f32 0.0, %v816
  %v818 = vpop.f32.mrb[0].mxu0
  %819 = vmatprep.mubr.f32.mxu0 0.0
  %820 = vmatmul.mubr.f32.gmra.mrb[0].mxu0 %v698
  %v821 = vpop.f32.mrb[0].mxu0
  %v822 = vadd.f32 0.0, %v821
  %v823 = vpop.f32.mrb[0].mxu0
  %824 = vmatprep.mubr.f32.mxu0 0.0
  %825 = vmatmul.mubr.f32.gmra.mrb[0].mxu0 %v701
  %v826 = vpop.f32.mrb[0].mxu0
  %v827 = vadd.f32 0.0, %v826
  %v828 = vpop.f32.mrb[0].mxu0
  %829 = vmatprep.mubr.f32.mxu0 0.0
  %830 = vmatmul.mubr.f32.gmra.mrb[0].mxu0 %v704
  %v831 = vpop.f32.mrb[0].mxu0
  %v832 = vadd.f32 0.0, %v831
  %v833 = vpop.f32.mrb[0].mxu0
  %834 = vmatprep.mubr.f32.mxu0 0.0
  %835 = vmatmul.mubr.f32.gmra.mrb[0].mxu0 %v707
  %v836 = vpop.f32.mrb[0].mxu0
  %v837 = vadd.f32 0.0, %v836
  %v838 = vpop.f32.mrb[0].mxu0
  %839 = vmatprep.mubr.f32.mxu0 0.0
  %840 = vmatmul.mubr.f32.gmra.mrb[0].mxu0 %v710
  %v841 = vpop.f32.mrb[0].mxu0
  %v842 = vadd.f32 0.0, %v841
  %v843 = vpop.f32.mrb[0].mxu0
  %844 = vmatprep.mubr.f32.mxu0 0.0
  %845 = vmatmul.mubr.f32.gmra.mrb[0].mxu0 %v713
  %v846 = vpop.f32.mrb[0].mxu0
  %v847 = vadd.f32 0.0, %v846
  %v848 = vpop.f32.mrb[0].mxu0
  %849 = vmatprep.mubr.f32.mxu0 0.0
  %850 = vmatmul.mubr.f32.gmra.mrb[0].mxu0 %v716
  %v851 = vpop.f32.mrb[0].mxu0
  %v852 = vadd.f32 0.0, %v851
  %v853 = vpop.f32.mrb[0].mxu0
  %854 = vmatprep.mubr.f32.mxu0 0.0
  %855 = vmatmul.mubr.f32.gmra.mrb[0].mxu0 %v719
  %v856 = vpop.f32.mrb[0].mxu0
  %v857 = vadd.f32 0.0, %v856
  %v858 = vpop.f32.mrb[0].mxu0
  %859 = vmatprep.mubr.f32.mxu0 0.0
  %860 = vmatmul.mubr.f32.gmra.mrb[0].mxu0 %v722
  %v861 = vpop.f32.mrb[0].mxu0
  %v862 = vadd.f32 0.0, %v861
  %v863 = vpop.f32.mrb[0].mxu0
  %864 = vmatprep.mubr.f32.mxu0 0.0
  %865 = vmatmul.mubr.f32.gmra.mrb[0].mxu0 %v725
  %v866 = vpop.f32.mrb[0].mxu0
  %v867 = vadd.f32 0.0, %v866
  %v868 = vpop.f32.mrb[0].mxu0
  %869 = vmatprep.mubr.f32.mxu0 0.0
  %870 = vmatmul.mubr.f32.gmra.mrb[0].mxu0 %v728
  %v871 = vpop.f32.mrb[0].mxu0
  %v872 = vadd.f32 0.0, %v871
  %v873 = vpop.f32.mrb[0].mxu0
  %874 = vdwg.mxu0
  %v875 = vadd.f32 %v647, %v797
  %v876 = vadd.f32 %v648, %v802
  %v877 = vadd.f32 %v649, %v807
  %v878 = vadd.f32 %v650, %v812
  %v879 = vadd.f32 %v651, %v817
  %v880 = vadd.f32 %v652, %v822
  %v881 = vadd.f32 %v653, %v827
  %v882 = vadd.f32 %v654, %v832
  %v883 = vadd.f32 %v655, %v837
  %v884 = vadd.f32 %v656, %v842
  %v885 = vadd.f32 %v657, %v847
  %v886 = vadd.f32 %v658, %v852
  %v887 = vadd.f32 %v659, %v857
  %v888 = vadd.f32 %v660, %v862
  %v889 = vadd.f32 %v661, %v867
  %v890 = vadd.f32 %v662, %v872
  %v891 = vld [vmem:[%s663 + $0x1] sm:$0xff]
  %v892 = vld [vmem:[%s663 + $0x11] sm:$0xff]
  %v893 = vld [vmem:[%s663 + $0x21] sm:$0xff]
  %v894 = vld [vmem:[%s663 + $0x31] sm:$0xff]
  %v895 = vld [vmem:[%s663 + $0x41] sm:$0xff]
  %v896 = vld [vmem:[%s663 + $0x51] sm:$0xff]
  %v897 = vld [vmem:[%s663 + $0x61] sm:$0xff]
  %v898 = vld [vmem:[%s663 + $0x71] sm:$0xff]
  %v899 = vld [vmem:[%s663 + $0xa1] sm:$0xff]
  %v900 = vld [vmem:[%s663 + $0xb1] sm:$0xff]
  %v901 = vld [vmem:[%s663 + $0xc1] sm:$0xff]
  %v902 = vld [vmem:[%s663 + $0xd1] sm:$0xff]
  %v903 = vld [vmem:[%s663 + $0xe1] sm:$0xff]
  %v904 = vld [vmem:[%s663 + $0xf1] sm:$0xff]
  %v905 = vld [vmem:[%s663 + $0x101] sm:$0xff]
  %v906 = vld [vmem:[%s663 + $0x111] sm:$0xff]
  %s907 = scalar_lea.vmem %s1, 32
  %v908 = vld [vmem:[%s907] sm:$0xff]
  %v910 = vsel %vm49, %v891, 0
  %v913 = vsel %vm49, %v892, 0
  %v916 = vsel %vm49, %v893, 0
  %v919 = vsel %vm49, %v894, 0
  %v922 = vsel %vm49, %v895, 0
  %v925 = vsel %vm49, %v896, 0
  %v928 = vsel %vm49, %v897, 0
  %v931 = vsel %vm49, %v898, 0
  %v934 = vsel %vm49, %v899, 0
  %v937 = vsel %vm49, %v900, 0
  %v940 = vsel %vm49, %v901, 0
  %v943 = vsel %vm49, %v902, 0
  %v946 = vsel %vm49, %v903, 0
  %v949 = vsel %vm49, %v904, 0
  %v952 = vsel %vm49, %v905, 0
  %v955 = vsel %vm49, %v906, 0
  %957 = vmatprep.subr.mxu0 0.0
  %958 = vmatpush1.msra.mxu0 %v908
  %959 = vmatprep.subr.mxu0 0.0
  %960 = vmatpush1.msra.mxu0 0.0
  %961 = vmatprep.subr.mxu0 0.0
  %962 = vmatpush1.msra.mxu0 0.0
  %963 = vmatprep.subr.mxu0 0.0
  %964 = vmatpush1.msra.mxu0 0.0
  %965 = vmatprep.subr.mxu0 0.0
  %966 = vmatpush1.msra.mxu0 0.0
  %967 = vmatprep.subr.mxu0 0.0
  %968 = vmatpush1.msra.mxu0 0.0
  %969 = vmatprep.subr.mxu0 0.0
  %970 = vmatpush1.msra.mxu0 0.0
  %971 = vmatprep.subr.mxu0 0.0
  %972 = vmatpush1.msra.mxu0 0.0
  %973 = vmatprep.subr.mxu0 0.0
  %974 = vmatpush1.msra.mxu0 0.0
  %975 = vmatprep.subr.mxu0 0.0
  %976 = vmatpush1.msra.mxu0 0.0
  %977 = vmatprep.subr.mxu0 0.0
  %978 = vmatpush1.msra.mxu0 0.0
  %979 = vmatprep.subr.mxu0 0.0
  %980 = vmatpush1.msra.mxu0 0.0
  %981 = vmatprep.subr.mxu0 0.0
  %982 = vmatpush1.msra.mxu0 0.0
  %983 = vmatprep.subr.mxu0 0.0
  %984 = vmatpush1.msra.mxu0 0.0
  %985 = vmatprep.subr.mxu0 0.0
  %986 = vmatpush1.msra.mxu0 0.0
  %987 = vmatprep.subr.mxu0 0.0
  %988 = vmatpush1.msra.mxu0 0.0
  %989 = vmatprep.subr.mxu0 0.0
  %990 = vmatpush1.msra.mxu0 0.0
  %991 = vmatprep.subr.mxu0 0.0
  %992 = vmatpush1.msra.mxu0 0.0
  %993 = vmatprep.subr.mxu0 0.0
  %994 = vmatpush1.msra.mxu0 0.0
  %995 = vmatprep.subr.mxu0 0.0
  %996 = vmatpush1.msra.mxu0 0.0
  %997 = vmatprep.subr.mxu0 0.0
  %998 = vmatpush1.msra.mxu0 0.0
  %999 = vmatprep.subr.mxu0 0.0
  %1000 = vmatpush1.msra.mxu0 0.0
  %1001 = vmatprep.subr.mxu0 0.0
  %1002 = vmatpush1.msra.mxu0 0.0
  %1003 = vmatprep.subr.mxu0 0.0
  %1004 = vmatpush1.msra.mxu0 0.0
  %1005 = vmatprep.subr.mxu0 0.0
  %1006 = vmatpush1.msra.mxu0 0.0
  %1007 = vmatprep.subr.mxu0 0.0
  %1008 = vmatpush1.msra.mxu0 0.0
  %1009 = vmatprep.subr.mxu0 0.0
  %1010 = vmatpush1.msra.mxu0 0.0
  %1011 = vmatprep.subr.mxu0 0.0
  %1012 = vmatpush1.msra.mxu0 0.0
  %1013 = vmatprep.subr.mxu0 0.0
  %1014 = vmatpush1.msra.mxu0 0.0
  %1015 = vmatprep.subr.mxu0 0.0
  %1016 = vmatpush1.msra.mxu0 0.0
  %1017 = vmatprep.subr.mxu0 0.0
  %1018 = vmatpush1.msra.mxu0 0.0
  %1019 = vmatprep.subr.mxu0 0.0
  %1020 = vmatpush1.msra.mxu0 0.0
  %1021 = vmatprep.mubr.f32.mxu0 0.0
  %1022 = vmatmul.mubr.f32.gmra.mrb[0].mxu0 %v910
  %v1023 = vpop.f32.mrb[0].mxu0
  %v1024 = vadd.f32 0.0, %v1023
  %v1025 = vpop.f32.mrb[0].mxu0
  %1026 = vmatprep.mubr.f32.mxu0 0.0
  %1027 = vmatmul.mubr.f32.gmra.mrb[0].mxu0 %v913
  %v1028 = vpop.f32.mrb[0].mxu0
  %v1029 = vadd.f32 0.0, %v1028
  %v1030 = vpop.f32.mrb[0].mxu0
  %1031 = vmatprep.mubr.f32.mxu0 0.0
  %1032 = vmatmul.mubr.f32.gmra.mrb[0].mxu0 %v916
  %v1033 = vpop.f32.mrb[0].mxu0
  %v1034 = vadd.f32 0.0, %v1033
  %v1035 = vpop.f32.mrb[0].mxu0
  %1036 = vmatprep.mubr.f32.mxu0 0.0
  %1037 = vmatmul.mubr.f32.gmra.mrb[0].mxu0 %v919
  %v1038 = vpop.f32.mrb[0].mxu0
  %v1039 = vadd.f32 0.0, %v1038
  %v1040 = vpop.f32.mrb[0].mxu0
  %1041 = vmatprep.mubr.f32.mxu0 0.0
  %1042 = vmatmul.mubr.f32.gmra.mrb[0].mxu0 %v922
  %v1043 = vpop.f32.mrb[0].mxu0
  %v1044 = vadd.f32 0.0, %v1043
  %v1045 = vpop.f32.mrb[0].mxu0
  %1046 = vmatprep.mubr.f32.mxu0 0.0
  %1047 = vmatmul.mubr.f32.gmra.mrb[0].mxu0 %v925
  %v1048 = vpop.f32.mrb[0].mxu0
  %v1049 = vadd.f32 0.0, %v1048
  %v1050 = vpop.f32.mrb[0].mxu0
  %1051 = vmatprep.mubr.f32.mxu0 0.0
  %1052 = vmatmul.mubr.f32.gmra.mrb[0].mxu0 %v928
  %v1053 = vpop.f32.mrb[0].mxu0
  %v1054 = vadd.f32 0.0, %v1053
  %v1055 = vpop.f32.mrb[0].mxu0
  %1056 = vmatprep.mubr.f32.mxu0 0.0
  %1057 = vmatmul.mubr.f32.gmra.mrb[0].mxu0 %v931
  %v1058 = vpop.f32.mrb[0].mxu0
  %v1059 = vadd.f32 0.0, %v1058
  %v1060 = vpop.f32.mrb[0].mxu0
  %1061 = vmatprep.mubr.f32.mxu0 0.0
  %1062 = vmatmul.mubr.f32.gmra.mrb[0].mxu0 %v934
  %v1063 = vpop.f32.mrb[0].mxu0
  %v1064 = vadd.f32 0.0, %v1063
  %v1065 = vpop.f32.mrb[0].mxu0
  %1066 = vmatprep.mubr.f32.mxu0 0.0
  %1067 = vmatmul.mubr.f32.gmra.mrb[0].mxu0 %v937
  %v1068 = vpop.f32.mrb[0].mxu0
  %v1069 = vadd.f32 0.0, %v1068
  %v1070 = vpop.f32.mrb[0].mxu0
  %1071 = vmatprep.mubr.f32.mxu0 0.0
  %1072 = vmatmul.mubr.f32.gmra.mrb[0].mxu0 %v940
  %v1073 = vpop.f32.mrb[0].mxu0
  %v1074 = vadd.f32 0.0, %v1073
  %v1075 = vpop.f32.mrb[0].mxu0
  %1076 = vmatprep.mubr.f32.mxu0 0.0
  %1077 = vmatmul.mubr.f32.gmra.mrb[0].mxu0 %v943
  %v1078 = vpop.f32.mrb[0].mxu0
  %v1079 = vadd.f32 0.0, %v1078
  %v1080 = vpop.f32.mrb[0].mxu0
  %1081 = vmatprep.mubr.f32.mxu0 0.0
  %1082 = vmatmul.mubr.f32.gmra.mrb[0].mxu0 %v946
  %v1083 = vpop.f32.mrb[0].mxu0
  %v1084 = vadd.f32 0.0, %v1083
  %v1085 = vpop.f32.mrb[0].mxu0
  %1086 = vmatprep.mubr.f32.mxu0 0.0
  %1087 = vmatmul.mubr.f32.gmra.mrb[0].mxu0 %v949
  %v1088 = vpop.f32.mrb[0].mxu0
  %v1089 = vadd.f32 0.0, %v1088
  %v1090 = vpop.f32.mrb[0].mxu0
  %1091 = vmatprep.mubr.f32.mxu0 0.0
  %1092 = vmatmul.mubr.f32.gmra.mrb[0].mxu0 %v952
  %v1093 = vpop.f32.mrb[0].mxu0
  %v1094 = vadd.f32 0.0, %v1093
  %v1095 = vpop.f32.mrb[0].mxu0
  %1096 = vmatprep.mubr.f32.mxu0 0.0
  %1097 = vmatmul.mubr.f32.gmra.mrb[0].mxu0 %v955
  %v1098 = vpop.f32.mrb[0].mxu0
  %v1099 = vadd.f32 0.0, %v1098
  %v1100 = vpop.f32.mrb[0].mxu0
  %1101 = vdwg.mxu0
  %v1102 = vadd.f32 %v875, %v1024
  %v1103 = vadd.f32 %v876, %v1029
  %v1104 = vadd.f32 %v877, %v1034
  %v1105 = vadd.f32 %v878, %v1039
  %v1106 = vadd.f32 %v879, %v1044
  %v1107 = vadd.f32 %v880, %v1049
  %v1108 = vadd.f32 %v881, %v1054
  %v1109 = vadd.f32 %v882, %v1059
  %v1110 = vadd.f32 %v883, %v1064
  %v1111 = vadd.f32 %v884, %v1069
  %v1112 = vadd.f32 %v885, %v1074
  %v1113 = vadd.f32 %v886, %v1079
  %v1114 = vadd.f32 %v887, %v1084
  %v1115 = vadd.f32 %v888, %v1089
  %v1116 = vadd.f32 %v889, %v1094
  %v1117 = vadd.f32 %v890, %v1099
  %v1118 = vld [vmem:[%s663 + $0x2] sm:$0xff]
  %v1119 = vld [vmem:[%s663 + $0x12] sm:$0xff]
  %v1120 = vld [vmem:[%s663 + $0x22] sm:$0xff]
  %v1121 = vld [vmem:[%s663 + $0x32] sm:$0xff]
  %v1122 = vld [vmem:[%s663 + $0x42] sm:$0xff]
  %v1123 = vld [vmem:[%s663 + $0x52] sm:$0xff]
  %v1124 = vld [vmem:[%s663 + $0x62] sm:$0xff]
  %v1125 = vld [vmem:[%s663 + $0x72] sm:$0xff]
  %v1126 = vld [vmem:[%s663 + $0xa2] sm:$0xff]
  %v1127 = vld [vmem:[%s663 + $0xb2] sm:$0xff]
  %v1128 = vld [vmem:[%s663 + $0xc2] sm:$0xff]
  %v1129 = vld [vmem:[%s663 + $0xd2] sm:$0xff]
  %v1130 = vld [vmem:[%s663 + $0xe2] sm:$0xff]
  %v1131 = vld [vmem:[%s663 + $0xf2] sm:$0xff]
  %v1132 = vld [vmem:[%s663 + $0x102] sm:$0xff]
  %v1133 = vld [vmem:[%s663 + $0x112] sm:$0xff]
  %s1134 = scalar_lea.vmem %s1, 40
  %v1135 = vld [vmem:[%s1134] sm:$0xff]
  %v1137 = vsel %vm49, %v1118, 0
  %v1140 = vsel %vm49, %v1119, 0
  %v1143 = vsel %vm49, %v1120, 0
  %v1146 = vsel %vm49, %v1121, 0
  %v1149 = vsel %vm49, %v1122, 0
  %v1152 = vsel %vm49, %v1123, 0
  %v1155 = vsel %vm49, %v1124, 0
  %v1158 = vsel %vm49, %v1125, 0
  %v1161 = vsel %vm49, %v1126, 0
  %v1164 = vsel %vm49, %v1127, 0
  %v1167 = vsel %vm49, %v1128, 0
  %v1170 = vsel %vm49, %v1129, 0
  %v1173 = vsel %vm49, %v1130, 0
  %v1176 = vsel %vm49, %v1131, 0
  %v1179 = vsel %vm49, %v1132, 0
  %v1182 = vsel %vm49, %v1133, 0
  %1184 = vmatprep.subr.mxu0 0.0
  %1185 = vmatpush1.msra.mxu0 %v1135
  %1186 = vmatprep.subr.mxu0 0.0
  %1187 = vmatpush1.msra.mxu0 0.0
  %1188 = vmatprep.subr.mxu0 0.0
  %1189 = vmatpush1.msra.mxu0 0.0
  %1190 = vmatprep.subr.mxu0 0.0
  %1191 = vmatpush1.msra.mxu0 0.0
  %1192 = vmatprep.subr.mxu0 0.0
  %1193 = vmatpush1.msra.mxu0 0.0
  %1194 = vmatprep.subr.mxu0 0.0
  %1195 = vmatpush1.msra.mxu0 0.0
  %1196 = vmatprep.subr.mxu0 0.0
  %1197 = vmatpush1.msra.mxu0 0.0
  %1198 = vmatprep.subr.mxu0 0.0
  %1199 = vmatpush1.msra.mxu0 0.0
  %1200 = vmatprep.subr.mxu0 0.0
  %1201 = vmatpush1.msra.mxu0 0.0
  %1202 = vmatprep.subr.mxu0 0.0
  %1203 = vmatpush1.msra.mxu0 0.0
  %1204 = vmatprep.subr.mxu0 0.0
  %1205 = vmatpush1.msra.mxu0 0.0
  %1206 = vmatprep.subr.mxu0 0.0
  %1207 = vmatpush1.msra.mxu0 0.0
  %1208 = vmatprep.subr.mxu0 0.0
  %1209 = vmatpush1.msra.mxu0 0.0
  %1210 = vmatprep.subr.mxu0 0.0
  %1211 = vmatpush1.msra.mxu0 0.0
  %1212 = vmatprep.subr.mxu0 0.0
  %1213 = vmatpush1.msra.mxu0 0.0
  %1214 = vmatprep.subr.mxu0 0.0
  %1215 = vmatpush1.msra.mxu0 0.0
  %1216 = vmatprep.subr.mxu0 0.0
  %1217 = vmatpush1.msra.mxu0 0.0
  %1218 = vmatprep.subr.mxu0 0.0
  %1219 = vmatpush1.msra.mxu0 0.0
  %1220 = vmatprep.subr.mxu0 0.0
  %1221 = vmatpush1.msra.mxu0 0.0
  %1222 = vmatprep.subr.mxu0 0.0
  %1223 = vmatpush1.msra.mxu0 0.0
  %1224 = vmatprep.subr.mxu0 0.0
  %1225 = vmatpush1.msra.mxu0 0.0
  %1226 = vmatprep.subr.mxu0 0.0
  %1227 = vmatpush1.msra.mxu0 0.0
  %1228 = vmatprep.subr.mxu0 0.0
  %1229 = vmatpush1.msra.mxu0 0.0
  %1230 = vmatprep.subr.mxu0 0.0
  %1231 = vmatpush1.msra.mxu0 0.0
  %1232 = vmatprep.subr.mxu0 0.0
  %1233 = vmatpush1.msra.mxu0 0.0
  %1234 = vmatprep.subr.mxu0 0.0
  %1235 = vmatpush1.msra.mxu0 0.0
  %1236 = vmatprep.subr.mxu0 0.0
  %1237 = vmatpush1.msra.mxu0 0.0
  %1238 = vmatprep.subr.mxu0 0.0
  %1239 = vmatpush1.msra.mxu0 0.0
  %1240 = vmatprep.subr.mxu0 0.0
  %1241 = vmatpush1.msra.mxu0 0.0
  %1242 = vmatprep.subr.mxu0 0.0
  %1243 = vmatpush1.msra.mxu0 0.0
  %1244 = vmatprep.subr.mxu0 0.0
  %1245 = vmatpush1.msra.mxu0 0.0
  %1246 = vmatprep.subr.mxu0 0.0
  %1247 = vmatpush1.msra.mxu0 0.0
  %1248 = vmatprep.mubr.f32.mxu0 0.0
  %1249 = vmatmul.mubr.f32.gmra.mrb[0].mxu0 %v1137
  %v1250 = vpop.f32.mrb[0].mxu0
  %v1251 = vadd.f32 0.0, %v1250
  %v1252 = vpop.f32.mrb[0].mxu0
  %1253 = vmatprep.mubr.f32.mxu0 0.0
  %1254 = vmatmul.mubr.f32.gmra.mrb[0].mxu0 %v1140
  %v1255 = vpop.f32.mrb[0].mxu0
  %v1256 = vadd.f32 0.0, %v1255
  %v1257 = vpop.f32.mrb[0].mxu0
  %1258 = vmatprep.mubr.f32.mxu0 0.0
  %1259 = vmatmul.mubr.f32.gmra.mrb[0].mxu0 %v1143
  %v1260 = vpop.f32.mrb[0].mxu0
  %v1261 = vadd.f32 0.0, %v1260
  %v1262 = vpop.f32.mrb[0].mxu0
  %1263 = vmatprep.mubr.f32.mxu0 0.0
  %1264 = vmatmul.mubr.f32.gmra.mrb[0].mxu0 %v1146
  %v1265 = vpop.f32.mrb[0].mxu0
  %v1266 = vadd.f32 0.0, %v1265
  %v1267 = vpop.f32.mrb[0].mxu0
  %1268 = vmatprep.mubr.f32.mxu0 0.0
  %1269 = vmatmul.mubr.f32.gmra.mrb[0].mxu0 %v1149
  %v1270 = vpop.f32.mrb[0].mxu0
  %v1271 = vadd.f32 0.0, %v1270
  %v1272 = vpop.f32.mrb[0].mxu0
  %1273 = vmatprep.mubr.f32.mxu0 0.0
  %1274 = vmatmul.mubr.f32.gmra.mrb[0].mxu0 %v1152
  %v1275 = vpop.f32.mrb[0].mxu0
  %v1276 = vadd.f32 0.0, %v1275
  %v1277 = vpop.f32.mrb[0].mxu0
  %1278 = vmatprep.mubr.f32.mxu0 0.0
  %1279 = vmatmul.mubr.f32.gmra.mrb[0].mxu0 %v1155
  %v1280 = vpop.f32.mrb[0].mxu0
  %v1281 = vadd.f32 0.0, %v1280
  %v1282 = vpop.f32.mrb[0].mxu0
  %1283 = vmatprep.mubr.f32.mxu0 0.0
  %1284 = vmatmul.mubr.f32.gmra.mrb[0].mxu0 %v1158
  %v1285 = vpop.f32.mrb[0].mxu0
  %v1286 = vadd.f32 0.0, %v1285
  %v1287 = vpop.f32.mrb[0].mxu0
  %1288 = vmatprep.mubr.f32.mxu0 0.0
  %1289 = vmatmul.mubr.f32.gmra.mrb[0].mxu0 %v1161
  %v1290 = vpop.f32.mrb[0].mxu0
  %v1291 = vadd.f32 0.0, %v1290
  %v1292 = vpop.f32.mrb[0].mxu0
  %1293 = vmatprep.mubr.f32.mxu0 0.0
  %1294 = vmatmul.mubr.f32.gmra.mrb[0].mxu0 %v1164
  %v1295 = vpop.f32.mrb[0].mxu0
  %v1296 = vadd.f32 0.0, %v1295
  %v1297 = vpop.f32.mrb[0].mxu0
  %1298 = vmatprep.mubr.f32.mxu0 0.0
  %1299 = vmatmul.mubr.f32.gmra.mrb[0].mxu0 %v1167
  %v1300 = vpop.f32.mrb[0].mxu0
  %v1301 = vadd.f32 0.0, %v1300
  %v1302 = vpop.f32.mrb[0].mxu0
  %1303 = vmatprep.mubr.f32.mxu0 0.0
  %1304 = vmatmul.mubr.f32.gmra.mrb[0].mxu0 %v1170
  %v1305 = vpop.f32.mrb[0].mxu0
  %v1306 = vadd.f32 0.0, %v1305
  %v1307 = vpop.f32.mrb[0].mxu0
  %1308 = vmatprep.mubr.f32.mxu0 0.0
  %1309 = vmatmul.mubr.f32.gmra.mrb[0].mxu0 %v1173
  %v1310 = vpop.f32.mrb[0].mxu0
  %v1311 = vadd.f32 0.0, %v1310
  %v1312 = vpop.f32.mrb[0].mxu0
  %1313 = vmatprep.mubr.f32.mxu0 0.0
  %1314 = vmatmul.mubr.f32.gmra.mrb[0].mxu0 %v1176
  %v1315 = vpop.f32.mrb[0].mxu0
  %v1316 = vadd.f32 0.0, %v1315
  %v1317 = vpop.f32.mrb[0].mxu0
  %1318 = vmatprep.mubr.f32.mxu0 0.0
  %1319 = vmatmul.mubr.f32.gmra.mrb[0].mxu0 %v1179
  %v1320 = vpop.f32.mrb[0].mxu0
  %v1321 = vadd.f32 0.0, %v1320
  %v1322 = vpop.f32.mrb[0].mxu0
  %1323 = vmatprep.mubr.f32.mxu0 0.0
  %1324 = vmatmul.mubr.f32.gmra.mrb[0].mxu0 %v1182
  %v1325 = vpop.f32.mrb[0].mxu0
  %v1326 = vadd.f32 0.0, %v1325
  %v1327 = vpop.f32.mrb[0].mxu0
  %1328 = vdwg.mxu0
  %v1329 = vadd.f32 %v1102, %v1251
  %v1330 = vadd.f32 %v1103, %v1256
  %v1331 = vadd.f32 %v1104, %v1261
  %v1332 = vadd.f32 %v1105, %v1266
  %v1333 = vadd.f32 %v1106, %v1271
  %v1334 = vadd.f32 %v1107, %v1276
  %v1335 = vadd.f32 %v1108, %v1281
  %v1336 = vadd.f32 %v1109, %v1286
  %v1337 = vadd.f32 %v1110, %v1291
  %v1338 = vadd.f32 %v1111, %v1296
  %v1339 = vadd.f32 %v1112, %v1301
  %v1340 = vadd.f32 %v1113, %v1306
  %v1341 = vadd.f32 %v1114, %v1311
  %v1342 = vadd.f32 %v1115, %v1316
  %v1343 = vadd.f32 %v1116, %v1321
  %v1344 = vadd.f32 %v1117, %v1326
  %s1345 = scalar_lea.vmem %s0, 32
  %v1346 = vld [vmem:[%s1345] sm:$0xff]
  %v1347 = vld [vmem:[%s1345 + $0x10] sm:$0xff]
  %v1348 = vld [vmem:[%s1345 + $0x20] sm:$0xff]
  %v1349 = vld [vmem:[%s1345 + $0x30] sm:$0xff]
  %v1350 = vld [vmem:[%s1345 + $0x40] sm:$0xff]
  %v1351 = vld [vmem:[%s1345 + $0x50] sm:$0xff]
  %v1352 = vld [vmem:[%s1345 + $0x60] sm:$0xff]
  %v1353 = vld [vmem:[%s1345 + $0x70] sm:$0xff]
  %v1354 = vld [vmem:[%s1345 + $0xa0] sm:$0xff]
  %v1355 = vld [vmem:[%s1345 + $0xb0] sm:$0xff]
  %v1356 = vld [vmem:[%s1345 + $0xc0] sm:$0xff]
  %v1357 = vld [vmem:[%s1345 + $0xd0] sm:$0xff]
  %v1358 = vld [vmem:[%s1345 + $0xe0] sm:$0xff]
  %v1359 = vld [vmem:[%s1345 + $0xf0] sm:$0xff]
  %v1360 = vld [vmem:[%s1345 + $0x100] sm:$0xff]
  %v1361 = vld [vmem:[%s1345 + $0x110] sm:$0xff]
  %s1362 = scalar_lea.vmem %s1, 48
  %v1363 = vld [vmem:[%s1362] sm:$0xff]
  %v1365 = vsel %vm49, %v1346, 0
  %v1368 = vsel %vm49, %v1347, 0
  %v1371 = vsel %vm49, %v1348, 0
  %v1374 = vsel %vm49, %v1349, 0
  %v1377 = vsel %vm49, %v1350, 0
  %v1380 = vsel %vm49, %v1351, 0
  %v1383 = vsel %vm49, %v1352, 0
  %v1386 = vsel %vm49, %v1353, 0
  %v1389 = vsel %vm49, %v1354, 0
  %v1392 = vsel %vm49, %v1355, 0
  %v1395 = vsel %vm49, %v1356, 0
  %v1398 = vsel %vm49, %v1357, 0
  %v1401 = vsel %vm49, %v1358, 0
  %v1404 = vsel %vm49, %v1359, 0
  %v1407 = vsel %vm49, %v1360, 0
  %v1410 = vsel %vm49, %v1361, 0
  %1412 = vmatprep.subr.mxu0 0.0
  %1413 = vmatpush1.msra.mxu0 %v1363
  %1414 = vmatprep.subr.mxu0 0.0
  %1415 = vmatpush1.msra.mxu0 0.0
  %1416 = vmatprep.subr.mxu0 0.0
  %1417 = vmatpush1.msra.mxu0 0.0
  %1418 = vmatprep.subr.mxu0 0.0
  %1419 = vmatpush1.msra.mxu0 0.0
  %1420 = vmatprep.subr.mxu0 0.0
  %1421 = vmatpush1.msra.mxu0 0.0
  %1422 = vmatprep.subr.mxu0 0.0
  %1423 = vmatpush1.msra.mxu0 0.0
  %1424 = vmatprep.subr.mxu0 0.0
  %1425 = vmatpush1.msra.mxu0 0.0
  %1426 = vmatprep.subr.mxu0 0.0
  %1427 = vmatpush1.msra.mxu0 0.0
  %1428 = vmatprep.subr.mxu0 0.0
  %1429 = vmatpush1.msra.mxu0 0.0
  %1430 = vmatprep.subr.mxu0 0.0
  %1431 = vmatpush1.msra.mxu0 0.0
  %1432 = vmatprep.subr.mxu0 0.0
  %1433 = vmatpush1.msra.mxu0 0.0
  %1434 = vmatprep.subr.mxu0 0.0
  %1435 = vmatpush1.msra.mxu0 0.0
  %1436 = vmatprep.subr.mxu0 0.0
  %1437 = vmatpush1.msra.mxu0 0.0
  %1438 = vmatprep.subr.mxu0 0.0
  %1439 = vmatpush1.msra.mxu0 0.0
  %1440 = vmatprep.subr.mxu0 0.0
  %1441 = vmatpush1.msra.mxu0 0.0
  %1442 = vmatprep.subr.mxu0 0.0
  %1443 = vmatpush1.msra.mxu0 0.0
  %1444 = vmatprep.subr.mxu0 0.0
  %1445 = vmatpush1.msra.mxu0 0.0
  %1446 = vmatprep.subr.mxu0 0.0
  %1447 = vmatpush1.msra.mxu0 0.0
  %1448 = vmatprep.subr.mxu0 0.0
  %1449 = vmatpush1.msra.mxu0 0.0
  %1450 = vmatprep.subr.mxu0 0.0
  %1451 = vmatpush1.msra.mxu0 0.0
  %1452 = vmatprep.subr.mxu0 0.0
  %1453 = vmatpush1.msra.mxu0 0.0
  %1454 = vmatprep.subr.mxu0 0.0
  %1455 = vmatpush1.msra.mxu0 0.0
  %1456 = vmatprep.subr.mxu0 0.0
  %1457 = vmatpush1.msra.mxu0 0.0
  %1458 = vmatprep.subr.mxu0 0.0
  %1459 = vmatpush1.msra.mxu0 0.0
  %1460 = vmatprep.subr.mxu0 0.0
  %1461 = vmatpush1.msra.mxu0 0.0
  %1462 = vmatprep.subr.mxu0 0.0
  %1463 = vmatpush1.msra.mxu0 0.0
  %1464 = vmatprep.subr.mxu0 0.0
  %1465 = vmatpush1.msra.mxu0 0.0
  %1466 = vmatprep.subr.mxu0 0.0
  %1467 = vmatpush1.msra.mxu0 0.0
  %1468 = vmatprep.subr.mxu0 0.0
  %1469 = vmatpush1.msra.mxu0 0.0
  %1470 = vmatprep.subr.mxu0 0.0
  %1471 = vmatpush1.msra.mxu0 0.0
  %1472 = vmatprep.subr.mxu0 0.0
  %1473 = vmatpush1.msra.mxu0 0.0
  %1474 = vmatprep.subr.mxu0 0.0
  %1475 = vmatpush1.msra.mxu0 0.0
  %1476 = vmatprep.mubr.f32.mxu0 0.0
  %1477 = vmatmul.mubr.f32.gmra.mrb[0].mxu0 %v1365
  %v1478 = vpop.f32.mrb[0].mxu0
  %v1479 = vadd.f32 0.0, %v1478
  %v1480 = vpop.f32.mrb[0].mxu0
  %1481 = vmatprep.mubr.f32.mxu0 0.0
  %1482 = vmatmul.mubr.f32.gmra.mrb[0].mxu0 %v1368
  %v1483 = vpop.f32.mrb[0].mxu0
  %v1484 = vadd.f32 0.0, %v1483
  %v1485 = vpop.f32.mrb[0].mxu0
  %1486 = vmatprep.mubr.f32.mxu0 0.0
  %1487 = vmatmul.mubr.f32.gmra.mrb[0].mxu0 %v1371
  %v1488 = vpop.f32.mrb[0].mxu0
  %v1489 = vadd.f32 0.0, %v1488
  %v1490 = vpop.f32.mrb[0].mxu0
  %1491 = vmatprep.mubr.f32.mxu0 0.0
  %1492 = vmatmul.mubr.f32.gmra.mrb[0].mxu0 %v1374
  %v1493 = vpop.f32.mrb[0].mxu0
  %v1494 = vadd.f32 0.0, %v1493
  %v1495 = vpop.f32.mrb[0].mxu0
  %1496 = vmatprep.mubr.f32.mxu0 0.0
  %1497 = vmatmul.mubr.f32.gmra.mrb[0].mxu0 %v1377
  %v1498 = vpop.f32.mrb[0].mxu0
  %v1499 = vadd.f32 0.0, %v1498
  %v1500 = vpop.f32.mrb[0].mxu0
  %1501 = vmatprep.mubr.f32.mxu0 0.0
  %1502 = vmatmul.mubr.f32.gmra.mrb[0].mxu0 %v1380
  %v1503 = vpop.f32.mrb[0].mxu0
  %v1504 = vadd.f32 0.0, %v1503
  %v1505 = vpop.f32.mrb[0].mxu0
  %1506 = vmatprep.mubr.f32.mxu0 0.0
  %1507 = vmatmul.mubr.f32.gmra.mrb[0].mxu0 %v1383
  %v1508 = vpop.f32.mrb[0].mxu0
  %v1509 = vadd.f32 0.0, %v1508
  %v1510 = vpop.f32.mrb[0].mxu0
  %1511 = vmatprep.mubr.f32.mxu0 0.0
  %1512 = vmatmul.mubr.f32.gmra.mrb[0].mxu0 %v1386
  %v1513 = vpop.f32.mrb[0].mxu0
  %v1514 = vadd.f32 0.0, %v1513
  %v1515 = vpop.f32.mrb[0].mxu0
  %1516 = vmatprep.mubr.f32.mxu0 0.0
  %1517 = vmatmul.mubr.f32.gmra.mrb[0].mxu0 %v1389
  %v1518 = vpop.f32.mrb[0].mxu0
  %v1519 = vadd.f32 0.0, %v1518
  %v1520 = vpop.f32.mrb[0].mxu0
  %1521 = vmatprep.mubr.f32.mxu0 0.0
  %1522 = vmatmul.mubr.f32.gmra.mrb[0].mxu0 %v1392
  %v1523 = vpop.f32.mrb[0].mxu0
  %v1524 = vadd.f32 0.0, %v1523
  %v1525 = vpop.f32.mrb[0].mxu0
  %1526 = vmatprep.mubr.f32.mxu0 0.0
  %1527 = vmatmul.mubr.f32.gmra.mrb[0].mxu0 %v1395
  %v1528 = vpop.f32.mrb[0].mxu0
  %v1529 = vadd.f32 0.0, %v1528
  %v1530 = vpop.f32.mrb[0].mxu0
  %1531 = vmatprep.mubr.f32.mxu0 0.0
  %1532 = vmatmul.mubr.f32.gmra.mrb[0].mxu0 %v1398
  %v1533 = vpop.f32.mrb[0].mxu0
  %v1534 = vadd.f32 0.0, %v1533
  %v1535 = vpop.f32.mrb[0].mxu0
  %1536 = vmatprep.mubr.f32.mxu0 0.0
  %1537 = vmatmul.mubr.f32.gmra.mrb[0].mxu0 %v1401
  %v1538 = vpop.f32.mrb[0].mxu0
  %v1539 = vadd.f32 0.0, %v1538
  %v1540 = vpop.f32.mrb[0].mxu0
  %1541 = vmatprep.mubr.f32.mxu0 0.0
  %1542 = vmatmul.mubr.f32.gmra.mrb[0].mxu0 %v1404
  %v1543 = vpop.f32.mrb[0].mxu0
  %v1544 = vadd.f32 0.0, %v1543
  %v1545 = vpop.f32.mrb[0].mxu0
  %1546 = vmatprep.mubr.f32.mxu0 0.0
  %1547 = vmatmul.mubr.f32.gmra.mrb[0].mxu0 %v1407
  %v1548 = vpop.f32.mrb[0].mxu0
  %v1549 = vadd.f32 0.0, %v1548
  %v1550 = vpop.f32.mrb[0].mxu0
  %1551 = vmatprep.mubr.f32.mxu0 0.0
  %1552 = vmatmul.mubr.f32.gmra.mrb[0].mxu0 %v1410
  %v1553 = vpop.f32.mrb[0].mxu0
  %v1554 = vadd.f32 0.0, %v1553
  %v1555 = vpop.f32.mrb[0].mxu0
  %1556 = vdwg.mxu0
  %v1557 = vadd.f32 %v1329, %v1479
  %v1558 = vadd.f32 %v1330, %v1484
  %v1559 = vadd.f32 %v1331, %v1489
  %v1560 = vadd.f32 %v1332, %v1494
  %v1561 = vadd.f32 %v1333, %v1499
  %v1562 = vadd.f32 %v1334, %v1504
  %v1563 = vadd.f32 %v1335, %v1509
  %v1564 = vadd.f32 %v1336, %v1514
  %v1565 = vadd.f32 %v1337, %v1519
  %v1566 = vadd.f32 %v1338, %v1524
  %v1567 = vadd.f32 %v1339, %v1529
  %v1568 = vadd.f32 %v1340, %v1534
  %v1569 = vadd.f32 %v1341, %v1539
  %v1570 = vadd.f32 %v1342, %v1544
  %v1571 = vadd.f32 %v1343, %v1549
  %v1572 = vadd.f32 %v1344, %v1554
  %v1573 = vld [vmem:[%s1345 + $0x1] sm:$0xff]
  %v1574 = vld [vmem:[%s1345 + $0x11] sm:$0xff]
  %v1575 = vld [vmem:[%s1345 + $0x21] sm:$0xff]
  %v1576 = vld [vmem:[%s1345 + $0x31] sm:$0xff]
  %v1577 = vld [vmem:[%s1345 + $0x41] sm:$0xff]
  %v1578 = vld [vmem:[%s1345 + $0x51] sm:$0xff]
  %v1579 = vld [vmem:[%s1345 + $0x61] sm:$0xff]
  %v1580 = vld [vmem:[%s1345 + $0x71] sm:$0xff]
  %v1581 = vld [vmem:[%s1345 + $0xa1] sm:$0xff]
  %v1582 = vld [vmem:[%s1345 + $0xb1] sm:$0xff]
  %v1583 = vld [vmem:[%s1345 + $0xc1] sm:$0xff]
  %v1584 = vld [vmem:[%s1345 + $0xd1] sm:$0xff]
  %v1585 = vld [vmem:[%s1345 + $0xe1] sm:$0xff]
  %v1586 = vld [vmem:[%s1345 + $0xf1] sm:$0xff]
  %v1587 = vld [vmem:[%s1345 + $0x101] sm:$0xff]
  %v1588 = vld [vmem:[%s1345 + $0x111] sm:$0xff]
  %s1589 = scalar_lea.vmem %s1, 56
  %v1590 = vld [vmem:[%s1589] sm:$0xff]
  %v1592 = vsel %vm49, %v1573, 0
  %v1595 = vsel %vm49, %v1574, 0
  %v1598 = vsel %vm49, %v1575, 0
  %v1601 = vsel %vm49, %v1576, 0
  %v1604 = vsel %vm49, %v1577, 0
  %v1607 = vsel %vm49, %v1578, 0
  %v1610 = vsel %vm49, %v1579, 0
  %v1613 = vsel %vm49, %v1580, 0
  %v1616 = vsel %vm49, %v1581, 0
  %v1619 = vsel %vm49, %v1582, 0
  %v1622 = vsel %vm49, %v1583, 0
  %v1625 = vsel %vm49, %v1584, 0
  %v1628 = vsel %vm49, %v1585, 0
  %v1631 = vsel %vm49, %v1586, 0
  %v1634 = vsel %vm49, %v1587, 0
  %v1637 = vsel %vm49, %v1588, 0
  %1639 = vmatprep.subr.mxu0 0.0
  %1640 = vmatpush1.msra.mxu0 %v1590
  %1641 = vmatprep.subr.mxu0 0.0
  %1642 = vmatpush1.msra.mxu0 0.0
  %1643 = vmatprep.subr.mxu0 0.0
  %1644 = vmatpush1.msra.mxu0 0.0
  %1645 = vmatprep.subr.mxu0 0.0
  %1646 = vmatpush1.msra.mxu0 0.0
  %1647 = vmatprep.subr.mxu0 0.0
  %1648 = vmatpush1.msra.mxu0 0.0
  %1649 = vmatprep.subr.mxu0 0.0
  %1650 = vmatpush1.msra.mxu0 0.0
  %1651 = vmatprep.subr.mxu0 0.0
  %1652 = vmatpush1.msra.mxu0 0.0
  %1653 = vmatprep.subr.mxu0 0.0
  %1654 = vmatpush1.msra.mxu0 0.0
  %1655 = vmatprep.subr.mxu0 0.0
  %1656 = vmatpush1.msra.mxu0 0.0
  %1657 = vmatprep.subr.mxu0 0.0
  %1658 = vmatpush1.msra.mxu0 0.0
  %1659 = vmatprep.subr.mxu0 0.0
  %1660 = vmatpush1.msra.mxu0 0.0
  %1661 = vmatprep.subr.mxu0 0.0
  %1662 = vmatpush1.msra.mxu0 0.0
  %1663 = vmatprep.subr.mxu0 0.0
  %1664 = vmatpush1.msra.mxu0 0.0
  %1665 = vmatprep.subr.mxu0 0.0
  %1666 = vmatpush1.msra.mxu0 0.0
  %1667 = vmatprep.subr.mxu0 0.0
  %1668 = vmatpush1.msra.mxu0 0.0
  %1669 = vmatprep.subr.mxu0 0.0
  %1670 = vmatpush1.msra.mxu0 0.0
  %1671 = vmatprep.subr.mxu0 0.0
  %1672 = vmatpush1.msra.mxu0 0.0
  %1673 = vmatprep.subr.mxu0 0.0
  %1674 = vmatpush1.msra.mxu0 0.0
  %1675 = vmatprep.subr.mxu0 0.0
  %1676 = vmatpush1.msra.mxu0 0.0
  %1677 = vmatprep.subr.mxu0 0.0
  %1678 = vmatpush1.msra.mxu0 0.0
  %1679 = vmatprep.subr.mxu0 0.0
  %1680 = vmatpush1.msra.mxu0 0.0
  %1681 = vmatprep.subr.mxu0 0.0
  %1682 = vmatpush1.msra.mxu0 0.0
  %1683 = vmatprep.subr.mxu0 0.0
  %1684 = vmatpush1.msra.mxu0 0.0
  %1685 = vmatprep.subr.mxu0 0.0
  %1686 = vmatpush1.msra.mxu0 0.0
  %1687 = vmatprep.subr.mxu0 0.0
  %1688 = vmatpush1.msra.mxu0 0.0
  %1689 = vmatprep.subr.mxu0 0.0
  %1690 = vmatpush1.msra.mxu0 0.0
  %1691 = vmatprep.subr.mxu0 0.0
  %1692 = vmatpush1.msra.mxu0 0.0
  %1693 = vmatprep.subr.mxu0 0.0
  %1694 = vmatpush1.msra.mxu0 0.0
  %1695 = vmatprep.subr.mxu0 0.0
  %1696 = vmatpush1.msra.mxu0 0.0
  %1697 = vmatprep.subr.mxu0 0.0
  %1698 = vmatpush1.msra.mxu0 0.0
  %1699 = vmatprep.subr.mxu0 0.0
  %1700 = vmatpush1.msra.mxu0 0.0
  %1701 = vmatprep.subr.mxu0 0.0
  %1702 = vmatpush1.msra.mxu0 0.0
  %1703 = vmatprep.mubr.f32.mxu0 0.0
  %1704 = vmatmul.mubr.f32.gmra.mrb[0].mxu0 %v1592
  %v1705 = vpop.f32.mrb[0].mxu0
  %v1706 = vadd.f32 0.0, %v1705
  %v1707 = vpop.f32.mrb[0].mxu0
  %1708 = vmatprep.mubr.f32.mxu0 0.0
  %1709 = vmatmul.mubr.f32.gmra.mrb[0].mxu0 %v1595
  %v1710 = vpop.f32.mrb[0].mxu0
  %v1711 = vadd.f32 0.0, %v1710
  %v1712 = vpop.f32.mrb[0].mxu0
  %1713 = vmatprep.mubr.f32.mxu0 0.0
  %1714 = vmatmul.mubr.f32.gmra.mrb[0].mxu0 %v1598
  %v1715 = vpop.f32.mrb[0].mxu0
  %v1716 = vadd.f32 0.0, %v1715
  %v1717 = vpop.f32.mrb[0].mxu0
  %1718 = vmatprep.mubr.f32.mxu0 0.0
  %1719 = vmatmul.mubr.f32.gmra.mrb[0].mxu0 %v1601
  %v1720 = vpop.f32.mrb[0].mxu0
  %v1721 = vadd.f32 0.0, %v1720
  %v1722 = vpop.f32.mrb[0].mxu0
  %1723 = vmatprep.mubr.f32.mxu0 0.0
  %1724 = vmatmul.mubr.f32.gmra.mrb[0].mxu0 %v1604
  %v1725 = vpop.f32.mrb[0].mxu0
  %v1726 = vadd.f32 0.0, %v1725
  %v1727 = vpop.f32.mrb[0].mxu0
  %1728 = vmatprep.mubr.f32.mxu0 0.0
  %1729 = vmatmul.mubr.f32.gmra.mrb[0].mxu0 %v1607
  %v1730 = vpop.f32.mrb[0].mxu0
  %v1731 = vadd.f32 0.0, %v1730
  %v1732 = vpop.f32.mrb[0].mxu0
  %1733 = vmatprep.mubr.f32.mxu0 0.0
  %1734 = vmatmul.mubr.f32.gmra.mrb[0].mxu0 %v1610
  %v1735 = vpop.f32.mrb[0].mxu0
  %v1736 = vadd.f32 0.0, %v1735
  %v1737 = vpop.f32.mrb[0].mxu0
  %1738 = vmatprep.mubr.f32.mxu0 0.0
  %1739 = vmatmul.mubr.f32.gmra.mrb[0].mxu0 %v1613
  %v1740 = vpop.f32.mrb[0].mxu0
  %v1741 = vadd.f32 0.0, %v1740
  %v1742 = vpop.f32.mrb[0].mxu0
  %1743 = vmatprep.mubr.f32.mxu0 0.0
  %1744 = vmatmul.mubr.f32.gmra.mrb[0].mxu0 %v1616
  %v1745 = vpop.f32.mrb[0].mxu0
  %v1746 = vadd.f32 0.0, %v1745
  %v1747 = vpop.f32.mrb[0].mxu0
  %1748 = vmatprep.mubr.f32.mxu0 0.0
  %1749 = vmatmul.mubr.f32.gmra.mrb[0].mxu0 %v1619
  %v1750 = vpop.f32.mrb[0].mxu0
  %v1751 = vadd.f32 0.0, %v1750
  %v1752 = vpop.f32.mrb[0].mxu0
  %1753 = vmatprep.mubr.f32.mxu0 0.0
  %1754 = vmatmul.mubr.f32.gmra.mrb[0].mxu0 %v1622
  %v1755 = vpop.f32.mrb[0].mxu0
  %v1756 = vadd.f32 0.0, %v1755
  %v1757 = vpop.f32.mrb[0].mxu0
  %1758 = vmatprep.mubr.f32.mxu0 0.0
  %1759 = vmatmul.mubr.f32.gmra.mrb[0].mxu0 %v1625
  %v1760 = vpop.f32.mrb[0].mxu0
  %v1761 = vadd.f32 0.0, %v1760
  %v1762 = vpop.f32.mrb[0].mxu0
  %1763 = vmatprep.mubr.f32.mxu0 0.0
  %1764 = vmatmul.mubr.f32.gmra.mrb[0].mxu0 %v1628
  %v1765 = vpop.f32.mrb[0].mxu0
  %v1766 = vadd.f32 0.0, %v1765
  %v1767 = vpop.f32.mrb[0].mxu0
  %1768 = vmatprep.mubr.f32.mxu0 0.0
  %1769 = vmatmul.mubr.f32.gmra.mrb[0].mxu0 %v1631
  %v1770 = vpop.f32.mrb[0].mxu0
  %v1771 = vadd.f32 0.0, %v1770
  %v1772 = vpop.f32.mrb[0].mxu0
  %1773 = vmatprep.mubr.f32.mxu0 0.0
  %1774 = vmatmul.mubr.f32.gmra.mrb[0].mxu0 %v1634
  %v1775 = vpop.f32.mrb[0].mxu0
  %v1776 = vadd.f32 0.0, %v1775
  %v1777 = vpop.f32.mrb[0].mxu0
  %1778 = vmatprep.mubr.f32.mxu0 0.0
  %1779 = vmatmul.mubr.f32.gmra.mrb[0].mxu0 %v1637
  %v1780 = vpop.f32.mrb[0].mxu0
  %v1781 = vadd.f32 0.0, %v1780
  %v1782 = vpop.f32.mrb[0].mxu0
  %1783 = vdwg.mxu0
  %v1784 = vadd.f32 %v1557, %v1706
  %v1785 = vadd.f32 %v1558, %v1711
  %v1786 = vadd.f32 %v1559, %v1716
  %v1787 = vadd.f32 %v1560, %v1721
  %v1788 = vadd.f32 %v1561, %v1726
  %v1789 = vadd.f32 %v1562, %v1731
  %v1790 = vadd.f32 %v1563, %v1736
  %v1791 = vadd.f32 %v1564, %v1741
  %v1792 = vadd.f32 %v1565, %v1746
  %v1793 = vadd.f32 %v1566, %v1751
  %v1794 = vadd.f32 %v1567, %v1756
  %v1795 = vadd.f32 %v1568, %v1761
  %v1796 = vadd.f32 %v1569, %v1766
  %v1797 = vadd.f32 %v1570, %v1771
  %v1798 = vadd.f32 %v1571, %v1776
  %v1799 = vadd.f32 %v1572, %v1781
  %v1800 = vld [vmem:[%s1345 + $0x2] sm:$0xff]
  %v1801 = vld [vmem:[%s1345 + $0x12] sm:$0xff]
  %v1802 = vld [vmem:[%s1345 + $0x22] sm:$0xff]
  %v1803 = vld [vmem:[%s1345 + $0x32] sm:$0xff]
  %v1804 = vld [vmem:[%s1345 + $0x42] sm:$0xff]
  %v1805 = vld [vmem:[%s1345 + $0x52] sm:$0xff]
  %v1806 = vld [vmem:[%s1345 + $0x62] sm:$0xff]
  %v1807 = vld [vmem:[%s1345 + $0x72] sm:$0xff]
  %v1808 = vld [vmem:[%s1345 + $0xa2] sm:$0xff]
  %v1809 = vld [vmem:[%s1345 + $0xb2] sm:$0xff]
  %v1810 = vld [vmem:[%s1345 + $0xc2] sm:$0xff]
  %v1811 = vld [vmem:[%s1345 + $0xd2] sm:$0xff]
  %v1812 = vld [vmem:[%s1345 + $0xe2] sm:$0xff]
  %v1813 = vld [vmem:[%s1345 + $0xf2] sm:$0xff]
  %v1814 = vld [vmem:[%s1345 + $0x102] sm:$0xff]
  %v1815 = vld [vmem:[%s1345 + $0x112] sm:$0xff]
  %s1816 = scalar_lea.vmem %s1, 64
  %v1817 = vld [vmem:[%s1816] sm:$0xff]
  %v1819 = vsel %vm49, %v1800, 0
  %v1822 = vsel %vm49, %v1801, 0
  %v1825 = vsel %vm49, %v1802, 0
  %v1828 = vsel %vm49, %v1803, 0
  %v1831 = vsel %vm49, %v1804, 0
  %v1834 = vsel %vm49, %v1805, 0
  %v1837 = vsel %vm49, %v1806, 0
  %v1840 = vsel %vm49, %v1807, 0
  %v1843 = vsel %vm49, %v1808, 0
  %v1846 = vsel %vm49, %v1809, 0
  %v1849 = vsel %vm49, %v1810, 0
  %v1852 = vsel %vm49, %v1811, 0
  %v1855 = vsel %vm49, %v1812, 0
  %v1858 = vsel %vm49, %v1813, 0
  %v1861 = vsel %vm49, %v1814, 0
  %v1864 = vsel %vm49, %v1815, 0
  %1866 = vmatprep.subr.mxu0 0.0
  %1867 = vmatpush1.msra.mxu0 %v1817
  %1868 = vmatprep.subr.mxu0 0.0
  %1869 = vmatpush1.msra.mxu0 0.0
  %1870 = vmatprep.subr.mxu0 0.0
  %1871 = vmatpush1.msra.mxu0 0.0
  %1872 = vmatprep.subr.mxu0 0.0
  %1873 = vmatpush1.msra.mxu0 0.0
  %1874 = vmatprep.subr.mxu0 0.0
  %1875 = vmatpush1.msra.mxu0 0.0
  %1876 = vmatprep.subr.mxu0 0.0
  %1877 = vmatpush1.msra.mxu0 0.0
  %1878 = vmatprep.subr.mxu0 0.0
  %1879 = vmatpush1.msra.mxu0 0.0
  %1880 = vmatprep.subr.mxu0 0.0
  %1881 = vmatpush1.msra.mxu0 0.0
  %1882 = vmatprep.subr.mxu0 0.0
  %1883 = vmatpush1.msra.mxu0 0.0
  %1884 = vmatprep.subr.mxu0 0.0
  %1885 = vmatpush1.msra.mxu0 0.0
  %1886 = vmatprep.subr.mxu0 0.0
  %1887 = vmatpush1.msra.mxu0 0.0
  %1888 = vmatprep.subr.mxu0 0.0
  %1889 = vmatpush1.msra.mxu0 0.0
  %1890 = vmatprep.subr.mxu0 0.0
  %1891 = vmatpush1.msra.mxu0 0.0
  %1892 = vmatprep.subr.mxu0 0.0
  %1893 = vmatpush1.msra.mxu0 0.0
  %1894 = vmatprep.subr.mxu0 0.0
  %1895 = vmatpush1.msra.mxu0 0.0
  %1896 = vmatprep.subr.mxu0 0.0
  %1897 = vmatpush1.msra.mxu0 0.0
  %1898 = vmatprep.subr.mxu0 0.0
  %1899 = vmatpush1.msra.mxu0 0.0
  %1900 = vmatprep.subr.mxu0 0.0
  %1901 = vmatpush1.msra.mxu0 0.0
  %1902 = vmatprep.subr.mxu0 0.0
  %1903 = vmatpush1.msra.mxu0 0.0
  %1904 = vmatprep.subr.mxu0 0.0
  %1905 = vmatpush1.msra.mxu0 0.0
  %1906 = vmatprep.subr.mxu0 0.0
  %1907 = vmatpush1.msra.mxu0 0.0
  %1908 = vmatprep.subr.mxu0 0.0
  %1909 = vmatpush1.msra.mxu0 0.0
  %1910 = vmatprep.subr.mxu0 0.0
  %1911 = vmatpush1.msra.mxu0 0.0
  %1912 = vmatprep.subr.mxu0 0.0
  %1913 = vmatpush1.msra.mxu0 0.0
  %1914 = vmatprep.subr.mxu0 0.0
  %1915 = vmatpush1.msra.mxu0 0.0
  %1916 = vmatprep.subr.mxu0 0.0
  %1917 = vmatpush1.msra.mxu0 0.0
  %1918 = vmatprep.subr.mxu0 0.0
  %1919 = vmatpush1.msra.mxu0 0.0
  %1920 = vmatprep.subr.mxu0 0.0
  %1921 = vmatpush1.msra.mxu0 0.0
  %1922 = vmatprep.subr.mxu0 0.0
  %1923 = vmatpush1.msra.mxu0 0.0
  %1924 = vmatprep.subr.mxu0 0.0
  %1925 = vmatpush1.msra.mxu0 0.0
  %1926 = vmatprep.subr.mxu0 0.0
  %1927 = vmatpush1.msra.mxu0 0.0
  %1928 = vmatprep.subr.mxu0 0.0
  %1929 = vmatpush1.msra.mxu0 0.0
  %1930 = vmatprep.mubr.f32.mxu0 0.0
  %1931 = vmatmul.mubr.f32.gmra.mrb[0].mxu0 %v1819
  %v1932 = vpop.f32.mrb[0].mxu0
  %v1933 = vadd.f32 0.0, %v1932
  %v1934 = vpop.f32.mrb[0].mxu0
  %1935 = vmatprep.mubr.f32.mxu0 0.0
  %1936 = vmatmul.mubr.f32.gmra.mrb[0].mxu0 %v1822
  %v1937 = vpop.f32.mrb[0].mxu0
  %v1938 = vadd.f32 0.0, %v1937
  %v1939 = vpop.f32.mrb[0].mxu0
  %1940 = vmatprep.mubr.f32.mxu0 0.0
  %1941 = vmatmul.mubr.f32.gmra.mrb[0].mxu0 %v1825
  %v1942 = vpop.f32.mrb[0].mxu0
  %v1943 = vadd.f32 0.0, %v1942
  %v1944 = vpop.f32.mrb[0].mxu0
  %1945 = vmatprep.mubr.f32.mxu0 0.0
  %1946 = vmatmul.mubr.f32.gmra.mrb[0].mxu0 %v1828
  %v1947 = vpop.f32.mrb[0].mxu0
  %v1948 = vadd.f32 0.0, %v1947
  %v1949 = vpop.f32.mrb[0].mxu0
  %1950 = vmatprep.mubr.f32.mxu0 0.0
  %1951 = vmatmul.mubr.f32.gmra.mrb[0].mxu0 %v1831
  %v1952 = vpop.f32.mrb[0].mxu0
  %v1953 = vadd.f32 0.0, %v1952
  %v1954 = vpop.f32.mrb[0].mxu0
  %1955 = vmatprep.mubr.f32.mxu0 0.0
  %1956 = vmatmul.mubr.f32.gmra.mrb[0].mxu0 %v1834
  %v1957 = vpop.f32.mrb[0].mxu0
  %v1958 = vadd.f32 0.0, %v1957
  %v1959 = vpop.f32.mrb[0].mxu0
  %1960 = vmatprep.mubr.f32.mxu0 0.0
  %1961 = vmatmul.mubr.f32.gmra.mrb[0].mxu0 %v1837
  %v1962 = vpop.f32.mrb[0].mxu0
  %v1963 = vadd.f32 0.0, %v1962
  %v1964 = vpop.f32.mrb[0].mxu0
  %1965 = vmatprep.mubr.f32.mxu0 0.0
  %1966 = vmatmul.mubr.f32.gmra.mrb[0].mxu0 %v1840
  %v1967 = vpop.f32.mrb[0].mxu0
  %v1968 = vadd.f32 0.0, %v1967
  %v1969 = vpop.f32.mrb[0].mxu0
  %1970 = vmatprep.mubr.f32.mxu0 0.0
  %1971 = vmatmul.mubr.f32.gmra.mrb[0].mxu0 %v1843
  %v1972 = vpop.f32.mrb[0].mxu0
  %v1973 = vadd.f32 0.0, %v1972
  %v1974 = vpop.f32.mrb[0].mxu0
  %1975 = vmatprep.mubr.f32.mxu0 0.0
  %1976 = vmatmul.mubr.f32.gmra.mrb[0].mxu0 %v1846
  %v1977 = vpop.f32.mrb[0].mxu0
  %v1978 = vadd.f32 0.0, %v1977
  %v1979 = vpop.f32.mrb[0].mxu0
  %1980 = vmatprep.mubr.f32.mxu0 0.0
  %1981 = vmatmul.mubr.f32.gmra.mrb[0].mxu0 %v1849
  %v1982 = vpop.f32.mrb[0].mxu0
  %v1983 = vadd.f32 0.0, %v1982
  %v1984 = vpop.f32.mrb[0].mxu0
  %1985 = vmatprep.mubr.f32.mxu0 0.0
  %1986 = vmatmul.mubr.f32.gmra.mrb[0].mxu0 %v1852
  %v1987 = vpop.f32.mrb[0].mxu0
  %v1988 = vadd.f32 0.0, %v1987
  %v1989 = vpop.f32.mrb[0].mxu0
  %1990 = vmatprep.mubr.f32.mxu0 0.0
  %1991 = vmatmul.mubr.f32.gmra.mrb[0].mxu0 %v1855
  %v1992 = vpop.f32.mrb[0].mxu0
  %v1993 = vadd.f32 0.0, %v1992
  %v1994 = vpop.f32.mrb[0].mxu0
  %1995 = vmatprep.mubr.f32.mxu0 0.0
  %1996 = vmatmul.mubr.f32.gmra.mrb[0].mxu0 %v1858
  %v1997 = vpop.f32.mrb[0].mxu0
  %v1998 = vadd.f32 0.0, %v1997
  %v1999 = vpop.f32.mrb[0].mxu0
  %2000 = vmatprep.mubr.f32.mxu0 0.0
  %2001 = vmatmul.mubr.f32.gmra.mrb[0].mxu0 %v1861
  %v2002 = vpop.f32.mrb[0].mxu0
  %v2003 = vadd.f32 0.0, %v2002
  %v2004 = vpop.f32.mrb[0].mxu0
  %2005 = vmatprep.mubr.f32.mxu0 0.0
  %2006 = vmatmul.mubr.f32.gmra.mrb[0].mxu0 %v1864
  %v2007 = vpop.f32.mrb[0].mxu0
  %v2008 = vadd.f32 0.0, %v2007
  %v2009 = vpop.f32.mrb[0].mxu0
  %2010 = vdwg.mxu0
  %v2011 = vadd.f32 %v1784, %v1933
  %v2012 = vadd.f32 %v1785, %v1938
  %v2013 = vadd.f32 %v1786, %v1943
  %v2014 = vadd.f32 %v1787, %v1948
  %v2015 = vadd.f32 %v1788, %v1953
  %v2016 = vadd.f32 %v1789, %v1958
  %v2017 = vadd.f32 %v1790, %v1963
  %v2018 = vadd.f32 %v1791, %v1968
  %v2019 = vadd.f32 %v1792, %v1973
  %v2020 = vadd.f32 %v1793, %v1978
  %v2021 = vadd.f32 %v1794, %v1983
  %v2022 = vadd.f32 %v1795, %v1988
  %v2023 = vadd.f32 %v1796, %v1993
  %v2024 = vadd.f32 %v1797, %v1998
  %v2025 = vadd.f32 %v1798, %v2003
  %v2026 = vadd.f32 %v1799, %v2008
  %2027 = vst.msk [vmem:[%s2] sm:$0xff] %vm49, %v2011
  %2028 = vst.msk [vmem:[%s2 + $0x8] sm:$0xff] %vm49, %v2012
  %2029 = vst.msk [vmem:[%s2 + $0x10] sm:$0xff] %vm49, %v2013
  %2030 = vst.msk [vmem:[%s2 + $0x18] sm:$0xff] %vm49, %v2014
  %2031 = vst.msk [vmem:[%s2 + $0x20] sm:$0xff] %vm49, %v2015
  %2032 = vst.msk [vmem:[%s2 + $0x28] sm:$0xff] %vm49, %v2016
  %2033 = vst.msk [vmem:[%s2 + $0x30] sm:$0xff] %vm49, %v2017
  %2034 = vst.msk [vmem:[%s2 + $0x38] sm:$0xff] %vm49, %v2018
  %2035 = vst.msk [vmem:[%s2 + $0x40] sm:$0xff] %vm49, %v2019
  %2036 = vst.msk [vmem:[%s2 + $0x48] sm:$0xff] %vm49, %v2020
  %2037 = vst.msk [vmem:[%s2 + $0x50] sm:$0xff] %vm49, %v2021
  %2038 = vst.msk [vmem:[%s2 + $0x58] sm:$0xff] %vm49, %v2022
  %2039 = vst.msk [vmem:[%s2 + $0x60] sm:$0xff] %vm49, %v2023
  %2040 = vst.msk [vmem:[%s2 + $0x68] sm:$0xff] %vm49, %v2024
  %2041 = vst.msk [vmem:[%s2 + $0x70] sm:$0xff] %vm49, %v2025
  %2042 = vst.msk [vmem:[%s2 + $0x78] sm:$0xff] %vm49, %v2026
  %v2043 = vsel %vm49, %v2011, 0.0
  %v2044 = vsel %vm49, %v2012, 0.0
  %v2045 = vadd.f32 %v2043, %v2044
  %v2046 = vsel %vm49, %v2013, 0.0
  %v2047 = vadd.f32 %v2045, %v2046
  %v2048 = vsel %vm49, %v2014, 0.0
  %v2049 = vadd.f32 %v2047, %v2048
  %v2050 = vsel %vm49, %v2015, 0.0
  %v2051 = vadd.f32 %v2049, %v2050
  %v2052 = vsel %vm49, %v2016, 0.0
  %v2053 = vadd.f32 %v2051, %v2052
  %v2054 = vsel %vm49, %v2017, 0.0
  %v2055 = vadd.f32 %v2053, %v2054
  %v2056 = vsel %vm49, %v2018, 0.0
  %v2057 = vadd.f32 %v2055, %v2056
  %v2058 = vsel %vm49, %v2019, 0.0
  %v2059 = vadd.f32 %v2057, %v2058
  %v2060 = vsel %vm49, %v2020, 0.0
  %v2061 = vadd.f32 %v2059, %v2060
  %v2062 = vsel %vm49, %v2021, 0.0
  %v2063 = vadd.f32 %v2061, %v2062
  %v2064 = vsel %vm49, %v2022, 0.0
  %v2065 = vadd.f32 %v2063, %v2064
  %v2066 = vsel %vm49, %v2023, 0.0
  %v2067 = vadd.f32 %v2065, %v2066
  %v2068 = vsel %vm49, %v2024, 0.0
  %v2069 = vadd.f32 %v2067, %v2068
  %v2070 = vsel %vm49, %v2025, 0.0
  %v2071 = vadd.f32 %v2069, %v2070
  %v2072 = vsel %vm49, %v2026, 0.0
  %v2073 = vadd.f32 %v2071, %v2072
  %v2074 = vrot.slane %v2073, 4
  %v2075 = vadd.f32 %v2073, %v2074
  %v2076 = vrot.slane %v2075, 2
  %v2077 = vadd.f32 %v2075, %v2076
  %v2078 = vrot.slane %v2077, 1
  %v2079 = vadd.f32 %v2077, %v2078
  %vm2080 = vcmask 57344
  %2081 = vst.msk [vmem:[%s3] sm:$0x1] %vm2080, %v2079
  %v2082 = vmul.f32 %v2011, %v2011
  %v2083 = vmul.f32 %v2012, %v2012
  %v2084 = vmul.f32 %v2013, %v2013
  %v2085 = vmul.f32 %v2014, %v2014
  %v2086 = vmul.f32 %v2015, %v2015
  %v2087 = vmul.f32 %v2016, %v2016
  %v2088 = vmul.f32 %v2017, %v2017
  %v2089 = vmul.f32 %v2018, %v2018
  %v2090 = vmul.f32 %v2019, %v2019
  %v2091 = vmul.f32 %v2020, %v2020
  %v2092 = vmul.f32 %v2021, %v2021
  %v2093 = vmul.f32 %v2022, %v2022
  %v2094 = vmul.f32 %v2023, %v2023
  %v2095 = vmul.f32 %v2024, %v2024
  %v2096 = vmul.f32 %v2025, %v2025
  %v2097 = vmul.f32 %v2026, %v2026
  %v2098 = vsel %vm49, %v2082, 0.0
  %v2099 = vsel %vm49, %v2083, 0.0
  %v2100 = vadd.f32 %v2098, %v2099
  %v2101 = vsel %vm49, %v2084, 0.0
  %v2102 = vadd.f32 %v2100, %v2101
  %v2103 = vsel %vm49, %v2085, 0.0
  %v2104 = vadd.f32 %v2102, %v2103
  %v2105 = vsel %vm49, %v2086, 0.0
  %v2106 = vadd.f32 %v2104, %v2105
  %v2107 = vsel %vm49, %v2087, 0.0
  %v2108 = vadd.f32 %v2106, %v2107
  %v2109 = vsel %vm49, %v2088, 0.0
  %v2110 = vadd.f32 %v2108, %v2109
  %v2111 = vsel %vm49, %v2089, 0.0
  %v2112 = vadd.f32 %v2110, %v2111
  %v2113 = vsel %vm49, %v2090, 0.0
  %v2114 = vadd.f32 %v2112, %v2113
  %v2115 = vsel %vm49, %v2091, 0.0
  %v2116 = vadd.f32 %v2114, %v2115
  %v2117 = vsel %vm49, %v2092, 0.0
  %v2118 = vadd.f32 %v2116, %v2117
  %v2119 = vsel %vm49, %v2093, 0.0
  %v2120 = vadd.f32 %v2118, %v2119
  %v2121 = vsel %vm49, %v2094, 0.0
  %v2122 = vadd.f32 %v2120, %v2121
  %v2123 = vsel %vm49, %v2095, 0.0
  %v2124 = vadd.f32 %v2122, %v2123
  %v2125 = vsel %vm49, %v2096, 0.0
  %v2126 = vadd.f32 %v2124, %v2125
  %v2127 = vsel %vm49, %v2097, 0.0
  %v2128 = vadd.f32 %v2126, %v2127
  %v2129 = vrot.slane %v2128, 4
  %v2130 = vadd.f32 %v2128, %v2129
  %v2131 = vrot.slane %v2130, 2
  %v2132 = vadd.f32 %v2130, %v2131
  %v2133 = vrot.slane %v2132, 1
  %v2134 = vadd.f32 %v2132, %v2133
  %2135 = vst.msk [vmem:[%s4] sm:$0x1] %vm2080, %v2134
  // Predicated region
  $region10: #{plain_block.3} parent=0 // pred_check
    _
  $region11: #{plain_block.3} parent=0 // pred_check_branch
    %2137 = sbr.rel (0) target = $region13
  $region12: #{plain_block.3} parent=0 // pred_region
    _
  $region13: #{plain_block.3} parent=0 // pred_fallthru
    _
  // Predicated region
  $region14: #{plain_block.3} parent=0 // pred_check
    _
  $region15: #{plain_block.3} parent=0 // pred_check_branch
    %2139 = sbr.rel (0) target = $region17
  $region16: #{plain_block.3} parent=0 // pred_region
    _
  $region17: #{plain_block.3} parent=0 // pred_fallthru
    _
  // Predicated region
  $region18: #{plain_block.3} parent=0 // pred_check
    _
  $region19: #{plain_block.3} parent=0 // pred_check_branch
    %2141 = sbr.rel (0) target = $region21
  $region20: #{plain_block.3} parent=0 // pred_region
    _
  $region21: #{plain_block.3} parent=0 // pred_fallthru
    _
  // Predicated region
  $region22: #{plain_block.3} parent=0 // pred_check
    _
  $region23: #{plain_block.3} parent=0 // pred_check_branch
    %2143 = sbr.rel (0) target = $region25
  $region24: #{plain_block.3} parent=0 // pred_region
    _
  $region25: #{plain_block.3} parent=0 // pred_fallthru
    _
  // Predicated region
  $region26: #{plain_block.3} parent=0 // pred_check
    _
  $region27: #{plain_block.3} parent=0 // pred_check_branch
    %2145 = sbr.rel (0) target = $region29
  $region28: #{plain_block.3} parent=0 // pred_region
    _
  $region29: #{plain_block.3} parent=0 // pred_fallthru
    _
  // Predicated region
  $region30: #{plain_block.3} parent=0 // pred_check
    _
  $region31: #{plain_block.3} parent=0 // pred_check_branch
    %2147 = sbr.rel (0) target = $region33
  $region32: #{plain_block.3} parent=0 // pred_region
    _
  $region33: #{plain_block.3} parent=0 // pred_fallthru
    _

</llo_original>
